<compile_context>
chip_gen: v6e
topology: v6e:2x2x1
jax: 0.10.0
libtpu: 0.0.40
codegen_flags: <defaults>
</compile_context>

<pallas_src>
import functools

import jax
import jax.numpy as jnp
from jax.experimental import pallas as pl
from jax.experimental.pallas import tpu as pltpu

LANE = 128


def _round_up(x, m):
    return ((x + m - 1) // m) * m


def _leaky_relu(x, slope=0.01):
    # PyTorch F.leaky_relu default negative_slope = 0.01
    return jnp.where(x > 0, x, slope * x)


# ---------------------------------------------------------------------------
# Kernel
# ---------------------------------------------------------------------------
def dann_kernel(x_ref,
                w1f_ref, b1f_ref,        # fused layer-1 (both classifiers): (Hp, 4Hp), (1, 4Hp)
                w2m_ref, b2m_ref,        # matching layer-2 fused transform|gate: (Hp, 2Hp), (1, 2Hp)
                w2d_ref, b2d_ref,        # dataset  layer-2 fused transform|gate: (Hp, 2Hp), (1, 2Hp)
                swf_ref, sbf_ref,        # final heads, block layout: (2Hp, 128), (1, 128)
                out_ref,                 # lane-dense logits slab: (tb, 128)
                *, hp):
    # TODO(synk): GradReverse only scales the backward pass (grad * -0.5); in the
    #             forward pass it is identity, so both classifiers see `x`.
    x = x_ref[...]                        # (tb, hp) in compute dtype (bf16)
    cdt = x.dtype
    xf = x.astype(jnp.float32)

    # ---- highway layer 1: one wide matmul for [mW1 | mGW1 | dW1 | dGW1] ----
    z1 = jnp.dot(x, w1f_ref[...], preferred_element_type=jnp.float32) + b1f_ref[...]
    mt = _leaky_relu(z1[:, 0 * hp:1 * hp])
    mg = jax.nn.sigmoid(z1[:, 1 * hp:2 * hp])
    dt = _leaky_relu(z1[:, 2 * hp:3 * hp])
    dg = jax.nn.sigmoid(z1[:, 3 * hp:4 * hp])
    hm = mg * mt + (1.0 - mg) * xf        # matching branch, f32
    hd = dg * dt + (1.0 - dg) * xf        # dataset  branch, f32

    # ---- highway layer 2 (inputs differ per classifier), transform|gate fused ----
    z2m = jnp.dot(hm.astype(cdt), w2m_ref[...],
                  preferred_element_type=jnp.float32) + b2m_ref[...]
    t2m = _leaky_relu(z2m[:, :hp])
    g2m = jax.nn.sigmoid(z2m[:, hp:])
    hm2 = g2m * t2m + (1.0 - g2m) * hm

    z2d = jnp.dot(hd.astype(cdt), w2d_ref[...],
                  preferred_element_type=jnp.float32) + b2d_ref[...]
    t2d = _leaky_relu(z2d[:, :hp])
    g2d = jax.nn.sigmoid(z2d[:, hp:])
    hd2 = g2d * t2d + (1.0 - g2d) * hd

    # ---- final linear heads, written as one lane-dense (tb, 128) slab ----
    # swf rows [0:hp] hold the matching head (cols 0:2), rows [hp:2hp] the
    # dataset head (cols 2:4); all other entries are zero.
    logits = (jnp.dot(hm2.astype(cdt), swf_ref[0:hp, :],
                      preferred_element_type=jnp.float32)
              + jnp.dot(hd2.astype(cdt), swf_ref[hp:, :],
                        preferred_element_type=jnp.float32)
              + sbf_ref[...])
    out_ref[...] = logits                 # unmasked 128-lane store


# ---------------------------------------------------------------------------
# Wrapper
# ---------------------------------------------------------------------------
def _pack_classifier(params, H, Hp):
    """Pad to Hp and fuse transform|gate weights per highway layer."""
    w1, b1, gw1, gb1, w2, b2, gw2, gb2, sw, sb = params
    padw = lambda w: jnp.pad(w, ((0, Hp - H), (0, Hp - H)))
    padb = lambda b: jnp.pad(b, ((0, 0), (0, Hp - H)))
    w1f = jnp.concatenate([padw(w1), padw(gw1)], axis=1)   # (Hp, 2Hp)
    b1f = jnp.concatenate([padb(b1), padb(gb1)], axis=1)   # (1, 2Hp)
    w2f = jnp.concatenate([padw(w2), padw(gw2)], axis=1)   # (Hp, 2Hp)
    b2f = jnp.concatenate([padb(b2), padb(gb2)], axis=1)   # (1, 2Hp)
    swp = jnp.pad(sw, ((0, Hp - H), (0, 0)))               # (Hp, 2)
    return w1f, b1f, w2f, b2f, swp, sb


def dann_forward(feature, params, *, tb=256, compute_dtype=jnp.bfloat16):
    """feature: (B, H) f32. params: tuple of 20 arrays (10 per classifier).

    Returns (class_output, domain_output), each (B, 2) log-softmax in f32.
    """
    B, H = feature.shape
    f32 = jnp.float32
    Hp = _round_up(H, LANE)

    m = params[:10]
    d = params[10:]
    mw1f, mb1f, mw2f, mb2f, msw, msb = _pack_classifier(m, H, Hp)
    dw1f, db1f, dw2f, db2f, dsw, dsb = _pack_classifier(d, H, Hp)

    # Layer 1 fused across both classifiers (they consume the same x).
    w1f = jnp.concatenate([mw1f, dw1f], axis=1).astype(compute_dtype)  # (Hp, 4Hp)
    b1f = jnp.concatenate([mb1f, db1f], axis=1).astype(f32)            # (1, 4Hp)
    w2m = mw2f.astype(compute_dtype)
    b2m = mb2f.astype(f32)
    w2d = dw2f.astype(compute_dtype)
    b2d = db2f.astype(f32)

    # Final heads in a block layout so logits land lane-dense: (2Hp, 128).
    swf = jnp.zeros((2 * Hp, LANE), f32)
    swf = swf.at[0:Hp, 0:2].set(msw)
    swf = swf.at[Hp:, 2:4].set(dsw)
    swf = swf.astype(compute_dtype)
    sbf = jnp.zeros((1, LANE), f32)
    sbf = sbf.at[0, 0:2].set(msb[0])
    sbf = sbf.at[0, 2:4].set(dsb[0])

    # Batch tile: big (default 256), clamped to the (8-rounded) batch; pad B.
    tb = _round_up(max(8, min(tb, _round_up(B, 8))), 8)
    Bp = _round_up(B, tb)
    xp = jnp.pad(feature, ((0, Bp - B), (0, Hp - H))).astype(compute_dtype)

    kernel = functools.partial(dann_kernel, hp=Hp)
    full_spec = lambda shape: pl.BlockSpec(shape, lambda i: (0, 0))

    slab = pl.pallas_call(
        kernel,
        grid=(Bp // tb,),
        in_specs=[pl.BlockSpec((tb, Hp), lambda i: (i, 0)),
                  full_spec(w1f.shape), full_spec(b1f.shape),
                  full_spec(w2m.shape), full_spec(b2m.shape),
                  full_spec(w2d.shape), full_spec(b2d.shape),
                  full_spec(swf.shape), full_spec(sbf.shape)],
        out_specs=pl.BlockSpec((tb, LANE), lambda i: (i, 0)),
        out_shape=jax.ShapeDtypeStruct((Bp, LANE), f32),
        compiler_params=pltpu.CompilerParams(
            dimension_semantics=("parallel",)),
    )(xp, w1f, b1f, w2m, b2m, w2d, b2d, swf, sbf)

    logits = slab[:B, :4]
    class_out = jax.nn.log_softmax(logits[:, 0:2], axis=-1)
    domain_out = jax.nn.log_softmax(logits[:, 2:4], axis=-1)
    return class_out, domain_out


# ---------------------------------------------------------------------------
# Pure-JAX references
# ---------------------------------------------------------------------------
def _classifier_ref(x, params, cdt):
    """Mirrors the kernel math (optionally with bf16 matmul operands)."""
    w1, b1, gw1, gb1, w2, b2, gw2, gb2, sw, sb = params

    def highway(xf, xc, w, b, gw, gb):
        z = jnp.dot(xc, w.astype(cdt), preferred_element_type=jnp.float32) + b
        t = _leaky_relu(z)
        g = jax.nn.sigmoid(
            jnp.dot(xc, gw.astype(cdt), preferred_element_type=jnp.float32) + gb)
        return g * t + (1.0 - g) * xf

    xc = x.astype(cdt)
    h1 = highway(xc.astype(jnp.float32), xc, w1, b1, gw1, gb1)
    h2 = highway(h1, h1.astype(cdt), w2, b2, gw2, gb2)
    logits = jnp.dot(h2.astype(cdt), sw.astype(cdt),
                     preferred_element_type=jnp.float32) + sb
    return jax.nn.log_softmax(logits, axis=-1)


def reference_forward(feature, params, compute_dtype=jnp.bfloat16):
    return (_classifier_ref(feature, params[:10], compute_dtype),
            _classifier_ref(feature, params[10:], compute_dtype))


# ---------------------------------------------------------------------------
# Param init (PyTorch nn.Linear-style uniform init)
# ---------------------------------------------------------------------------
def init_classifier_params(key, hidden, n_classes=2):
    ks = jax.random.split(key, 10)

    def lin_w(k, nin, nout):
        lim = 1.0 / (nin ** 0.5)
        return jax.random.uniform(k, (nin, nout), jnp.float32, -lim, lim)

    def lin_b(k, nin, nout):
        lim = 1.0 / (nin ** 0.5)
        return jax.random.uniform(k, (1, nout), jnp.float32, -lim, lim)

    w1, b1 = lin_w(ks[0], hidden, hidden), lin_b(ks[1], hidden, hidden)
    gw1, gb1 = lin_w(ks[2], hidden, hidden), lin_b(ks[3], hidden, hidden)
    w2, b2 = lin_w(ks[4], hidden, hidden), lin_b(ks[5], hidden, hidden)
    gw2, gb2 = lin_w(ks[6], hidden, hidden), lin_b(ks[7], hidden, hidden)
    sw, sb = lin_w(ks[8], hidden, n_classes), lin_b(ks[9], hidden, n_classes)
    return (w1, b1, gw1, gb1, w2, b2, gw2, gb2, sw, sb)


if __name__ == "__main__":
    key = jax.random.PRNGKey(0)
    k_feat, k_match, k_dom = jax.random.split(key, 3)

    # Small batch, module-default hidden size (300) — exercises both the
    # batch-tile clamping/padding and the 300 -> 384 lane padding path.
    B, H = 16, 300
    feature = jax.random.normal(k_feat, (B, H), jnp.float32)

    matching_params = init_classifier_params(k_match, H)
    dataset_params = init_classifier_params(k_dom, H)
    params = matching_params + dataset_params

    class_out, domain_out = jax.jit(dann_forward)(feature, params)
    class_out = jax.block_until_ready(class_out)
    domain_out = jax.block_until_ready(domain_out)
    assert class_out.shape == (B, 2) and domain_out.shape == (B, 2)

    # Tight check vs. a pure-JAX reference using the same bf16 matmul operands.
    ref_c, ref_d = reference_forward(feature, params, jnp.bfloat16)
    assert jnp.allclose(class_out, ref_c, atol=1e-3, rtol=1e-3)
    assert jnp.allclose(domain_out, ref_d, atol=1e-3, rtol=1e-3)

    # Loose check vs. the full-precision (f32) reference.
    ref_c32, ref_d32 = reference_forward(feature, params, jnp.float32)
    assert jnp.allclose(class_out, ref_c32, atol=1e-1, rtol=5e-2)
    assert jnp.allclose(domain_out, ref_d32, atol=1e-1, rtol=5e-2)

    print("KERNEL_OK")
</pallas_src>

<mosaic_0001>
module attributes {stable_mosaic.version = 11 : i64} {
  func.func @dann_kernel(%arg0: i32, %arg1: memref<16x384xbf16, #tpu.memory_space<vmem>>, %arg2: memref<384x1536xbf16, #tpu.memory_space<vmem>>, %arg3: memref<1x1536xf32, #tpu.memory_space<vmem>>, %arg4: memref<384x768xbf16, #tpu.memory_space<vmem>>, %arg5: memref<1x768xf32, #tpu.memory_space<vmem>>, %arg6: memref<384x768xbf16, #tpu.memory_space<vmem>>, %arg7: memref<1x768xf32, #tpu.memory_space<vmem>>, %arg8: memref<768x128xbf16, #tpu.memory_space<vmem>>, %arg9: memref<1x128xf32, #tpu.memory_space<vmem>>, %arg10: memref<16x128xf32, #tpu.memory_space<vmem>>) attributes {dimension_semantics = [#tpu.dimension_semantics<parallel>], iteration_bounds = array<i64: 1>, scalar_prefetch = 0 : i64, scratch_operands = 0 : i64, tpu.core_type = #tpu.core_type<tc>, window_params = [{transform_indices = @transform_0, window_bounds = array<i64: 16, 384>}, {pipeline_mode = #tpu.pipeline_mode<synchronous>, transform_indices = @transform_1, window_bounds = array<i64: 384, 1536>}, {pipeline_mode = #tpu.pipeline_mode<synchronous>, transform_indices = @transform_2, window_bounds = array<i64: 1, 1536>}, {pipeline_mode = #tpu.pipeline_mode<synchronous>, transform_indices = @transform_3, window_bounds = array<i64: 384, 768>}, {pipeline_mode = #tpu.pipeline_mode<synchronous>, transform_indices = @transform_4, window_bounds = array<i64: 1, 768>}, {pipeline_mode = #tpu.pipeline_mode<synchronous>, transform_indices = @transform_5, window_bounds = array<i64: 384, 768>}, {pipeline_mode = #tpu.pipeline_mode<synchronous>, transform_indices = @transform_6, window_bounds = array<i64: 1, 768>}, {pipeline_mode = #tpu.pipeline_mode<synchronous>, transform_indices = @transform_7, window_bounds = array<i64: 768, 128>}, {pipeline_mode = #tpu.pipeline_mode<synchronous>, transform_indices = @transform_8, window_bounds = array<i64: 1, 128>}, {transform_indices = @transform_9, window_bounds = array<i64: 16, 128>}]} {
    %c0 = arith.constant 0 : index
    %c0_0 = arith.constant 0 : index
    %0 = vector.load %arg1[%c0, %c0_0] : memref<16x384xbf16, #tpu.memory_space<vmem>>, vector<16x384xbf16>
    %1 = arith.extf %0 : vector<16x384xbf16> to vector<16x384xf32>
    %c0_1 = arith.constant 0 : index
    %c0_2 = arith.constant 0 : index
    %2 = vector.load %arg2[%c0_1, %c0_2] : memref<384x1536xbf16, #tpu.memory_space<vmem>>, vector<384x1536xbf16>
    %cst = arith.constant dense<0.000000e+00> : vector<16x1536xf32>
    %3 = tpu.matmul %0, %2, %cst {dimension_numbers = #tpu.dot_dimension_numbers<[1], [0], [0], [1], [0, 0, 1, 1], [], []>} : vector<16x384xbf16>, vector<384x1536xbf16>, vector<16x1536xf32> -> vector<16x1536xf32>
    %c0_3 = arith.constant 0 : index
    %c0_4 = arith.constant 0 : index
    %4 = vector.load %arg3[%c0_3, %c0_4] : memref<1x1536xf32, #tpu.memory_space<vmem>>, vector<1x1536xf32>
    %5 = vector.broadcast %4 : vector<1x1536xf32> to vector<16x1536xf32>
    %6 = arith.addf %3, %5 : vector<16x1536xf32>
    %7 = vector.extract_strided_slice %6 {offsets = [0, 0], sizes = [16, 384], strides = [1, 1]} : vector<16x1536xf32> to vector<16x384xf32>
    %cst_5 = arith.constant 0.000000e+00 : f32
    %8 = vector.broadcast %cst_5 : f32 to vector<16x384xf32>
    %9 = arith.cmpf ogt, %7, %8 : vector<16x384xf32>
    %cst_6 = arith.constant 0.00999999977 : f32
    %10 = vector.broadcast %cst_6 : f32 to vector<16x384xf32>
    %11 = arith.mulf %10, %7 : vector<16x384xf32>
    %12 = arith.select %9, %7, %11 : vector<16x384xi1>, vector<16x384xf32>
    %13 = vector.extract_strided_slice %6 {offsets = [0, 384], sizes = [16, 384], strides = [1, 1]} : vector<16x1536xf32> to vector<16x384xf32>
    %14 = arith.negf %13 : vector<16x384xf32>
    %15 = math.exp %14 : vector<16x384xf32>
    %cst_7 = arith.constant 1.000000e+00 : f32
    %16 = vector.broadcast %cst_7 : f32 to vector<16x384xf32>
    %17 = arith.addf %16, %15 : vector<16x384xf32>
    %18 = arith.divf %16, %17 : vector<16x384xf32>
    %19 = vector.extract_strided_slice %6 {offsets = [0, 768], sizes = [16, 384], strides = [1, 1]} : vector<16x1536xf32> to vector<16x384xf32>
    %cst_8 = arith.constant 0.000000e+00 : f32
    %20 = vector.broadcast %cst_8 : f32 to vector<16x384xf32>
    %21 = arith.cmpf ogt, %19, %20 : vector<16x384xf32>
    %cst_9 = arith.constant 0.00999999977 : f32
    %22 = vector.broadcast %cst_9 : f32 to vector<16x384xf32>
    %23 = arith.mulf %22, %19 : vector<16x384xf32>
    %24 = arith.select %21, %19, %23 : vector<16x384xi1>, vector<16x384xf32>
    %25 = vector.extract_strided_slice %6 {offsets = [0, 1152], sizes = [16, 384], strides = [1, 1]} : vector<16x1536xf32> to vector<16x384xf32>
    %26 = arith.negf %25 : vector<16x384xf32>
    %27 = math.exp %26 : vector<16x384xf32>
    %cst_10 = arith.constant 1.000000e+00 : f32
    %28 = vector.broadcast %cst_10 : f32 to vector<16x384xf32>
    %29 = arith.addf %28, %27 : vector<16x384xf32>
    %30 = arith.divf %28, %29 : vector<16x384xf32>
    %31 = arith.mulf %18, %12 : vector<16x384xf32>
    %cst_11 = arith.constant 1.000000e+00 : f32
    %32 = vector.broadcast %cst_11 : f32 to vector<16x384xf32>
    %33 = arith.subf %32, %18 : vector<16x384xf32>
    %34 = arith.mulf %33, %1 : vector<16x384xf32>
    %35 = arith.addf %31, %34 : vector<16x384xf32>
    %36 = arith.mulf %30, %24 : vector<16x384xf32>
    %cst_12 = arith.constant 1.000000e+00 : f32
    %37 = vector.broadcast %cst_12 : f32 to vector<16x384xf32>
    %38 = arith.subf %37, %30 : vector<16x384xf32>
    %39 = arith.mulf %38, %1 : vector<16x384xf32>
    %40 = arith.addf %36, %39 : vector<16x384xf32>
    %41 = arith.truncf %35 : vector<16x384xf32> to vector<16x384xbf16>
    %c0_13 = arith.constant 0 : index
    %c0_14 = arith.constant 0 : index
    %42 = vector.load %arg4[%c0_13, %c0_14] : memref<384x768xbf16, #tpu.memory_space<vmem>>, vector<384x768xbf16>
    %cst_15 = arith.constant dense<0.000000e+00> : vector<16x768xf32>
    %43 = tpu.matmul %41, %42, %cst_15 {dimension_numbers = #tpu.dot_dimension_numbers<[1], [0], [0], [1], [0, 0, 1, 1], [], []>} : vector<16x384xbf16>, vector<384x768xbf16>, vector<16x768xf32> -> vector<16x768xf32>
    %c0_16 = arith.constant 0 : index
    %c0_17 = arith.constant 0 : index
    %44 = vector.load %arg5[%c0_16, %c0_17] : memref<1x768xf32, #tpu.memory_space<vmem>>, vector<1x768xf32>
    %45 = vector.broadcast %44 : vector<1x768xf32> to vector<16x768xf32>
    %46 = arith.addf %43, %45 : vector<16x768xf32>
    %47 = vector.extract_strided_slice %46 {offsets = [0, 0], sizes = [16, 384], strides = [1, 1]} : vector<16x768xf32> to vector<16x384xf32>
    %cst_18 = arith.constant 0.000000e+00 : f32
    %48 = vector.broadcast %cst_18 : f32 to vector<16x384xf32>
    %49 = arith.cmpf ogt, %47, %48 : vector<16x384xf32>
    %cst_19 = arith.constant 0.00999999977 : f32
    %50 = vector.broadcast %cst_19 : f32 to vector<16x384xf32>
    %51 = arith.mulf %50, %47 : vector<16x384xf32>
    %52 = arith.select %49, %47, %51 : vector<16x384xi1>, vector<16x384xf32>
    %53 = vector.extract_strided_slice %46 {offsets = [0, 384], sizes = [16, 384], strides = [1, 1]} : vector<16x768xf32> to vector<16x384xf32>
    %54 = arith.negf %53 : vector<16x384xf32>
    %55 = math.exp %54 : vector<16x384xf32>
    %cst_20 = arith.constant 1.000000e+00 : f32
    %56 = vector.broadcast %cst_20 : f32 to vector<16x384xf32>
    %57 = arith.addf %56, %55 : vector<16x384xf32>
    %58 = arith.divf %56, %57 : vector<16x384xf32>
    %59 = arith.mulf %58, %52 : vector<16x384xf32>
    %cst_21 = arith.constant 1.000000e+00 : f32
    %60 = vector.broadcast %cst_21 : f32 to vector<16x384xf32>
    %61 = arith.subf %60, %58 : vector<16x384xf32>
    %62 = arith.mulf %61, %35 : vector<16x384xf32>
    %63 = arith.addf %59, %62 : vector<16x384xf32>
    %64 = arith.truncf %40 : vector<16x384xf32> to vector<16x384xbf16>
    %c0_22 = arith.constant 0 : index
    %c0_23 = arith.constant 0 : index
    %65 = vector.load %arg6[%c0_22, %c0_23] : memref<384x768xbf16, #tpu.memory_space<vmem>>, vector<384x768xbf16>
    %cst_24 = arith.constant dense<0.000000e+00> : vector<16x768xf32>
    %66 = tpu.matmul %64, %65, %cst_24 {dimension_numbers = #tpu.dot_dimension_numbers<[1], [0], [0], [1], [0, 0, 1, 1], [], []>} : vector<16x384xbf16>, vector<384x768xbf16>, vector<16x768xf32> -> vector<16x768xf32>
    %c0_25 = arith.constant 0 : index
    %c0_26 = arith.constant 0 : index
    %67 = vector.load %arg7[%c0_25, %c0_26] : memref<1x768xf32, #tpu.memory_space<vmem>>, vector<1x768xf32>
    %68 = vector.broadcast %67 : vector<1x768xf32> to vector<16x768xf32>
    %69 = arith.addf %66, %68 : vector<16x768xf32>
    %70 = vector.extract_strided_slice %69 {offsets = [0, 0], sizes = [16, 384], strides = [1, 1]} : vector<16x768xf32> to vector<16x384xf32>
    %cst_27 = arith.constant 0.000000e+00 : f32
    %71 = vector.broadcast %cst_27 : f32 to vector<16x384xf32>
    %72 = arith.cmpf ogt, %70, %71 : vector<16x384xf32>
    %cst_28 = arith.constant 0.00999999977 : f32
    %73 = vector.broadcast %cst_28 : f32 to vector<16x384xf32>
    %74 = arith.mulf %73, %70 : vector<16x384xf32>
    %75 = arith.select %72, %70, %74 : vector<16x384xi1>, vector<16x384xf32>
    %76 = vector.extract_strided_slice %69 {offsets = [0, 384], sizes = [16, 384], strides = [1, 1]} : vector<16x768xf32> to vector<16x384xf32>
    %77 = arith.negf %76 : vector<16x384xf32>
    %78 = math.exp %77 : vector<16x384xf32>
    %cst_29 = arith.constant 1.000000e+00 : f32
    %79 = vector.broadcast %cst_29 : f32 to vector<16x384xf32>
    %80 = arith.addf %79, %78 : vector<16x384xf32>
    %81 = arith.divf %79, %80 : vector<16x384xf32>
    %82 = arith.mulf %81, %75 : vector<16x384xf32>
    %cst_30 = arith.constant 1.000000e+00 : f32
    %83 = vector.broadcast %cst_30 : f32 to vector<16x384xf32>
    %84 = arith.subf %83, %81 : vector<16x384xf32>
    %85 = arith.mulf %84, %40 : vector<16x384xf32>
    %86 = arith.addf %82, %85 : vector<16x384xf32>
    %87 = arith.truncf %63 : vector<16x384xf32> to vector<16x384xbf16>
    %c0_31 = arith.constant 0 : index
    %c0_32 = arith.constant 0 : index
    %88 = vector.load %arg8[%c0_31, %c0_32] : memref<768x128xbf16, #tpu.memory_space<vmem>>, vector<384x128xbf16>
    %cst_33 = arith.constant dense<0.000000e+00> : vector<16x128xf32>
    %89 = tpu.matmul %87, %88, %cst_33 {dimension_numbers = #tpu.dot_dimension_numbers<[1], [0], [0], [1], [0, 0, 1, 1], [], []>} : vector<16x384xbf16>, vector<384x128xbf16>, vector<16x128xf32> -> vector<16x128xf32>
    %90 = arith.truncf %86 : vector<16x384xf32> to vector<16x384xbf16>
    %c384 = arith.constant 384 : index
    %c0_34 = arith.constant 0 : index
    %91 = vector.load %arg8[%c384, %c0_34] : memref<768x128xbf16, #tpu.memory_space<vmem>>, vector<384x128xbf16>
    %cst_35 = arith.constant dense<0.000000e+00> : vector<16x128xf32>
    %92 = tpu.matmul %90, %91, %cst_35 {dimension_numbers = #tpu.dot_dimension_numbers<[1], [0], [0], [1], [0, 0, 1, 1], [], []>} : vector<16x384xbf16>, vector<384x128xbf16>, vector<16x128xf32> -> vector<16x128xf32>
    %93 = arith.addf %89, %92 : vector<16x128xf32>
    %c0_36 = arith.constant 0 : index
    %c0_37 = arith.constant 0 : index
    %94 = vector.load %arg9[%c0_36, %c0_37] : memref<1x128xf32, #tpu.memory_space<vmem>>, vector<1x128xf32>
    %95 = vector.broadcast %94 : vector<1x128xf32> to vector<16x128xf32>
    %96 = arith.addf %93, %95 : vector<16x128xf32>
    %c0_38 = arith.constant 0 : index
    %c0_39 = arith.constant 0 : index
    %97 = vector.load %arg10[%c0_38, %c0_39] : memref<16x128xf32, #tpu.memory_space<vmem>>, vector<16x128xf32>
    tpu.vector_store %arg10[%c0_38, %c0_39], %96 {strides = array<i32>} : memref<16x128xf32, #tpu.memory_space<vmem>>, vector<16x128xf32>,
    return
  }
  func.func @transform_0(%arg0: i32) -> (i32, i32) {
    %c0_i32 = arith.constant 0 : i32
    %c0_i32_0 = arith.constant 0 : i32
    return %arg0, %c0_i32 : i32, i32
  }
  func.func @transform_1(%arg0: i32) -> (i32, i32) {
    %c0_i32 = arith.constant 0 : i32
    %c0_i32_0 = arith.constant 0 : i32
    %c0_i32_1 = arith.constant 0 : i32
    return %c0_i32, %c0_i32_0 : i32, i32
  }
  func.func @transform_2(%arg0: i32) -> (i32, i32) {
    %c0_i32 = arith.constant 0 : i32
    %c0_i32_0 = arith.constant 0 : i32
    %c0_i32_1 = arith.constant 0 : i32
    return %c0_i32, %c0_i32_0 : i32, i32
  }
  func.func @transform_3(%arg0: i32) -> (i32, i32) {
    %c0_i32 = arith.constant 0 : i32
    %c0_i32_0 = arith.constant 0 : i32
    %c0_i32_1 = arith.constant 0 : i32
    return %c0_i32, %c0_i32_0 : i32, i32
  }
  func.func @transform_4(%arg0: i32) -> (i32, i32) {
    %c0_i32 = arith.constant 0 : i32
    %c0_i32_0 = arith.constant 0 : i32
    %c0_i32_1 = arith.constant 0 : i32
    return %c0_i32, %c0_i32_0 : i32, i32
  }
  func.func @transform_5(%arg0: i32) -> (i32, i32) {
    %c0_i32 = arith.constant 0 : i32
    %c0_i32_0 = arith.constant 0 : i32
    %c0_i32_1 = arith.constant 0 : i32
    return %c0_i32, %c0_i32_0 : i32, i32
  }
  func.func @transform_6(%arg0: i32) -> (i32, i32) {
    %c0_i32 = arith.constant 0 : i32
    %c0_i32_0 = arith.constant 0 : i32
    %c0_i32_1 = arith.constant 0 : i32
    return %c0_i32, %c0_i32_0 : i32, i32
  }
  func.func @transform_7(%arg0: i32) -> (i32, i32) {
    %c0_i32 = arith.constant 0 : i32
    %c0_i32_0 = arith.constant 0 : i32
    %c0_i32_1 = arith.constant 0 : i32
    return %c0_i32, %c0_i32_0 : i32, i32
  }
  func.func @transform_8(%arg0: i32) -> (i32, i32) {
    %c0_i32 = arith.constant 0 : i32
    %c0_i32_0 = arith.constant 0 : i32
    %c0_i32_1 = arith.constant 0 : i32
    return %c0_i32, %c0_i32_0 : i32, i32
  }
  func.func @transform_9(%arg0: i32) -> (i32, i32) {
    %c0_i32 = arith.constant 0 : i32
    %c0_i32_0 = arith.constant 0 : i32
    return %arg0, %c0_i32 : i32, i32
  }
}

</mosaic_0001>

<llo_original>
// kernel: dann_forward.1
$region0: #{dann_forward.1}
  #allocation0 [shape = 'u32[]', space=smem, size = 0x4, offset = 0x4, fixed_abs, tag = 'smem constant byte address 0x4 - core index']
  #allocation1 [shape = 'u32[144,128]{1,0:T(1,128)}', space=vmem, size = 0x12000, scoped, tag = 'internal scratch']
  %s0 = inlined_call_operand.vmem [shape: bf16[16,384], index: 0, kind: input, shape index: {}]
  %s1 = inlined_call_operand.vmem [shape: bf16[384,1536], index: 1, kind: input, shape index: {}]
  %s2 = inlined_call_operand.vmem [shape: f32[1,1536], index: 2, kind: input, shape index: {}]
  %s3 = inlined_call_operand.vmem [shape: bf16[384,768], index: 3, kind: input, shape index: {}]
  %s4 = inlined_call_operand.vmem [shape: f32[1,768], index: 4, kind: input, shape index: {}]
  %s5 = inlined_call_operand.vmem [shape: bf16[384,768], index: 5, kind: input, shape index: {}]
  %s6 = inlined_call_operand.vmem [shape: f32[1,768], index: 6, kind: input, shape index: {}]
  %s7 = inlined_call_operand.vmem [shape: bf16[768,128], index: 7, kind: input, shape index: {}]
  %s8 = inlined_call_operand.vmem [shape: f32[1,128], index: 8, kind: input, shape index: {}]
  %s9 = inlined_call_operand.vmem [shape: f32[16,128], index: 9, kind: output, shape index: {}]
  %s10 = sld [smem:[#allocation0]]
  $region46: #{dann_forward.1} parent=0
    _
  %s12 = ssub.s32 1, %s10
  %s13 = scalar_select 0, %s12, %s10
  // Predicated region
  $region2: #{dann_forward.1} parent=0 // pred_check
    _
  $region3: #{dann_forward.1} parent=0 // pred_check_branch
    %15 = sbr.rel (0) target = $region5
  $region4: #{dann_forward.1} parent=0 // pred_region
    _
  $region5: #{dann_forward.1} parent=0 // pred_fallthru
    _
  // Predicated region
  $region6: #{dann_forward.1} parent=0 // pred_check
    _
  $region7: #{dann_forward.1} parent=0 // pred_check_branch
    %17 = sbr.rel (0) target = $region9
  $region8: #{dann_forward.1} parent=0 // pred_region
    _
  $region9: #{dann_forward.1} parent=0 // pred_fallthru
    _
  // Predicated region
  $region10: #{dann_forward.1} parent=0 // pred_check
    _
  $region11: #{dann_forward.1} parent=0 // pred_check_branch
    %19 = sbr.rel (0) target = $region13
  $region12: #{dann_forward.1} parent=0 // pred_region
    _
  $region13: #{dann_forward.1} parent=0 // pred_fallthru
    _
  // Predicated region
  $region14: #{dann_forward.1} parent=0 // pred_check
    _
  $region15: #{dann_forward.1} parent=0 // pred_check_branch
    %21 = sbr.rel (0) target = $region17
  $region16: #{dann_forward.1} parent=0 // pred_region
    _
  $region17: #{dann_forward.1} parent=0 // pred_fallthru
    _
  // Predicated region
  $region18: #{dann_forward.1} parent=0 // pred_check
    _
  $region19: #{dann_forward.1} parent=0 // pred_check_branch
    %23 = sbr.rel (0) target = $region21
  $region20: #{dann_forward.1} parent=0 // pred_region
    _
  $region21: #{dann_forward.1} parent=0 // pred_fallthru
    _
  // Predicated region
  $region22: #{dann_forward.1} parent=0 // pred_check
    _
  $region23: #{dann_forward.1} parent=0 // pred_check_branch
    %25 = sbr.rel (0) target = $region25
  $region24: #{dann_forward.1} parent=0 // pred_region
    _
  $region25: #{dann_forward.1} parent=0 // pred_fallthru
    _
  // Predicated region
  $region26: #{dann_forward.1} parent=0 // pred_check
    _
  $region27: #{dann_forward.1} parent=0 // pred_check_branch
    %27 = sbr.rel (0) target = $region29
  $region28: #{dann_forward.1} parent=0 // pred_region
    _
  $region29: #{dann_forward.1} parent=0 // pred_fallthru
    _
  // Predicated region
  $region30: #{dann_forward.1} parent=0 // pred_check
    _
  $region31: #{dann_forward.1} parent=0 // pred_check_branch
    %29 = sbr.rel (0) target = $region33
  $region32: #{dann_forward.1} parent=0 // pred_region
    _
  $region33: #{dann_forward.1} parent=0 // pred_fallthru
    _
  // Predicated region
  $region34: #{dann_forward.1} parent=0 // pred_check
    _
  $region35: #{dann_forward.1} parent=0 // pred_check_branch
    %31 = sbr.rel (0) target = $region37
  $region36: #{dann_forward.1} parent=0 // pred_region
    _
  $region37: #{dann_forward.1} parent=0 // pred_fallthru
    _
  %v33 = vld [vmem:[%s0] sm:$0xff]
  %v34 = vld [vmem:[%s0 + $0x8] sm:$0xf]
  %v35 = vld [vmem:[%s0 + $0xc] sm:$0xff]
  %v36 = vld [vmem:[%s0 + $0x14] sm:$0xf]
  %v37 = vunpack.c.l.bf16 %v33
  %v38 = vunpack.c.h.bf16 %v33
  %v39 = vunpack.c.l.bf16 %v34
  %v40 = vunpack.c.l.bf16 %v35
  %v41 = vunpack.c.h.bf16 %v35
  %v42 = vunpack.c.l.bf16 %v36
  %v43 = vld [vmem:[%s1] sm:$0xff]
  %v44 = vld [vmem:[%s1 + $0x8] sm:$0xff]
  %v45 = vld [vmem:[%s1 + $0x10] sm:$0xff]
  %v46 = vld [vmem:[%s1 + $0x18] sm:$0xff]
  %v47 = vld [vmem:[%s1 + $0x20] sm:$0xff]
  %v48 = vld [vmem:[%s1 + $0x28] sm:$0xff]
  %v49 = vld [vmem:[%s1 + $0x30] sm:$0xff]
  %v50 = vld [vmem:[%s1 + $0x38] sm:$0xff]
  %v51 = vld [vmem:[%s1 + $0x40] sm:$0xff]
  %v52 = vld [vmem:[%s1 + $0x48] sm:$0xff]
  %v53 = vld [vmem:[%s1 + $0x50] sm:$0xff]
  %v54 = vld [vmem:[%s1 + $0x58] sm:$0xff]
  %v55 = vld [vmem:[%s1 + $0x60] sm:$0xff]
  %v56 = vld [vmem:[%s1 + $0x68] sm:$0xff]
  %v57 = vld [vmem:[%s1 + $0x70] sm:$0xff]
  %v58 = vld [vmem:[%s1 + $0x78] sm:$0xff]
  %v59 = vld [vmem:[%s1 + $0x80] sm:$0xff]
  %v60 = vld [vmem:[%s1 + $0x88] sm:$0xff]
  %v61 = vld [vmem:[%s1 + $0x90] sm:$0xff]
  %v62 = vld [vmem:[%s1 + $0x98] sm:$0xff]
  %v63 = vld [vmem:[%s1 + $0xa0] sm:$0xff]
  %v64 = vld [vmem:[%s1 + $0xa8] sm:$0xff]
  %v65 = vld [vmem:[%s1 + $0xb0] sm:$0xff]
  %v66 = vld [vmem:[%s1 + $0xb8] sm:$0xff]
  %v67 = vld [vmem:[%s1 + $0xc0] sm:$0xff]
  %v68 = vld [vmem:[%s1 + $0xc8] sm:$0xff]
  %v69 = vld [vmem:[%s1 + $0xd0] sm:$0xff]
  %v70 = vld [vmem:[%s1 + $0xd8] sm:$0xff]
  %v71 = vld [vmem:[%s1 + $0xe0] sm:$0xff]
  %v72 = vld [vmem:[%s1 + $0xe8] sm:$0xff]
  %v73 = vld [vmem:[%s1 + $0xf0] sm:$0xff]
  %v74 = vld [vmem:[%s1 + $0xf8] sm:$0xff]
  %v75 = vld [vmem:[%s1 + $0x100] sm:$0xff]
  %v76 = vld [vmem:[%s1 + $0x108] sm:$0xff]
  %v77 = vld [vmem:[%s1 + $0x110] sm:$0xff]
  %v78 = vld [vmem:[%s1 + $0x118] sm:$0xff]
  %v79 = vld [vmem:[%s1 + $0x120] sm:$0xff]
  %v80 = vld [vmem:[%s1 + $0x128] sm:$0xff]
  %v81 = vld [vmem:[%s1 + $0x130] sm:$0xff]
  %v82 = vld [vmem:[%s1 + $0x138] sm:$0xff]
  %v83 = vld [vmem:[%s1 + $0x140] sm:$0xff]
  %v84 = vld [vmem:[%s1 + $0x148] sm:$0xff]
  %v85 = vld [vmem:[%s1 + $0x150] sm:$0xff]
  %v86 = vld [vmem:[%s1 + $0x158] sm:$0xff]
  %v87 = vld [vmem:[%s1 + $0x160] sm:$0xff]
  %v88 = vld [vmem:[%s1 + $0x168] sm:$0xff]
  %v89 = vld [vmem:[%s1 + $0x170] sm:$0xff]
  %v90 = vld [vmem:[%s1 + $0x178] sm:$0xff]
  %v91 = vld [vmem:[%s1 + $0x180] sm:$0xff]
  %v92 = vld [vmem:[%s1 + $0x188] sm:$0xff]
  %v93 = vld [vmem:[%s1 + $0x190] sm:$0xff]
  %v94 = vld [vmem:[%s1 + $0x198] sm:$0xff]
  %v95 = vld [vmem:[%s1 + $0x1a0] sm:$0xff]
  %v96 = vld [vmem:[%s1 + $0x1a8] sm:$0xff]
  %v97 = vld [vmem:[%s1 + $0x1b0] sm:$0xff]
  %v98 = vld [vmem:[%s1 + $0x1b8] sm:$0xff]
  %v99 = vld [vmem:[%s1 + $0x1c0] sm:$0xff]
  %v100 = vld [vmem:[%s1 + $0x1c8] sm:$0xff]
  %v101 = vld [vmem:[%s1 + $0x1d0] sm:$0xff]
  %v102 = vld [vmem:[%s1 + $0x1d8] sm:$0xff]
  %v103 = vld [vmem:[%s1 + $0x1e0] sm:$0xff]
  %v104 = vld [vmem:[%s1 + $0x1e8] sm:$0xff]
  %v105 = vld [vmem:[%s1 + $0x1f0] sm:$0xff]
  %v106 = vld [vmem:[%s1 + $0x1f8] sm:$0xff]
  %v107 = vld [vmem:[%s1 + $0x200] sm:$0xff]
  %v108 = vld [vmem:[%s1 + $0x208] sm:$0xff]
  %v109 = vld [vmem:[%s1 + $0x210] sm:$0xff]
  %v110 = vld [vmem:[%s1 + $0x218] sm:$0xff]
  %v111 = vld [vmem:[%s1 + $0x220] sm:$0xff]
  %v112 = vld [vmem:[%s1 + $0x228] sm:$0xff]
  %v113 = vld [vmem:[%s1 + $0x230] sm:$0xff]
  %v114 = vld [vmem:[%s1 + $0x238] sm:$0xff]
  %v115 = vld [vmem:[%s1 + $0x240] sm:$0xff]
  %v116 = vld [vmem:[%s1 + $0x248] sm:$0xff]
  %v117 = vld [vmem:[%s1 + $0x250] sm:$0xff]
  %v118 = vld [vmem:[%s1 + $0x258] sm:$0xff]
  %v119 = vld [vmem:[%s1 + $0x260] sm:$0xff]
  %v120 = vld [vmem:[%s1 + $0x268] sm:$0xff]
  %v121 = vld [vmem:[%s1 + $0x270] sm:$0xff]
  %v122 = vld [vmem:[%s1 + $0x278] sm:$0xff]
  %v123 = vld [vmem:[%s1 + $0x280] sm:$0xff]
  %v124 = vld [vmem:[%s1 + $0x288] sm:$0xff]
  %v125 = vld [vmem:[%s1 + $0x290] sm:$0xff]
  %v126 = vld [vmem:[%s1 + $0x298] sm:$0xff]
  %v127 = vld [vmem:[%s1 + $0x2a0] sm:$0xff]
  %v128 = vld [vmem:[%s1 + $0x2a8] sm:$0xff]
  %v129 = vld [vmem:[%s1 + $0x2b0] sm:$0xff]
  %v130 = vld [vmem:[%s1 + $0x2b8] sm:$0xff]
  %v131 = vld [vmem:[%s1 + $0x2c0] sm:$0xff]
  %v132 = vld [vmem:[%s1 + $0x2c8] sm:$0xff]
  %v133 = vld [vmem:[%s1 + $0x2d0] sm:$0xff]
  %v134 = vld [vmem:[%s1 + $0x2d8] sm:$0xff]
  %v135 = vld [vmem:[%s1 + $0x2e0] sm:$0xff]
  %v136 = vld [vmem:[%s1 + $0x2e8] sm:$0xff]
  %v137 = vld [vmem:[%s1 + $0x2f0] sm:$0xff]
  %v138 = vld [vmem:[%s1 + $0x2f8] sm:$0xff]
  %v139 = vld [vmem:[%s1 + $0x300] sm:$0xff]
  %v140 = vld [vmem:[%s1 + $0x308] sm:$0xff]
  %v141 = vld [vmem:[%s1 + $0x310] sm:$0xff]
  %v142 = vld [vmem:[%s1 + $0x318] sm:$0xff]
  %v143 = vld [vmem:[%s1 + $0x320] sm:$0xff]
  %v144 = vld [vmem:[%s1 + $0x328] sm:$0xff]
  %v145 = vld [vmem:[%s1 + $0x330] sm:$0xff]
  %v146 = vld [vmem:[%s1 + $0x338] sm:$0xff]
  %v147 = vld [vmem:[%s1 + $0x340] sm:$0xff]
  %v148 = vld [vmem:[%s1 + $0x348] sm:$0xff]
  %v149 = vld [vmem:[%s1 + $0x350] sm:$0xff]
  %v150 = vld [vmem:[%s1 + $0x358] sm:$0xff]
  %v151 = vld [vmem:[%s1 + $0x360] sm:$0xff]
  %v152 = vld [vmem:[%s1 + $0x368] sm:$0xff]
  %v153 = vld [vmem:[%s1 + $0x370] sm:$0xff]
  %v154 = vld [vmem:[%s1 + $0x378] sm:$0xff]
  %v155 = vld [vmem:[%s1 + $0x380] sm:$0xff]
  %v156 = vld [vmem:[%s1 + $0x388] sm:$0xff]
  %v157 = vld [vmem:[%s1 + $0x390] sm:$0xff]
  %v158 = vld [vmem:[%s1 + $0x398] sm:$0xff]
  %v159 = vld [vmem:[%s1 + $0x3a0] sm:$0xff]
  %v160 = vld [vmem:[%s1 + $0x3a8] sm:$0xff]
  %v161 = vld [vmem:[%s1 + $0x3b0] sm:$0xff]
  %v162 = vld [vmem:[%s1 + $0x3b8] sm:$0xff]
  %v163 = vld [vmem:[%s1 + $0x3c0] sm:$0xff]
  %v164 = vld [vmem:[%s1 + $0x3c8] sm:$0xff]
  %v165 = vld [vmem:[%s1 + $0x3d0] sm:$0xff]
  %v166 = vld [vmem:[%s1 + $0x3d8] sm:$0xff]
  %v167 = vld [vmem:[%s1 + $0x3e0] sm:$0xff]
  %v168 = vld [vmem:[%s1 + $0x3e8] sm:$0xff]
  %v169 = vld [vmem:[%s1 + $0x3f0] sm:$0xff]
  %v170 = vld [vmem:[%s1 + $0x3f8] sm:$0xff]
  %v171 = vld [vmem:[%s1 + $0x400] sm:$0xff]
  %v172 = vld [vmem:[%s1 + $0x408] sm:$0xff]
  %v173 = vld [vmem:[%s1 + $0x410] sm:$0xff]
  %v174 = vld [vmem:[%s1 + $0x418] sm:$0xff]
  %v175 = vld [vmem:[%s1 + $0x420] sm:$0xff]
  %v176 = vld [vmem:[%s1 + $0x428] sm:$0xff]
  %v177 = vld [vmem:[%s1 + $0x430] sm:$0xff]
  %v178 = vld [vmem:[%s1 + $0x438] sm:$0xff]
  %v179 = vld [vmem:[%s1 + $0x440] sm:$0xff]
  %v180 = vld [vmem:[%s1 + $0x448] sm:$0xff]
  %v181 = vld [vmem:[%s1 + $0x450] sm:$0xff]
  %v182 = vld [vmem:[%s1 + $0x458] sm:$0xff]
  %v183 = vld [vmem:[%s1 + $0x460] sm:$0xff]
  %v184 = vld [vmem:[%s1 + $0x468] sm:$0xff]
  %v185 = vld [vmem:[%s1 + $0x470] sm:$0xff]
  %v186 = vld [vmem:[%s1 + $0x478] sm:$0xff]
  %v187 = vld [vmem:[%s1 + $0x480] sm:$0xff]
  %v188 = vld [vmem:[%s1 + $0x488] sm:$0xff]
  %v189 = vld [vmem:[%s1 + $0x490] sm:$0xff]
  %v190 = vld [vmem:[%s1 + $0x498] sm:$0xff]
  %v191 = vld [vmem:[%s1 + $0x4a0] sm:$0xff]
  %v192 = vld [vmem:[%s1 + $0x4a8] sm:$0xff]
  %v193 = vld [vmem:[%s1 + $0x4b0] sm:$0xff]
  %v194 = vld [vmem:[%s1 + $0x4b8] sm:$0xff]
  %v195 = vld [vmem:[%s1 + $0x4c0] sm:$0xff]
  %v196 = vld [vmem:[%s1 + $0x4c8] sm:$0xff]
  %v197 = vld [vmem:[%s1 + $0x4d0] sm:$0xff]
  %v198 = vld [vmem:[%s1 + $0x4d8] sm:$0xff]
  %v199 = vld [vmem:[%s1 + $0x4e0] sm:$0xff]
  %v200 = vld [vmem:[%s1 + $0x4e8] sm:$0xff]
  %v201 = vld [vmem:[%s1 + $0x4f0] sm:$0xff]
  %v202 = vld [vmem:[%s1 + $0x4f8] sm:$0xff]
  %v203 = vld [vmem:[%s1 + $0x500] sm:$0xff]
  %v204 = vld [vmem:[%s1 + $0x508] sm:$0xff]
  %v205 = vld [vmem:[%s1 + $0x510] sm:$0xff]
  %v206 = vld [vmem:[%s1 + $0x518] sm:$0xff]
  %v207 = vld [vmem:[%s1 + $0x520] sm:$0xff]
  %v208 = vld [vmem:[%s1 + $0x528] sm:$0xff]
  %v209 = vld [vmem:[%s1 + $0x530] sm:$0xff]
  %v210 = vld [vmem:[%s1 + $0x538] sm:$0xff]
  %v211 = vld [vmem:[%s1 + $0x540] sm:$0xff]
  %v212 = vld [vmem:[%s1 + $0x548] sm:$0xff]
  %v213 = vld [vmem:[%s1 + $0x550] sm:$0xff]
  %v214 = vld [vmem:[%s1 + $0x558] sm:$0xff]
  %v215 = vld [vmem:[%s1 + $0x560] sm:$0xff]
  %v216 = vld [vmem:[%s1 + $0x568] sm:$0xff]
  %v217 = vld [vmem:[%s1 + $0x570] sm:$0xff]
  %v218 = vld [vmem:[%s1 + $0x578] sm:$0xff]
  %v219 = vld [vmem:[%s1 + $0x580] sm:$0xff]
  %v220 = vld [vmem:[%s1 + $0x588] sm:$0xff]
  %v221 = vld [vmem:[%s1 + $0x590] sm:$0xff]
  %v222 = vld [vmem:[%s1 + $0x598] sm:$0xff]
  %v223 = vld [vmem:[%s1 + $0x5a0] sm:$0xff]
  %v224 = vld [vmem:[%s1 + $0x5a8] sm:$0xff]
  %v225 = vld [vmem:[%s1 + $0x5b0] sm:$0xff]
  %v226 = vld [vmem:[%s1 + $0x5b8] sm:$0xff]
  %v227 = vld [vmem:[%s1 + $0x5c0] sm:$0xff]
  %v228 = vld [vmem:[%s1 + $0x5c8] sm:$0xff]
  %v229 = vld [vmem:[%s1 + $0x5d0] sm:$0xff]
  %v230 = vld [vmem:[%s1 + $0x5d8] sm:$0xff]
  %v231 = vld [vmem:[%s1 + $0x5e0] sm:$0xff]
  %v232 = vld [vmem:[%s1 + $0x5e8] sm:$0xff]
  %v233 = vld [vmem:[%s1 + $0x5f0] sm:$0xff]
  %v234 = vld [vmem:[%s1 + $0x5f8] sm:$0xff]
  %v235 = vld [vmem:[%s1 + $0x600] sm:$0xff]
  %v236 = vld [vmem:[%s1 + $0x608] sm:$0xff]
  %v237 = vld [vmem:[%s1 + $0x610] sm:$0xff]
  %v238 = vld [vmem:[%s1 + $0x618] sm:$0xff]
  %v239 = vld [vmem:[%s1 + $0x620] sm:$0xff]
  %v240 = vld [vmem:[%s1 + $0x628] sm:$0xff]
  %v241 = vld [vmem:[%s1 + $0x630] sm:$0xff]
  %v242 = vld [vmem:[%s1 + $0x638] sm:$0xff]
  %v243 = vld [vmem:[%s1 + $0x640] sm:$0xff]
  %v244 = vld [vmem:[%s1 + $0x648] sm:$0xff]
  %v245 = vld [vmem:[%s1 + $0x650] sm:$0xff]
  %v246 = vld [vmem:[%s1 + $0x658] sm:$0xff]
  %v247 = vld [vmem:[%s1 + $0x660] sm:$0xff]
  %v248 = vld [vmem:[%s1 + $0x668] sm:$0xff]
  %v249 = vld [vmem:[%s1 + $0x670] sm:$0xff]
  %v250 = vld [vmem:[%s1 + $0x678] sm:$0xff]
  %v251 = vld [vmem:[%s1 + $0x680] sm:$0xff]
  %v252 = vld [vmem:[%s1 + $0x688] sm:$0xff]
  %v253 = vld [vmem:[%s1 + $0x690] sm:$0xff]
  %v254 = vld [vmem:[%s1 + $0x698] sm:$0xff]
  %v255 = vld [vmem:[%s1 + $0x6a0] sm:$0xff]
  %v256 = vld [vmem:[%s1 + $0x6a8] sm:$0xff]
  %v257 = vld [vmem:[%s1 + $0x6b0] sm:$0xff]
  %v258 = vld [vmem:[%s1 + $0x6b8] sm:$0xff]
  %v259 = vld [vmem:[%s1 + $0x6c0] sm:$0xff]
  %v260 = vld [vmem:[%s1 + $0x6c8] sm:$0xff]
  %v261 = vld [vmem:[%s1 + $0x6d0] sm:$0xff]
  %v262 = vld [vmem:[%s1 + $0x6d8] sm:$0xff]
  %v263 = vld [vmem:[%s1 + $0x6e0] sm:$0xff]
  %v264 = vld [vmem:[%s1 + $0x6e8] sm:$0xff]
  %v265 = vld [vmem:[%s1 + $0x6f0] sm:$0xff]
  %v266 = vld [vmem:[%s1 + $0x6f8] sm:$0xff]
  %v267 = vld [vmem:[%s1 + $0x700] sm:$0xff]
  %v268 = vld [vmem:[%s1 + $0x708] sm:$0xff]
  %v269 = vld [vmem:[%s1 + $0x710] sm:$0xff]
  %v270 = vld [vmem:[%s1 + $0x718] sm:$0xff]
  %v271 = vld [vmem:[%s1 + $0x720] sm:$0xff]
  %v272 = vld [vmem:[%s1 + $0x728] sm:$0xff]
  %v273 = vld [vmem:[%s1 + $0x730] sm:$0xff]
  %v274 = vld [vmem:[%s1 + $0x738] sm:$0xff]
  %v275 = vld [vmem:[%s1 + $0x740] sm:$0xff]
  %v276 = vld [vmem:[%s1 + $0x748] sm:$0xff]
  %v277 = vld [vmem:[%s1 + $0x750] sm:$0xff]
  %v278 = vld [vmem:[%s1 + $0x758] sm:$0xff]
  %v279 = vld [vmem:[%s1 + $0x760] sm:$0xff]
  %v280 = vld [vmem:[%s1 + $0x768] sm:$0xff]
  %v281 = vld [vmem:[%s1 + $0x770] sm:$0xff]
  %v282 = vld [vmem:[%s1 + $0x778] sm:$0xff]
  %v283 = vld [vmem:[%s1 + $0x780] sm:$0xff]
  %v284 = vld [vmem:[%s1 + $0x788] sm:$0xff]
  %v285 = vld [vmem:[%s1 + $0x790] sm:$0xff]
  %v286 = vld [vmem:[%s1 + $0x798] sm:$0xff]
  %v287 = vld [vmem:[%s1 + $0x7a0] sm:$0xff]
  %v288 = vld [vmem:[%s1 + $0x7a8] sm:$0xff]
  %v289 = vld [vmem:[%s1 + $0x7b0] sm:$0xff]
  %v290 = vld [vmem:[%s1 + $0x7b8] sm:$0xff]
  %v291 = vld [vmem:[%s1 + $0x7c0] sm:$0xff]
  %v292 = vld [vmem:[%s1 + $0x7c8] sm:$0xff]
  %v293 = vld [vmem:[%s1 + $0x7d0] sm:$0xff]
  %v294 = vld [vmem:[%s1 + $0x7d8] sm:$0xff]
  %v295 = vld [vmem:[%s1 + $0x7e0] sm:$0xff]
  %v296 = vld [vmem:[%s1 + $0x7e8] sm:$0xff]
  %v297 = vld [vmem:[%s1 + $0x7f0] sm:$0xff]
  %v298 = vld [vmem:[%s1 + $0x7f8] sm:$0xff]
  %v299 = vld [vmem:[%s1 + $0x800] sm:$0xff]
  %v300 = vld [vmem:[%s1 + $0x808] sm:$0xff]
  %v301 = vld [vmem:[%s1 + $0x810] sm:$0xff]
  %v302 = vld [vmem:[%s1 + $0x818] sm:$0xff]
  %v303 = vld [vmem:[%s1 + $0x820] sm:$0xff]
  %v304 = vld [vmem:[%s1 + $0x828] sm:$0xff]
  %v305 = vld [vmem:[%s1 + $0x830] sm:$0xff]
  %v306 = vld [vmem:[%s1 + $0x838] sm:$0xff]
  %v307 = vld [vmem:[%s1 + $0x840] sm:$0xff]
  %v308 = vld [vmem:[%s1 + $0x848] sm:$0xff]
  %v309 = vld [vmem:[%s1 + $0x850] sm:$0xff]
  %v310 = vld [vmem:[%s1 + $0x858] sm:$0xff]
  %v311 = vld [vmem:[%s1 + $0x860] sm:$0xff]
  %v312 = vld [vmem:[%s1 + $0x868] sm:$0xff]
  %v313 = vld [vmem:[%s1 + $0x870] sm:$0xff]
  %v314 = vld [vmem:[%s1 + $0x878] sm:$0xff]
  %v315 = vld [vmem:[%s1 + $0x880] sm:$0xff]
  %v316 = vld [vmem:[%s1 + $0x888] sm:$0xff]
  %v317 = vld [vmem:[%s1 + $0x890] sm:$0xff]
  %v318 = vld [vmem:[%s1 + $0x898] sm:$0xff]
  %v319 = vld [vmem:[%s1 + $0x8a0] sm:$0xff]
  %v320 = vld [vmem:[%s1 + $0x8a8] sm:$0xff]
  %v321 = vld [vmem:[%s1 + $0x8b0] sm:$0xff]
  %v322 = vld [vmem:[%s1 + $0x8b8] sm:$0xff]
  %v323 = vld [vmem:[%s1 + $0x8c0] sm:$0xff]
  %v324 = vld [vmem:[%s1 + $0x8c8] sm:$0xff]
  %v325 = vld [vmem:[%s1 + $0x8d0] sm:$0xff]
  %v326 = vld [vmem:[%s1 + $0x8d8] sm:$0xff]
  %v327 = vld [vmem:[%s1 + $0x8e0] sm:$0xff]
  %v328 = vld [vmem:[%s1 + $0x8e8] sm:$0xff]
  %v329 = vld [vmem:[%s1 + $0x8f0] sm:$0xff]
  %v330 = vld [vmem:[%s1 + $0x8f8] sm:$0xff]
  %v331 = vld [vmem:[%s2] sm:$0xff]
  %v332 = vld [vmem:[%s2 + $0x8] sm:$0xf]
  %v335 = vlaneseq
  %v336 = vshrl.u32 %v335, 7
  %v337 = vsub.s32 0, %v336
  %v338 = vrot.slane %v331, %v337
  %v339 = vlaneseq
  %v340 = vshrl.u32 %v339, 7
  %v341 = vsub.s32 1, %v340
  %v342 = vrot.slane %v331, %v341
  %v343 = vlaneseq
  %v344 = vshrl.u32 %v343, 7
  %v345 = vsub.s32 2, %v344
  %v346 = vrot.slane %v331, %v345
  %v347 = vlaneseq
  %v348 = vshrl.u32 %v347, 7
  %v349 = vsub.s32 3, %v348
  %v350 = vrot.slane %v331, %v349
  %v351 = vlaneseq
  %v352 = vshrl.u32 %v351, 7
  %v353 = vsub.s32 4, %v352
  %v354 = vrot.slane %v331, %v353
  %v355 = vlaneseq
  %v356 = vshrl.u32 %v355, 7
  %v357 = vsub.s32 5, %v356
  %v358 = vrot.slane %v331, %v357
  %v359 = vlaneseq
  %v360 = vshrl.u32 %v359, 7
  %v361 = vsub.s32 6, %v360
  %v362 = vrot.slane %v331, %v361
  %v363 = vlaneseq
  %v364 = vshrl.u32 %v363, 7
  %v365 = vsub.s32 7, %v364
  %v366 = vrot.slane %v331, %v365
  %v367 = vlaneseq
  %v368 = vshrl.u32 %v367, 7
  %v369 = vsub.s32 0, %v368
  %v370 = vrot.slane %v332, %v369
  %v371 = vlaneseq
  %v372 = vshrl.u32 %v371, 7
  %v373 = vsub.s32 1, %v372
  %v374 = vrot.slane %v332, %v373
  %v375 = vlaneseq
  %v376 = vshrl.u32 %v375, 7
  %v377 = vsub.s32 2, %v376
  %v378 = vrot.slane %v332, %v377
  %v379 = vlaneseq
  %v380 = vshrl.u32 %v379, 7
  %v381 = vsub.s32 3, %v380
  %v382 = vrot.slane %v332, %v381
  %v399 = vunpack.c.l.b16 %v33
  %v400 = vunpack.c.h.b16 %v33
  %v401 = vunpack.c.l.b16 %v34
  %v402 = vunpack.c.l.b16 %v35
  %v403 = vunpack.c.h.b16 %v35
  %v404 = vunpack.c.l.b16 %v36
  %v405 = vpack.c.b16 %v402, %v399
  %v406 = vpack.c.b16 %v403, %v400
  %v407 = vpack.c.b16 %v404, %v401
  %v699 = vunpack.c.l.b16 %v43
  %v700 = vunpack.c.h.b16 %v43
  %v701 = vunpack.c.l.b16 %v44
  %v702 = vunpack.c.h.b16 %v44
  %v703 = vunpack.c.l.b16 %v45
  %v704 = vunpack.c.h.b16 %v45
  %v705 = vunpack.c.l.b16 %v46
  %v706 = vunpack.c.h.b16 %v46
  %v707 = vunpack.c.l.b16 %v47
  %v708 = vunpack.c.h.b16 %v47
  %v709 = vunpack.c.l.b16 %v48
  %v710 = vunpack.c.h.b16 %v48
  %v711 = vunpack.c.l.b16 %v49
  %v712 = vunpack.c.h.b16 %v49
  %v713 = vunpack.c.l.b16 %v50
  %v714 = vunpack.c.h.b16 %v50
  %v715 = vunpack.c.l.b16 %v51
  %v716 = vunpack.c.h.b16 %v51
  %v717 = vunpack.c.l.b16 %v52
  %v718 = vunpack.c.h.b16 %v52
  %v719 = vunpack.c.l.b16 %v53
  %v720 = vunpack.c.h.b16 %v53
  %v721 = vunpack.c.l.b16 %v54
  %v722 = vunpack.c.h.b16 %v54
  %v723 = vunpack.c.l.b16 %v55
  %v724 = vunpack.c.h.b16 %v55
  %v725 = vunpack.c.l.b16 %v56
  %v726 = vunpack.c.h.b16 %v56
  %v727 = vunpack.c.l.b16 %v57
  %v728 = vunpack.c.h.b16 %v57
  %v729 = vunpack.c.l.b16 %v58
  %v730 = vunpack.c.h.b16 %v58
  %v731 = vunpack.c.l.b16 %v59
  %v732 = vunpack.c.h.b16 %v59
  %v733 = vunpack.c.l.b16 %v60
  %v734 = vunpack.c.h.b16 %v60
  %v735 = vunpack.c.l.b16 %v61
  %v736 = vunpack.c.h.b16 %v61
  %v737 = vunpack.c.l.b16 %v62
  %v738 = vunpack.c.h.b16 %v62
  %v739 = vunpack.c.l.b16 %v63
  %v740 = vunpack.c.h.b16 %v63
  %v741 = vunpack.c.l.b16 %v64
  %v742 = vunpack.c.h.b16 %v64
  %v743 = vunpack.c.l.b16 %v65
  %v744 = vunpack.c.h.b16 %v65
  %v745 = vunpack.c.l.b16 %v66
  %v746 = vunpack.c.h.b16 %v66
  %v747 = vunpack.c.l.b16 %v67
  %v748 = vunpack.c.h.b16 %v67
  %v749 = vunpack.c.l.b16 %v68
  %v750 = vunpack.c.h.b16 %v68
  %v751 = vunpack.c.l.b16 %v69
  %v752 = vunpack.c.h.b16 %v69
  %v753 = vunpack.c.l.b16 %v70
  %v754 = vunpack.c.h.b16 %v70
  %v755 = vunpack.c.l.b16 %v71
  %v756 = vunpack.c.h.b16 %v71
  %v757 = vunpack.c.l.b16 %v72
  %v758 = vunpack.c.h.b16 %v72
  %v759 = vunpack.c.l.b16 %v73
  %v760 = vunpack.c.h.b16 %v73
  %v761 = vunpack.c.l.b16 %v74
  %v762 = vunpack.c.h.b16 %v74
  %v763 = vunpack.c.l.b16 %v75
  %v764 = vunpack.c.h.b16 %v75
  %v765 = vunpack.c.l.b16 %v76
  %v766 = vunpack.c.h.b16 %v76
  %v767 = vunpack.c.l.b16 %v77
  %v768 = vunpack.c.h.b16 %v77
  %v769 = vunpack.c.l.b16 %v78
  %v770 = vunpack.c.h.b16 %v78
  %v771 = vunpack.c.l.b16 %v79
  %v772 = vunpack.c.h.b16 %v79
  %v773 = vunpack.c.l.b16 %v80
  %v774 = vunpack.c.h.b16 %v80
  %v775 = vunpack.c.l.b16 %v81
  %v776 = vunpack.c.h.b16 %v81
  %v777 = vunpack.c.l.b16 %v82
  %v778 = vunpack.c.h.b16 %v82
  %v779 = vunpack.c.l.b16 %v83
  %v780 = vunpack.c.h.b16 %v83
  %v781 = vunpack.c.l.b16 %v84
  %v782 = vunpack.c.h.b16 %v84
  %v783 = vunpack.c.l.b16 %v85
  %v784 = vunpack.c.h.b16 %v85
  %v785 = vunpack.c.l.b16 %v86
  %v786 = vunpack.c.h.b16 %v86
  %v787 = vunpack.c.l.b16 %v87
  %v788 = vunpack.c.h.b16 %v87
  %v789 = vunpack.c.l.b16 %v88
  %v790 = vunpack.c.h.b16 %v88
  %v791 = vunpack.c.l.b16 %v89
  %v792 = vunpack.c.h.b16 %v89
  %v793 = vunpack.c.l.b16 %v90
  %v794 = vunpack.c.h.b16 %v90
  %v795 = vunpack.c.l.b16 %v91
  %v796 = vunpack.c.h.b16 %v91
  %v797 = vunpack.c.l.b16 %v92
  %v798 = vunpack.c.h.b16 %v92
  %v799 = vunpack.c.l.b16 %v93
  %v800 = vunpack.c.h.b16 %v93
  %v801 = vunpack.c.l.b16 %v94
  %v802 = vunpack.c.h.b16 %v94
  %v803 = vunpack.c.l.b16 %v95
  %v804 = vunpack.c.h.b16 %v95
  %v805 = vunpack.c.l.b16 %v96
  %v806 = vunpack.c.h.b16 %v96
  %v807 = vunpack.c.l.b16 %v97
  %v808 = vunpack.c.h.b16 %v97
  %v809 = vunpack.c.l.b16 %v98
  %v810 = vunpack.c.h.b16 %v98
  %v811 = vunpack.c.l.b16 %v99
  %v812 = vunpack.c.h.b16 %v99
  %v813 = vunpack.c.l.b16 %v100
  %v814 = vunpack.c.h.b16 %v100
  %v815 = vunpack.c.l.b16 %v101
  %v816 = vunpack.c.h.b16 %v101
  %v817 = vunpack.c.l.b16 %v102
  %v818 = vunpack.c.h.b16 %v102
  %v819 = vunpack.c.l.b16 %v103
  %v820 = vunpack.c.h.b16 %v103
  %v821 = vunpack.c.l.b16 %v104
  %v822 = vunpack.c.h.b16 %v104
  %v823 = vunpack.c.l.b16 %v105
  %v824 = vunpack.c.h.b16 %v105
  %v825 = vunpack.c.l.b16 %v106
  %v826 = vunpack.c.h.b16 %v106
  %v827 = vunpack.c.l.b16 %v107
  %v828 = vunpack.c.h.b16 %v107
  %v829 = vunpack.c.l.b16 %v108
  %v830 = vunpack.c.h.b16 %v108
  %v831 = vunpack.c.l.b16 %v109
  %v832 = vunpack.c.h.b16 %v109
  %v833 = vunpack.c.l.b16 %v110
  %v834 = vunpack.c.h.b16 %v110
  %v835 = vunpack.c.l.b16 %v111
  %v836 = vunpack.c.h.b16 %v111
  %v837 = vunpack.c.l.b16 %v112
  %v838 = vunpack.c.h.b16 %v112
  %v839 = vunpack.c.l.b16 %v113
  %v840 = vunpack.c.h.b16 %v113
  %v841 = vunpack.c.l.b16 %v114
  %v842 = vunpack.c.h.b16 %v114
  %v843 = vunpack.c.l.b16 %v115
  %v844 = vunpack.c.h.b16 %v115
  %v845 = vunpack.c.l.b16 %v116
  %v846 = vunpack.c.h.b16 %v116
  %v847 = vunpack.c.l.b16 %v117
  %v848 = vunpack.c.h.b16 %v117
  %v849 = vunpack.c.l.b16 %v118
  %v850 = vunpack.c.h.b16 %v118
  %v851 = vunpack.c.l.b16 %v119
  %v852 = vunpack.c.h.b16 %v119
  %v853 = vunpack.c.l.b16 %v120
  %v854 = vunpack.c.h.b16 %v120
  %v855 = vunpack.c.l.b16 %v121
  %v856 = vunpack.c.h.b16 %v121
  %v857 = vunpack.c.l.b16 %v122
  %v858 = vunpack.c.h.b16 %v122
  %v859 = vunpack.c.l.b16 %v123
  %v860 = vunpack.c.h.b16 %v123
  %v861 = vunpack.c.l.b16 %v124
  %v862 = vunpack.c.h.b16 %v124
  %v863 = vunpack.c.l.b16 %v125
  %v864 = vunpack.c.h.b16 %v125
  %v865 = vunpack.c.l.b16 %v126
  %v866 = vunpack.c.h.b16 %v126
  %v867 = vunpack.c.l.b16 %v127
  %v868 = vunpack.c.h.b16 %v127
  %v869 = vunpack.c.l.b16 %v128
  %v870 = vunpack.c.h.b16 %v128
  %v871 = vunpack.c.l.b16 %v129
  %v872 = vunpack.c.h.b16 %v129
  %v873 = vunpack.c.l.b16 %v130
  %v874 = vunpack.c.h.b16 %v130
  %v875 = vunpack.c.l.b16 %v131
  %v876 = vunpack.c.h.b16 %v131
  %v877 = vunpack.c.l.b16 %v132
  %v878 = vunpack.c.h.b16 %v132
  %v879 = vunpack.c.l.b16 %v133
  %v880 = vunpack.c.h.b16 %v133
  %v881 = vunpack.c.l.b16 %v134
  %v882 = vunpack.c.h.b16 %v134
  %v883 = vunpack.c.l.b16 %v135
  %v884 = vunpack.c.h.b16 %v135
  %v885 = vunpack.c.l.b16 %v136
  %v886 = vunpack.c.h.b16 %v136
  %v887 = vunpack.c.l.b16 %v137
  %v888 = vunpack.c.h.b16 %v137
  %v889 = vunpack.c.l.b16 %v138
  %v890 = vunpack.c.h.b16 %v138
  %v891 = vunpack.c.l.b16 %v139
  %v892 = vunpack.c.h.b16 %v139
  %v893 = vunpack.c.l.b16 %v140
  %v894 = vunpack.c.h.b16 %v140
  %v895 = vunpack.c.l.b16 %v141
  %v896 = vunpack.c.h.b16 %v141
  %v897 = vunpack.c.l.b16 %v142
  %v898 = vunpack.c.h.b16 %v142
  %v899 = vunpack.c.l.b16 %v143
  %v900 = vunpack.c.h.b16 %v143
  %v901 = vunpack.c.l.b16 %v144
  %v902 = vunpack.c.h.b16 %v144
  %v903 = vunpack.c.l.b16 %v145
  %v904 = vunpack.c.h.b16 %v145
  %v905 = vunpack.c.l.b16 %v146
  %v906 = vunpack.c.h.b16 %v146
  %v907 = vunpack.c.l.b16 %v147
  %v908 = vunpack.c.h.b16 %v147
  %v909 = vunpack.c.l.b16 %v148
  %v910 = vunpack.c.h.b16 %v148
  %v911 = vunpack.c.l.b16 %v149
  %v912 = vunpack.c.h.b16 %v149
  %v913 = vunpack.c.l.b16 %v150
  %v914 = vunpack.c.h.b16 %v150
  %v915 = vunpack.c.l.b16 %v151
  %v916 = vunpack.c.h.b16 %v151
  %v917 = vunpack.c.l.b16 %v152
  %v918 = vunpack.c.h.b16 %v152
  %v919 = vunpack.c.l.b16 %v153
  %v920 = vunpack.c.h.b16 %v153
  %v921 = vunpack.c.l.b16 %v154
  %v922 = vunpack.c.h.b16 %v154
  %v923 = vunpack.c.l.b16 %v155
  %v924 = vunpack.c.h.b16 %v155
  %v925 = vunpack.c.l.b16 %v156
  %v926 = vunpack.c.h.b16 %v156
  %v927 = vunpack.c.l.b16 %v157
  %v928 = vunpack.c.h.b16 %v157
  %v929 = vunpack.c.l.b16 %v158
  %v930 = vunpack.c.h.b16 %v158
  %v931 = vunpack.c.l.b16 %v159
  %v932 = vunpack.c.h.b16 %v159
  %v933 = vunpack.c.l.b16 %v160
  %v934 = vunpack.c.h.b16 %v160
  %v935 = vunpack.c.l.b16 %v161
  %v936 = vunpack.c.h.b16 %v161
  %v937 = vunpack.c.l.b16 %v162
  %v938 = vunpack.c.h.b16 %v162
  %v939 = vunpack.c.l.b16 %v163
  %v940 = vunpack.c.h.b16 %v163
  %v941 = vunpack.c.l.b16 %v164
  %v942 = vunpack.c.h.b16 %v164
  %v943 = vunpack.c.l.b16 %v165
  %v944 = vunpack.c.h.b16 %v165
  %v945 = vunpack.c.l.b16 %v166
  %v946 = vunpack.c.h.b16 %v166
  %v947 = vunpack.c.l.b16 %v167
  %v948 = vunpack.c.h.b16 %v167
  %v949 = vunpack.c.l.b16 %v168
  %v950 = vunpack.c.h.b16 %v168
  %v951 = vunpack.c.l.b16 %v169
  %v952 = vunpack.c.h.b16 %v169
  %v953 = vunpack.c.l.b16 %v170
  %v954 = vunpack.c.h.b16 %v170
  %v955 = vunpack.c.l.b16 %v171
  %v956 = vunpack.c.h.b16 %v171
  %v957 = vunpack.c.l.b16 %v172
  %v958 = vunpack.c.h.b16 %v172
  %v959 = vunpack.c.l.b16 %v173
  %v960 = vunpack.c.h.b16 %v173
  %v961 = vunpack.c.l.b16 %v174
  %v962 = vunpack.c.h.b16 %v174
  %v963 = vunpack.c.l.b16 %v175
  %v964 = vunpack.c.h.b16 %v175
  %v965 = vunpack.c.l.b16 %v176
  %v966 = vunpack.c.h.b16 %v176
  %v967 = vunpack.c.l.b16 %v177
  %v968 = vunpack.c.h.b16 %v177
  %v969 = vunpack.c.l.b16 %v178
  %v970 = vunpack.c.h.b16 %v178
  %v971 = vunpack.c.l.b16 %v179
  %v972 = vunpack.c.h.b16 %v179
  %v973 = vunpack.c.l.b16 %v180
  %v974 = vunpack.c.h.b16 %v180
  %v975 = vunpack.c.l.b16 %v181
  %v976 = vunpack.c.h.b16 %v181
  %v977 = vunpack.c.l.b16 %v182
  %v978 = vunpack.c.h.b16 %v182
  %v979 = vunpack.c.l.b16 %v183
  %v980 = vunpack.c.h.b16 %v183
  %v981 = vunpack.c.l.b16 %v184
  %v982 = vunpack.c.h.b16 %v184
  %v983 = vunpack.c.l.b16 %v185
  %v984 = vunpack.c.h.b16 %v185
  %v985 = vunpack.c.l.b16 %v186
  %v986 = vunpack.c.h.b16 %v186
  %v987 = vunpack.c.l.b16 %v187
  %v988 = vunpack.c.h.b16 %v187
  %v989 = vunpack.c.l.b16 %v188
  %v990 = vunpack.c.h.b16 %v188
  %v991 = vunpack.c.l.b16 %v189
  %v992 = vunpack.c.h.b16 %v189
  %v993 = vunpack.c.l.b16 %v190
  %v994 = vunpack.c.h.b16 %v190
  %v995 = vunpack.c.l.b16 %v191
  %v996 = vunpack.c.h.b16 %v191
  %v997 = vunpack.c.l.b16 %v192
  %v998 = vunpack.c.h.b16 %v192
  %v999 = vunpack.c.l.b16 %v193
  %v1000 = vunpack.c.h.b16 %v193
  %v1001 = vunpack.c.l.b16 %v194
  %v1002 = vunpack.c.h.b16 %v194
  %v1003 = vunpack.c.l.b16 %v195
  %v1004 = vunpack.c.h.b16 %v195
  %v1005 = vunpack.c.l.b16 %v196
  %v1006 = vunpack.c.h.b16 %v196
  %v1007 = vunpack.c.l.b16 %v197
  %v1008 = vunpack.c.h.b16 %v197
  %v1009 = vunpack.c.l.b16 %v198
  %v1010 = vunpack.c.h.b16 %v198
  %v1011 = vunpack.c.l.b16 %v199
  %v1012 = vunpack.c.h.b16 %v199
  %v1013 = vunpack.c.l.b16 %v200
  %v1014 = vunpack.c.h.b16 %v200
  %v1015 = vunpack.c.l.b16 %v201
  %v1016 = vunpack.c.h.b16 %v201
  %v1017 = vunpack.c.l.b16 %v202
  %v1018 = vunpack.c.h.b16 %v202
  %v1019 = vunpack.c.l.b16 %v203
  %v1020 = vunpack.c.h.b16 %v203
  %v1021 = vunpack.c.l.b16 %v204
  %v1022 = vunpack.c.h.b16 %v204
  %v1023 = vunpack.c.l.b16 %v205
  %v1024 = vunpack.c.h.b16 %v205
  %v1025 = vunpack.c.l.b16 %v206
  %v1026 = vunpack.c.h.b16 %v206
  %v1027 = vunpack.c.l.b16 %v207
  %v1028 = vunpack.c.h.b16 %v207
  %v1029 = vunpack.c.l.b16 %v208
  %v1030 = vunpack.c.h.b16 %v208
  %v1031 = vunpack.c.l.b16 %v209
  %v1032 = vunpack.c.h.b16 %v209
  %v1033 = vunpack.c.l.b16 %v210
  %v1034 = vunpack.c.h.b16 %v210
  %v1035 = vunpack.c.l.b16 %v211
  %v1036 = vunpack.c.h.b16 %v211
  %v1037 = vunpack.c.l.b16 %v212
  %v1038 = vunpack.c.h.b16 %v212
  %v1039 = vunpack.c.l.b16 %v213
  %v1040 = vunpack.c.h.b16 %v213
  %v1041 = vunpack.c.l.b16 %v214
  %v1042 = vunpack.c.h.b16 %v214
  %v1043 = vunpack.c.l.b16 %v215
  %v1044 = vunpack.c.h.b16 %v215
  %v1045 = vunpack.c.l.b16 %v216
  %v1046 = vunpack.c.h.b16 %v216
  %v1047 = vunpack.c.l.b16 %v217
  %v1048 = vunpack.c.h.b16 %v217
  %v1049 = vunpack.c.l.b16 %v218
  %v1050 = vunpack.c.h.b16 %v218
  %v1051 = vunpack.c.l.b16 %v219
  %v1052 = vunpack.c.h.b16 %v219
  %v1053 = vunpack.c.l.b16 %v220
  %v1054 = vunpack.c.h.b16 %v220
  %v1055 = vunpack.c.l.b16 %v221
  %v1056 = vunpack.c.h.b16 %v221
  %v1057 = vunpack.c.l.b16 %v222
  %v1058 = vunpack.c.h.b16 %v222
  %v1059 = vunpack.c.l.b16 %v223
  %v1060 = vunpack.c.h.b16 %v223
  %v1061 = vunpack.c.l.b16 %v224
  %v1062 = vunpack.c.h.b16 %v224
  %v1063 = vunpack.c.l.b16 %v225
  %v1064 = vunpack.c.h.b16 %v225
  %v1065 = vunpack.c.l.b16 %v226
  %v1066 = vunpack.c.h.b16 %v226
  %v1067 = vunpack.c.l.b16 %v227
  %v1068 = vunpack.c.h.b16 %v227
  %v1069 = vunpack.c.l.b16 %v228
  %v1070 = vunpack.c.h.b16 %v228
  %v1071 = vunpack.c.l.b16 %v229
  %v1072 = vunpack.c.h.b16 %v229
  %v1073 = vunpack.c.l.b16 %v230
  %v1074 = vunpack.c.h.b16 %v230
  %v1075 = vunpack.c.l.b16 %v231
  %v1076 = vunpack.c.h.b16 %v231
  %v1077 = vunpack.c.l.b16 %v232
  %v1078 = vunpack.c.h.b16 %v232
  %v1079 = vunpack.c.l.b16 %v233
  %v1080 = vunpack.c.h.b16 %v233
  %v1081 = vunpack.c.l.b16 %v234
  %v1082 = vunpack.c.h.b16 %v234
  %v1083 = vunpack.c.l.b16 %v235
  %v1084 = vunpack.c.h.b16 %v235
  %v1085 = vunpack.c.l.b16 %v236
  %v1086 = vunpack.c.h.b16 %v236
  %v1087 = vunpack.c.l.b16 %v237
  %v1088 = vunpack.c.h.b16 %v237
  %v1089 = vunpack.c.l.b16 %v238
  %v1090 = vunpack.c.h.b16 %v238
  %v1091 = vunpack.c.l.b16 %v239
  %v1092 = vunpack.c.h.b16 %v239
  %v1093 = vunpack.c.l.b16 %v240
  %v1094 = vunpack.c.h.b16 %v240
  %v1095 = vunpack.c.l.b16 %v241
  %v1096 = vunpack.c.h.b16 %v241
  %v1097 = vunpack.c.l.b16 %v242
  %v1098 = vunpack.c.h.b16 %v242
  %v1099 = vunpack.c.l.b16 %v243
  %v1100 = vunpack.c.h.b16 %v243
  %v1101 = vunpack.c.l.b16 %v244
  %v1102 = vunpack.c.h.b16 %v244
  %v1103 = vunpack.c.l.b16 %v245
  %v1104 = vunpack.c.h.b16 %v245
  %v1105 = vunpack.c.l.b16 %v246
  %v1106 = vunpack.c.h.b16 %v246
  %v1107 = vunpack.c.l.b16 %v247
  %v1108 = vunpack.c.h.b16 %v247
  %v1109 = vunpack.c.l.b16 %v248
  %v1110 = vunpack.c.h.b16 %v248
  %v1111 = vunpack.c.l.b16 %v249
  %v1112 = vunpack.c.h.b16 %v249
  %v1113 = vunpack.c.l.b16 %v250
  %v1114 = vunpack.c.h.b16 %v250
  %v1115 = vunpack.c.l.b16 %v251
  %v1116 = vunpack.c.h.b16 %v251
  %v1117 = vunpack.c.l.b16 %v252
  %v1118 = vunpack.c.h.b16 %v252
  %v1119 = vunpack.c.l.b16 %v253
  %v1120 = vunpack.c.h.b16 %v253
  %v1121 = vunpack.c.l.b16 %v254
  %v1122 = vunpack.c.h.b16 %v254
  %v1123 = vunpack.c.l.b16 %v255
  %v1124 = vunpack.c.h.b16 %v255
  %v1125 = vunpack.c.l.b16 %v256
  %v1126 = vunpack.c.h.b16 %v256
  %v1127 = vunpack.c.l.b16 %v257
  %v1128 = vunpack.c.h.b16 %v257
  %v1129 = vunpack.c.l.b16 %v258
  %v1130 = vunpack.c.h.b16 %v258
  %v1131 = vunpack.c.l.b16 %v259
  %v1132 = vunpack.c.h.b16 %v259
  %v1133 = vunpack.c.l.b16 %v260
  %v1134 = vunpack.c.h.b16 %v260
  %v1135 = vunpack.c.l.b16 %v261
  %v1136 = vunpack.c.h.b16 %v261
  %v1137 = vunpack.c.l.b16 %v262
  %v1138 = vunpack.c.h.b16 %v262
  %v1139 = vunpack.c.l.b16 %v263
  %v1140 = vunpack.c.h.b16 %v263
  %v1141 = vunpack.c.l.b16 %v264
  %v1142 = vunpack.c.h.b16 %v264
  %v1143 = vunpack.c.l.b16 %v265
  %v1144 = vunpack.c.h.b16 %v265
  %v1145 = vunpack.c.l.b16 %v266
  %v1146 = vunpack.c.h.b16 %v266
  %v1147 = vunpack.c.l.b16 %v267
  %v1148 = vunpack.c.h.b16 %v267
  %v1149 = vunpack.c.l.b16 %v268
  %v1150 = vunpack.c.h.b16 %v268
  %v1151 = vunpack.c.l.b16 %v269
  %v1152 = vunpack.c.h.b16 %v269
  %v1153 = vunpack.c.l.b16 %v270
  %v1154 = vunpack.c.h.b16 %v270
  %v1155 = vunpack.c.l.b16 %v271
  %v1156 = vunpack.c.h.b16 %v271
  %v1157 = vunpack.c.l.b16 %v272
  %v1158 = vunpack.c.h.b16 %v272
  %v1159 = vunpack.c.l.b16 %v273
  %v1160 = vunpack.c.h.b16 %v273
  %v1161 = vunpack.c.l.b16 %v274
  %v1162 = vunpack.c.h.b16 %v274
  %v1163 = vunpack.c.l.b16 %v275
  %v1164 = vunpack.c.h.b16 %v275
  %v1165 = vunpack.c.l.b16 %v276
  %v1166 = vunpack.c.h.b16 %v276
  %v1167 = vunpack.c.l.b16 %v277
  %v1168 = vunpack.c.h.b16 %v277
  %v1169 = vunpack.c.l.b16 %v278
  %v1170 = vunpack.c.h.b16 %v278
  %v1171 = vunpack.c.l.b16 %v279
  %v1172 = vunpack.c.h.b16 %v279
  %v1173 = vunpack.c.l.b16 %v280
  %v1174 = vunpack.c.h.b16 %v280
  %v1175 = vunpack.c.l.b16 %v281
  %v1176 = vunpack.c.h.b16 %v281
  %v1177 = vunpack.c.l.b16 %v282
  %v1178 = vunpack.c.h.b16 %v282
  %v1179 = vunpack.c.l.b16 %v283
  %v1180 = vunpack.c.h.b16 %v283
  %v1181 = vunpack.c.l.b16 %v284
  %v1182 = vunpack.c.h.b16 %v284
  %v1183 = vunpack.c.l.b16 %v285
  %v1184 = vunpack.c.h.b16 %v285
  %v1185 = vunpack.c.l.b16 %v286
  %v1186 = vunpack.c.h.b16 %v286
  %v1187 = vunpack.c.l.b16 %v287
  %v1188 = vunpack.c.h.b16 %v287
  %v1189 = vunpack.c.l.b16 %v288
  %v1190 = vunpack.c.h.b16 %v288
  %v1191 = vunpack.c.l.b16 %v289
  %v1192 = vunpack.c.h.b16 %v289
  %v1193 = vunpack.c.l.b16 %v290
  %v1194 = vunpack.c.h.b16 %v290
  %v1195 = vunpack.c.l.b16 %v291
  %v1196 = vunpack.c.h.b16 %v291
  %v1197 = vunpack.c.l.b16 %v292
  %v1198 = vunpack.c.h.b16 %v292
  %v1199 = vunpack.c.l.b16 %v293
  %v1200 = vunpack.c.h.b16 %v293
  %v1201 = vunpack.c.l.b16 %v294
  %v1202 = vunpack.c.h.b16 %v294
  %v1203 = vunpack.c.l.b16 %v295
  %v1204 = vunpack.c.h.b16 %v295
  %v1205 = vunpack.c.l.b16 %v296
  %v1206 = vunpack.c.h.b16 %v296
  %v1207 = vunpack.c.l.b16 %v297
  %v1208 = vunpack.c.h.b16 %v297
  %v1209 = vunpack.c.l.b16 %v298
  %v1210 = vunpack.c.h.b16 %v298
  %v1211 = vunpack.c.l.b16 %v299
  %v1212 = vunpack.c.h.b16 %v299
  %v1213 = vunpack.c.l.b16 %v300
  %v1214 = vunpack.c.h.b16 %v300
  %v1215 = vunpack.c.l.b16 %v301
  %v1216 = vunpack.c.h.b16 %v301
  %v1217 = vunpack.c.l.b16 %v302
  %v1218 = vunpack.c.h.b16 %v302
  %v1219 = vunpack.c.l.b16 %v303
  %v1220 = vunpack.c.h.b16 %v303
  %v1221 = vunpack.c.l.b16 %v304
  %v1222 = vunpack.c.h.b16 %v304
  %v1223 = vunpack.c.l.b16 %v305
  %v1224 = vunpack.c.h.b16 %v305
  %v1225 = vunpack.c.l.b16 %v306
  %v1226 = vunpack.c.h.b16 %v306
  %v1227 = vunpack.c.l.b16 %v307
  %v1228 = vunpack.c.h.b16 %v307
  %v1229 = vunpack.c.l.b16 %v308
  %v1230 = vunpack.c.h.b16 %v308
  %v1231 = vunpack.c.l.b16 %v309
  %v1232 = vunpack.c.h.b16 %v309
  %v1233 = vunpack.c.l.b16 %v310
  %v1234 = vunpack.c.h.b16 %v310
  %v1235 = vunpack.c.l.b16 %v311
  %v1236 = vunpack.c.h.b16 %v311
  %v1237 = vunpack.c.l.b16 %v312
  %v1238 = vunpack.c.h.b16 %v312
  %v1239 = vunpack.c.l.b16 %v313
  %v1240 = vunpack.c.h.b16 %v313
  %v1241 = vunpack.c.l.b16 %v314
  %v1242 = vunpack.c.h.b16 %v314
  %v1243 = vunpack.c.l.b16 %v315
  %v1244 = vunpack.c.h.b16 %v315
  %v1245 = vunpack.c.l.b16 %v316
  %v1246 = vunpack.c.h.b16 %v316
  %v1247 = vunpack.c.l.b16 %v317
  %v1248 = vunpack.c.h.b16 %v317
  %v1249 = vunpack.c.l.b16 %v318
  %v1250 = vunpack.c.h.b16 %v318
  %v1251 = vunpack.c.l.b16 %v319
  %v1252 = vunpack.c.h.b16 %v319
  %v1253 = vunpack.c.l.b16 %v320
  %v1254 = vunpack.c.h.b16 %v320
  %v1255 = vunpack.c.l.b16 %v321
  %v1256 = vunpack.c.h.b16 %v321
  %v1257 = vunpack.c.l.b16 %v322
  %v1258 = vunpack.c.h.b16 %v322
  %v1259 = vunpack.c.l.b16 %v323
  %v1260 = vunpack.c.h.b16 %v323
  %v1261 = vunpack.c.l.b16 %v324
  %v1262 = vunpack.c.h.b16 %v324
  %v1263 = vunpack.c.l.b16 %v325
  %v1264 = vunpack.c.h.b16 %v325
  %v1265 = vunpack.c.l.b16 %v326
  %v1266 = vunpack.c.h.b16 %v326
  %v1267 = vunpack.c.l.b16 %v327
  %v1268 = vunpack.c.h.b16 %v327
  %v1269 = vunpack.c.l.b16 %v328
  %v1270 = vunpack.c.h.b16 %v328
  %v1271 = vunpack.c.l.b16 %v329
  %v1272 = vunpack.c.h.b16 %v329
  %v1273 = vunpack.c.l.b16 %v330
  %v1274 = vunpack.c.h.b16 %v330
  %v1275 = vpack.c.b16 %v711, %v699
  %v1276 = vpack.c.b16 %v712, %v700
  %v1277 = vpack.c.b16 %v713, %v701
  %v1278 = vpack.c.b16 %v714, %v702
  %v1279 = vpack.c.b16 %v715, %v703
  %v1280 = vpack.c.b16 %v716, %v704
  %v1281 = vpack.c.b16 %v717, %v705
  %v1282 = vpack.c.b16 %v718, %v706
  %v1283 = vpack.c.b16 %v719, %v707
  %v1284 = vpack.c.b16 %v720, %v708
  %v1285 = vpack.c.b16 %v721, %v709
  %v1286 = vpack.c.b16 %v722, %v710
  %v1287 = vpack.c.b16 %v735, %v723
  %v1288 = vpack.c.b16 %v736, %v724
  %v1289 = vpack.c.b16 %v737, %v725
  %v1290 = vpack.c.b16 %v738, %v726
  %v1291 = vpack.c.b16 %v739, %v727
  %v1292 = vpack.c.b16 %v740, %v728
  %v1293 = vpack.c.b16 %v741, %v729
  %v1294 = vpack.c.b16 %v742, %v730
  %v1295 = vpack.c.b16 %v743, %v731
  %v1296 = vpack.c.b16 %v744, %v732
  %v1297 = vpack.c.b16 %v745, %v733
  %v1298 = vpack.c.b16 %v746, %v734
  %v1299 = vpack.c.b16 %v759, %v747
  %v1300 = vpack.c.b16 %v760, %v748
  %v1301 = vpack.c.b16 %v761, %v749
  %v1302 = vpack.c.b16 %v762, %v750
  %v1303 = vpack.c.b16 %v763, %v751
  %v1304 = vpack.c.b16 %v764, %v752
  %v1305 = vpack.c.b16 %v765, %v753
  %v1306 = vpack.c.b16 %v766, %v754
  %v1307 = vpack.c.b16 %v767, %v755
  %v1308 = vpack.c.b16 %v768, %v756
  %v1309 = vpack.c.b16 %v769, %v757
  %v1310 = vpack.c.b16 %v770, %v758
  %v1311 = vpack.c.b16 %v783, %v771
  %v1312 = vpack.c.b16 %v784, %v772
  %v1313 = vpack.c.b16 %v785, %v773
  %v1314 = vpack.c.b16 %v786, %v774
  %v1315 = vpack.c.b16 %v787, %v775
  %v1316 = vpack.c.b16 %v788, %v776
  %v1317 = vpack.c.b16 %v789, %v777
  %v1318 = vpack.c.b16 %v790, %v778
  %v1319 = vpack.c.b16 %v791, %v779
  %v1320 = vpack.c.b16 %v792, %v780
  %v1321 = vpack.c.b16 %v793, %v781
  %v1322 = vpack.c.b16 %v794, %v782
  %v1323 = vpack.c.b16 %v807, %v795
  %v1324 = vpack.c.b16 %v808, %v796
  %v1325 = vpack.c.b16 %v809, %v797
  %v1326 = vpack.c.b16 %v810, %v798
  %v1327 = vpack.c.b16 %v811, %v799
  %v1328 = vpack.c.b16 %v812, %v800
  %v1329 = vpack.c.b16 %v813, %v801
  %v1330 = vpack.c.b16 %v814, %v802
  %v1331 = vpack.c.b16 %v815, %v803
  %v1332 = vpack.c.b16 %v816, %v804
  %v1333 = vpack.c.b16 %v817, %v805
  %v1334 = vpack.c.b16 %v818, %v806
  %v1335 = vpack.c.b16 %v831, %v819
  %v1336 = vpack.c.b16 %v832, %v820
  %v1337 = vpack.c.b16 %v833, %v821
  %v1338 = vpack.c.b16 %v834, %v822
  %v1339 = vpack.c.b16 %v835, %v823
  %v1340 = vpack.c.b16 %v836, %v824
  %v1341 = vpack.c.b16 %v837, %v825
  %v1342 = vpack.c.b16 %v838, %v826
  %v1343 = vpack.c.b16 %v839, %v827
  %v1344 = vpack.c.b16 %v840, %v828
  %v1345 = vpack.c.b16 %v841, %v829
  %v1346 = vpack.c.b16 %v842, %v830
  %v1347 = vpack.c.b16 %v855, %v843
  %v1348 = vpack.c.b16 %v856, %v844
  %v1349 = vpack.c.b16 %v857, %v845
  %v1350 = vpack.c.b16 %v858, %v846
  %v1351 = vpack.c.b16 %v859, %v847
  %v1352 = vpack.c.b16 %v860, %v848
  %v1353 = vpack.c.b16 %v861, %v849
  %v1354 = vpack.c.b16 %v862, %v850
  %v1355 = vpack.c.b16 %v863, %v851
  %v1356 = vpack.c.b16 %v864, %v852
  %v1357 = vpack.c.b16 %v865, %v853
  %v1358 = vpack.c.b16 %v866, %v854
  %v1359 = vpack.c.b16 %v879, %v867
  %v1360 = vpack.c.b16 %v880, %v868
  %v1361 = vpack.c.b16 %v881, %v869
  %v1362 = vpack.c.b16 %v882, %v870
  %v1363 = vpack.c.b16 %v883, %v871
  %v1364 = vpack.c.b16 %v884, %v872
  %v1365 = vpack.c.b16 %v885, %v873
  %v1366 = vpack.c.b16 %v886, %v874
  %v1367 = vpack.c.b16 %v887, %v875
  %v1368 = vpack.c.b16 %v888, %v876
  %v1369 = vpack.c.b16 %v889, %v877
  %v1370 = vpack.c.b16 %v890, %v878
  %v1371 = vpack.c.b16 %v903, %v891
  %v1372 = vpack.c.b16 %v904, %v892
  %v1373 = vpack.c.b16 %v905, %v893
  %v1374 = vpack.c.b16 %v906, %v894
  %v1375 = vpack.c.b16 %v907, %v895
  %v1376 = vpack.c.b16 %v908, %v896
  %v1377 = vpack.c.b16 %v909, %v897
  %v1378 = vpack.c.b16 %v910, %v898
  %v1379 = vpack.c.b16 %v911, %v899
  %v1380 = vpack.c.b16 %v912, %v900
  %v1381 = vpack.c.b16 %v913, %v901
  %v1382 = vpack.c.b16 %v914, %v902
  %v1383 = vpack.c.b16 %v927, %v915
  %v1384 = vpack.c.b16 %v928, %v916
  %v1385 = vpack.c.b16 %v929, %v917
  %v1386 = vpack.c.b16 %v930, %v918
  %v1387 = vpack.c.b16 %v931, %v919
  %v1388 = vpack.c.b16 %v932, %v920
  %v1389 = vpack.c.b16 %v933, %v921
  %v1390 = vpack.c.b16 %v934, %v922
  %v1391 = vpack.c.b16 %v935, %v923
  %v1392 = vpack.c.b16 %v936, %v924
  %v1393 = vpack.c.b16 %v937, %v925
  %v1394 = vpack.c.b16 %v938, %v926
  %v1395 = vpack.c.b16 %v951, %v939
  %v1396 = vpack.c.b16 %v952, %v940
  %v1397 = vpack.c.b16 %v953, %v941
  %v1398 = vpack.c.b16 %v954, %v942
  %v1399 = vpack.c.b16 %v955, %v943
  %v1400 = vpack.c.b16 %v956, %v944
  %v1401 = vpack.c.b16 %v957, %v945
  %v1402 = vpack.c.b16 %v958, %v946
  %v1403 = vpack.c.b16 %v959, %v947
  %v1404 = vpack.c.b16 %v960, %v948
  %v1405 = vpack.c.b16 %v961, %v949
  %v1406 = vpack.c.b16 %v962, %v950
  %v1407 = vpack.c.b16 %v975, %v963
  %v1408 = vpack.c.b16 %v976, %v964
  %v1409 = vpack.c.b16 %v977, %v965
  %v1410 = vpack.c.b16 %v978, %v966
  %v1411 = vpack.c.b16 %v979, %v967
  %v1412 = vpack.c.b16 %v980, %v968
  %v1413 = vpack.c.b16 %v981, %v969
  %v1414 = vpack.c.b16 %v982, %v970
  %v1415 = vpack.c.b16 %v983, %v971
  %v1416 = vpack.c.b16 %v984, %v972
  %v1417 = vpack.c.b16 %v985, %v973
  %v1418 = vpack.c.b16 %v986, %v974
  %v1419 = vpack.c.b16 %v999, %v987
  %v1420 = vpack.c.b16 %v1000, %v988
  %v1421 = vpack.c.b16 %v1001, %v989
  %v1422 = vpack.c.b16 %v1002, %v990
  %v1423 = vpack.c.b16 %v1003, %v991
  %v1424 = vpack.c.b16 %v1004, %v992
  %v1425 = vpack.c.b16 %v1005, %v993
  %v1426 = vpack.c.b16 %v1006, %v994
  %v1427 = vpack.c.b16 %v1007, %v995
  %v1428 = vpack.c.b16 %v1008, %v996
  %v1429 = vpack.c.b16 %v1009, %v997
  %v1430 = vpack.c.b16 %v1010, %v998
  %v1431 = vpack.c.b16 %v1023, %v1011
  %v1432 = vpack.c.b16 %v1024, %v1012
  %v1433 = vpack.c.b16 %v1025, %v1013
  %v1434 = vpack.c.b16 %v1026, %v1014
  %v1435 = vpack.c.b16 %v1027, %v1015
  %v1436 = vpack.c.b16 %v1028, %v1016
  %v1437 = vpack.c.b16 %v1029, %v1017
  %v1438 = vpack.c.b16 %v1030, %v1018
  %v1439 = vpack.c.b16 %v1031, %v1019
  %v1440 = vpack.c.b16 %v1032, %v1020
  %v1441 = vpack.c.b16 %v1033, %v1021
  %v1442 = vpack.c.b16 %v1034, %v1022
  %v1443 = vpack.c.b16 %v1047, %v1035
  %v1444 = vpack.c.b16 %v1048, %v1036
  %v1445 = vpack.c.b16 %v1049, %v1037
  %v1446 = vpack.c.b16 %v1050, %v1038
  %v1447 = vpack.c.b16 %v1051, %v1039
  %v1448 = vpack.c.b16 %v1052, %v1040
  %v1449 = vpack.c.b16 %v1053, %v1041
  %v1450 = vpack.c.b16 %v1054, %v1042
  %v1451 = vpack.c.b16 %v1055, %v1043
  %v1452 = vpack.c.b16 %v1056, %v1044
  %v1453 = vpack.c.b16 %v1057, %v1045
  %v1454 = vpack.c.b16 %v1058, %v1046
  %v1455 = vpack.c.b16 %v1071, %v1059
  %v1456 = vpack.c.b16 %v1072, %v1060
  %v1457 = vpack.c.b16 %v1073, %v1061
  %v1458 = vpack.c.b16 %v1074, %v1062
  %v1459 = vpack.c.b16 %v1075, %v1063
  %v1460 = vpack.c.b16 %v1076, %v1064
  %v1461 = vpack.c.b16 %v1077, %v1065
  %v1462 = vpack.c.b16 %v1078, %v1066
  %v1463 = vpack.c.b16 %v1079, %v1067
  %v1464 = vpack.c.b16 %v1080, %v1068
  %v1465 = vpack.c.b16 %v1081, %v1069
  %v1466 = vpack.c.b16 %v1082, %v1070
  %v1467 = vpack.c.b16 %v1095, %v1083
  %v1468 = vpack.c.b16 %v1096, %v1084
  %v1469 = vpack.c.b16 %v1097, %v1085
  %v1470 = vpack.c.b16 %v1098, %v1086
  %v1471 = vpack.c.b16 %v1099, %v1087
  %v1472 = vpack.c.b16 %v1100, %v1088
  %v1473 = vpack.c.b16 %v1101, %v1089
  %v1474 = vpack.c.b16 %v1102, %v1090
  %v1475 = vpack.c.b16 %v1103, %v1091
  %v1476 = vpack.c.b16 %v1104, %v1092
  %v1477 = vpack.c.b16 %v1105, %v1093
  %v1478 = vpack.c.b16 %v1106, %v1094
  %v1479 = vpack.c.b16 %v1119, %v1107
  %v1480 = vpack.c.b16 %v1120, %v1108
  %v1481 = vpack.c.b16 %v1121, %v1109
  %v1482 = vpack.c.b16 %v1122, %v1110
  %v1483 = vpack.c.b16 %v1123, %v1111
  %v1484 = vpack.c.b16 %v1124, %v1112
  %v1485 = vpack.c.b16 %v1125, %v1113
  %v1486 = vpack.c.b16 %v1126, %v1114
  %v1487 = vpack.c.b16 %v1127, %v1115
  %v1488 = vpack.c.b16 %v1128, %v1116
  %v1489 = vpack.c.b16 %v1129, %v1117
  %v1490 = vpack.c.b16 %v1130, %v1118
  %v1491 = vpack.c.b16 %v1143, %v1131
  %v1492 = vpack.c.b16 %v1144, %v1132
  %v1493 = vpack.c.b16 %v1145, %v1133
  %v1494 = vpack.c.b16 %v1146, %v1134
  %v1495 = vpack.c.b16 %v1147, %v1135
  %v1496 = vpack.c.b16 %v1148, %v1136
  %v1497 = vpack.c.b16 %v1149, %v1137
  %v1498 = vpack.c.b16 %v1150, %v1138
  %v1499 = vpack.c.b16 %v1151, %v1139
  %v1500 = vpack.c.b16 %v1152, %v1140
  %v1501 = vpack.c.b16 %v1153, %v1141
  %v1502 = vpack.c.b16 %v1154, %v1142
  %v1503 = vpack.c.b16 %v1167, %v1155
  %v1504 = vpack.c.b16 %v1168, %v1156
  %v1505 = vpack.c.b16 %v1169, %v1157
  %v1506 = vpack.c.b16 %v1170, %v1158
  %v1507 = vpack.c.b16 %v1171, %v1159
  %v1508 = vpack.c.b16 %v1172, %v1160
  %v1509 = vpack.c.b16 %v1173, %v1161
  %v1510 = vpack.c.b16 %v1174, %v1162
  %v1511 = vpack.c.b16 %v1175, %v1163
  %v1512 = vpack.c.b16 %v1176, %v1164
  %v1513 = vpack.c.b16 %v1177, %v1165
  %v1514 = vpack.c.b16 %v1178, %v1166
  %v1515 = vpack.c.b16 %v1191, %v1179
  %v1516 = vpack.c.b16 %v1192, %v1180
  %v1517 = vpack.c.b16 %v1193, %v1181
  %v1518 = vpack.c.b16 %v1194, %v1182
  %v1519 = vpack.c.b16 %v1195, %v1183
  %v1520 = vpack.c.b16 %v1196, %v1184
  %v1521 = vpack.c.b16 %v1197, %v1185
  %v1522 = vpack.c.b16 %v1198, %v1186
  %v1523 = vpack.c.b16 %v1199, %v1187
  %v1524 = vpack.c.b16 %v1200, %v1188
  %v1525 = vpack.c.b16 %v1201, %v1189
  %v1526 = vpack.c.b16 %v1202, %v1190
  %v1527 = vpack.c.b16 %v1215, %v1203
  %v1528 = vpack.c.b16 %v1216, %v1204
  %v1529 = vpack.c.b16 %v1217, %v1205
  %v1530 = vpack.c.b16 %v1218, %v1206
  %v1531 = vpack.c.b16 %v1219, %v1207
  %v1532 = vpack.c.b16 %v1220, %v1208
  %v1533 = vpack.c.b16 %v1221, %v1209
  %v1534 = vpack.c.b16 %v1222, %v1210
  %v1535 = vpack.c.b16 %v1223, %v1211
  %v1536 = vpack.c.b16 %v1224, %v1212
  %v1537 = vpack.c.b16 %v1225, %v1213
  %v1538 = vpack.c.b16 %v1226, %v1214
  %v1539 = vpack.c.b16 %v1239, %v1227
  %v1540 = vpack.c.b16 %v1240, %v1228
  %v1541 = vpack.c.b16 %v1241, %v1229
  %v1542 = vpack.c.b16 %v1242, %v1230
  %v1543 = vpack.c.b16 %v1243, %v1231
  %v1544 = vpack.c.b16 %v1244, %v1232
  %v1545 = vpack.c.b16 %v1245, %v1233
  %v1546 = vpack.c.b16 %v1246, %v1234
  %v1547 = vpack.c.b16 %v1247, %v1235
  %v1548 = vpack.c.b16 %v1248, %v1236
  %v1549 = vpack.c.b16 %v1249, %v1237
  %v1550 = vpack.c.b16 %v1250, %v1238
  %v1551 = vpack.c.b16 %v1263, %v1251
  %v1552 = vpack.c.b16 %v1264, %v1252
  %v1553 = vpack.c.b16 %v1265, %v1253
  %v1554 = vpack.c.b16 %v1266, %v1254
  %v1555 = vpack.c.b16 %v1267, %v1255
  %v1556 = vpack.c.b16 %v1268, %v1256
  %v1557 = vpack.c.b16 %v1269, %v1257
  %v1558 = vpack.c.b16 %v1270, %v1258
  %v1559 = vpack.c.b16 %v1271, %v1259
  %v1560 = vpack.c.b16 %v1272, %v1260
  %v1561 = vpack.c.b16 %v1273, %v1261
  %v1562 = vpack.c.b16 %v1274, %v1262
  %1851 = vmatprep.subr.bf16.mxu0 %v1360
  %1852 = vmatpush1.bf16.msra.mxu0 %v1359
  %1853 = vmatprep.subr.bf16.mxu0 %v1348
  %1854 = vmatpush1.bf16.msra.mxu0 %v1347
  %1855 = vmatprep.subr.bf16.mxu0 %v1336
  %1856 = vmatpush1.bf16.msra.mxu0 %v1335
  %1857 = vmatprep.subr.bf16.mxu0 %v1324
  %1858 = vmatpush1.bf16.msra.mxu0 %v1323
  %1859 = vmatprep.subr.bf16.mxu0 %v1312
  %1860 = vmatpush1.bf16.msra.mxu0 %v1311
  %1861 = vmatprep.subr.bf16.mxu0 %v1300
  %1862 = vmatpush1.bf16.msra.mxu0 %v1299
  %1863 = vmatprep.subr.bf16.mxu0 %v1288
  %1864 = vmatpush1.bf16.msra.mxu0 %v1287
  %1865 = vmatprep.subr.bf16.mxu0 %v1276
  %1866 = vmatpush1.bf16.msra.mxu0 %v1275
  %1867 = vmatprep.subr.bf16.mxu0 %v1456
  %1868 = vmatpush2.bf16.msra.mxu0 %v1455
  %1869 = vmatprep.subr.bf16.mxu0 %v1444
  %1870 = vmatpush2.bf16.msra.mxu0 %v1443
  %1871 = vmatprep.subr.bf16.mxu0 %v1432
  %1872 = vmatpush2.bf16.msra.mxu0 %v1431
  %1873 = vmatprep.subr.bf16.mxu0 %v1420
  %1874 = vmatpush2.bf16.msra.mxu0 %v1419
  %1875 = vmatprep.subr.bf16.mxu0 %v1408
  %1876 = vmatpush2.bf16.msra.mxu0 %v1407
  %1877 = vmatprep.subr.bf16.mxu0 %v1396
  %1878 = vmatpush2.bf16.msra.mxu0 %v1395
  %1879 = vmatprep.subr.bf16.mxu0 %v1384
  %1880 = vmatpush2.bf16.msra.mxu0 %v1383
  %1881 = vmatprep.subr.bf16.mxu0 %v1372
  %1882 = vmatpush2.bf16.msra.mxu0 %v1371
  %1883 = vmatprep.mubr.bf16.mxu0 %v406
  %1884 = vmatmul.mubr.bf16.gmra.mxu0 %v405
  %v1885 = vpop.f32.mrf.mxu0
  %v1886 = vadd.f32 %v338, %v1885
  %v1887 = vpop.f32.mrf.mxu0
  %v1888 = vadd.f32 %v342, %v1887
  %v1889 = vpop.f32.mrf.mxu0
  %v1890 = vadd.f32 %v338, %v1889
  %v1891 = vpop.f32.mrf.mxu0
  %v1892 = vadd.f32 %v342, %v1891
  %1893 = vdwg.mxu0
  %1894 = vmatprep.subr.bf16.mxu0 %v1552
  %1895 = vmatpush1.bf16.msra.mxu0 %v1551
  %1896 = vmatprep.subr.bf16.mxu0 %v1540
  %1897 = vmatpush1.bf16.msra.mxu0 %v1539
  %1898 = vmatprep.subr.bf16.mxu0 %v1528
  %1899 = vmatpush1.bf16.msra.mxu0 %v1527
  %1900 = vmatprep.subr.bf16.mxu0 %v1516
  %1901 = vmatpush1.bf16.msra.mxu0 %v1515
  %1902 = vmatprep.subr.bf16.mxu0 %v1504
  %1903 = vmatpush1.bf16.msra.mxu0 %v1503
  %1904 = vmatprep.subr.bf16.mxu0 %v1492
  %1905 = vmatpush1.bf16.msra.mxu0 %v1491
  %1906 = vmatprep.subr.bf16.mxu0 %v1480
  %1907 = vmatpush1.bf16.msra.mxu0 %v1479
  %1908 = vmatprep.subr.bf16.mxu0 %v1468
  %1909 = vmatpush1.bf16.msra.mxu0 %v1467
  %1910 = vmatprep.subr.bf16.mxu0 0
  %1911 = vmatpush2.bf16.msra.mxu0 0
  %1912 = vmatprep.subr.bf16.mxu0 0
  %1913 = vmatpush2.bf16.msra.mxu0 0
  %1914 = vmatprep.subr.bf16.mxu0 0
  %1915 = vmatpush2.bf16.msra.mxu0 0
  %1916 = vmatprep.subr.bf16.mxu0 0
  %1917 = vmatpush2.bf16.msra.mxu0 0
  %1918 = vmatprep.subr.bf16.mxu0 0
  %1919 = vmatpush2.bf16.msra.mxu0 0
  %1920 = vmatprep.subr.bf16.mxu0 0
  %1921 = vmatpush2.bf16.msra.mxu0 0
  %1922 = vmatprep.subr.bf16.mxu0 0
  %1923 = vmatpush2.bf16.msra.mxu0 0
  %1924 = vmatprep.subr.bf16.mxu0 0
  %1925 = vmatpush2.bf16.msra.mxu0 0
  %1926 = vmatprep.mubr.bf16.mxu0 0
  %1927 = vmatmul.mubr.bf16.gmra.mxu0 %v407
  %v1928 = vpop.f32.mrf.mxu0
  %v1929 = vadd.f32 %v1886, %v1928
  %v1930 = vpop.f32.mrf.mxu0
  %v1931 = vadd.f32 %v1888, %v1930
  %v1932 = vpop.f32.mrf.mxu0
  %v1933 = vadd.f32 %v1890, %v1932
  %v1934 = vpop.f32.mrf.mxu0
  %v1935 = vadd.f32 %v1892, %v1934
  %1936 = vdwg.mxu0
  %1937 = vmatprep.subr.bf16.mxu0 %v1362
  %1938 = vmatpush1.bf16.msra.mxu0 %v1361
  %1939 = vmatprep.subr.bf16.mxu0 %v1350
  %1940 = vmatpush1.bf16.msra.mxu0 %v1349
  %1941 = vmatprep.subr.bf16.mxu0 %v1338
  %1942 = vmatpush1.bf16.msra.mxu0 %v1337
  %1943 = vmatprep.subr.bf16.mxu0 %v1326
  %1944 = vmatpush1.bf16.msra.mxu0 %v1325
  %1945 = vmatprep.subr.bf16.mxu0 %v1314
  %1946 = vmatpush1.bf16.msra.mxu0 %v1313
  %1947 = vmatprep.subr.bf16.mxu0 %v1302
  %1948 = vmatpush1.bf16.msra.mxu0 %v1301
  %1949 = vmatprep.subr.bf16.mxu0 %v1290
  %1950 = vmatpush1.bf16.msra.mxu0 %v1289
  %1951 = vmatprep.subr.bf16.mxu0 %v1278
  %1952 = vmatpush1.bf16.msra.mxu0 %v1277
  %1953 = vmatprep.subr.bf16.mxu0 %v1458
  %1954 = vmatpush2.bf16.msra.mxu0 %v1457
  %1955 = vmatprep.subr.bf16.mxu0 %v1446
  %1956 = vmatpush2.bf16.msra.mxu0 %v1445
  %1957 = vmatprep.subr.bf16.mxu0 %v1434
  %1958 = vmatpush2.bf16.msra.mxu0 %v1433
  %1959 = vmatprep.subr.bf16.mxu0 %v1422
  %1960 = vmatpush2.bf16.msra.mxu0 %v1421
  %1961 = vmatprep.subr.bf16.mxu0 %v1410
  %1962 = vmatpush2.bf16.msra.mxu0 %v1409
  %1963 = vmatprep.subr.bf16.mxu0 %v1398
  %1964 = vmatpush2.bf16.msra.mxu0 %v1397
  %1965 = vmatprep.subr.bf16.mxu0 %v1386
  %1966 = vmatpush2.bf16.msra.mxu0 %v1385
  %1967 = vmatprep.subr.bf16.mxu0 %v1374
  %1968 = vmatpush2.bf16.msra.mxu0 %v1373
  %1969 = vmatprep.mubr.bf16.mxu0 %v406
  %1970 = vmatmul.mubr.bf16.gmra.mxu0 %v405
  %v1971 = vpop.f32.mrf.mxu0
  %v1972 = vadd.f32 %v346, %v1971
  %v1973 = vpop.f32.mrf.mxu0
  %v1974 = vadd.f32 %v350, %v1973
  %v1975 = vpop.f32.mrf.mxu0
  %v1976 = vadd.f32 %v346, %v1975
  %v1977 = vpop.f32.mrf.mxu0
  %v1978 = vadd.f32 %v350, %v1977
  %1979 = vdwg.mxu0
  %1980 = vmatprep.subr.bf16.mxu0 %v1554
  %1981 = vmatpush1.bf16.msra.mxu0 %v1553
  %1982 = vmatprep.subr.bf16.mxu0 %v1542
  %1983 = vmatpush1.bf16.msra.mxu0 %v1541
  %1984 = vmatprep.subr.bf16.mxu0 %v1530
  %1985 = vmatpush1.bf16.msra.mxu0 %v1529
  %1986 = vmatprep.subr.bf16.mxu0 %v1518
  %1987 = vmatpush1.bf16.msra.mxu0 %v1517
  %1988 = vmatprep.subr.bf16.mxu0 %v1506
  %1989 = vmatpush1.bf16.msra.mxu0 %v1505
  %1990 = vmatprep.subr.bf16.mxu0 %v1494
  %1991 = vmatpush1.bf16.msra.mxu0 %v1493
  %1992 = vmatprep.subr.bf16.mxu0 %v1482
  %1993 = vmatpush1.bf16.msra.mxu0 %v1481
  %1994 = vmatprep.subr.bf16.mxu0 %v1470
  %1995 = vmatpush1.bf16.msra.mxu0 %v1469
  %1996 = vmatprep.subr.bf16.mxu0 0
  %1997 = vmatpush2.bf16.msra.mxu0 0
  %1998 = vmatprep.subr.bf16.mxu0 0
  %1999 = vmatpush2.bf16.msra.mxu0 0
  %2000 = vmatprep.subr.bf16.mxu0 0
  %2001 = vmatpush2.bf16.msra.mxu0 0
  %2002 = vmatprep.subr.bf16.mxu0 0
  %2003 = vmatpush2.bf16.msra.mxu0 0
  %2004 = vmatprep.subr.bf16.mxu0 0
  %2005 = vmatpush2.bf16.msra.mxu0 0
  %2006 = vmatprep.subr.bf16.mxu0 0
  %2007 = vmatpush2.bf16.msra.mxu0 0
  %2008 = vmatprep.subr.bf16.mxu0 0
  %2009 = vmatpush2.bf16.msra.mxu0 0
  %2010 = vmatprep.subr.bf16.mxu0 0
  %2011 = vmatpush2.bf16.msra.mxu0 0
  %2012 = vmatprep.mubr.bf16.mxu0 0
  %2013 = vmatmul.mubr.bf16.gmra.mxu0 %v407
  %v2014 = vpop.f32.mrf.mxu0
  %v2015 = vadd.f32 %v1972, %v2014
  %v2016 = vpop.f32.mrf.mxu0
  %v2017 = vadd.f32 %v1974, %v2016
  %v2018 = vpop.f32.mrf.mxu0
  %v2019 = vadd.f32 %v1976, %v2018
  %v2020 = vpop.f32.mrf.mxu0
  %v2021 = vadd.f32 %v1978, %v2020
  %2022 = vdwg.mxu0
  %2023 = vmatprep.subr.bf16.mxu0 %v1364
  %2024 = vmatpush1.bf16.msra.mxu0 %v1363
  %2025 = vmatprep.subr.bf16.mxu0 %v1352
  %2026 = vmatpush1.bf16.msra.mxu0 %v1351
  %2027 = vmatprep.subr.bf16.mxu0 %v1340
  %2028 = vmatpush1.bf16.msra.mxu0 %v1339
  %2029 = vmatprep.subr.bf16.mxu0 %v1328
  %2030 = vmatpush1.bf16.msra.mxu0 %v1327
  %2031 = vmatprep.subr.bf16.mxu0 %v1316
  %2032 = vmatpush1.bf16.msra.mxu0 %v1315
  %2033 = vmatprep.subr.bf16.mxu0 %v1304
  %2034 = vmatpush1.bf16.msra.mxu0 %v1303
  %2035 = vmatprep.subr.bf16.mxu0 %v1292
  %2036 = vmatpush1.bf16.msra.mxu0 %v1291
  %2037 = vmatprep.subr.bf16.mxu0 %v1280
  %2038 = vmatpush1.bf16.msra.mxu0 %v1279
  %2039 = vmatprep.subr.bf16.mxu0 %v1460
  %2040 = vmatpush2.bf16.msra.mxu0 %v1459
  %2041 = vmatprep.subr.bf16.mxu0 %v1448
  %2042 = vmatpush2.bf16.msra.mxu0 %v1447
  %2043 = vmatprep.subr.bf16.mxu0 %v1436
  %2044 = vmatpush2.bf16.msra.mxu0 %v1435
  %2045 = vmatprep.subr.bf16.mxu0 %v1424
  %2046 = vmatpush2.bf16.msra.mxu0 %v1423
  %2047 = vmatprep.subr.bf16.mxu0 %v1412
  %2048 = vmatpush2.bf16.msra.mxu0 %v1411
  %2049 = vmatprep.subr.bf16.mxu0 %v1400
  %2050 = vmatpush2.bf16.msra.mxu0 %v1399
  %2051 = vmatprep.subr.bf16.mxu0 %v1388
  %2052 = vmatpush2.bf16.msra.mxu0 %v1387
  %2053 = vmatprep.subr.bf16.mxu0 %v1376
  %2054 = vmatpush2.bf16.msra.mxu0 %v1375
  %2055 = vmatprep.mubr.bf16.mxu0 %v406
  %2056 = vmatmul.mubr.bf16.gmra.mxu0 %v405
  %v2057 = vpop.f32.mrf.mxu0
  %v2058 = vadd.f32 %v354, %v2057
  %v2059 = vpop.f32.mrf.mxu0
  %v2060 = vadd.f32 %v358, %v2059
  %v2061 = vpop.f32.mrf.mxu0
  %v2062 = vadd.f32 %v354, %v2061
  %v2063 = vpop.f32.mrf.mxu0
  %v2064 = vadd.f32 %v358, %v2063
  %2065 = vdwg.mxu0
  %2066 = vmatprep.subr.bf16.mxu0 %v1556
  %2067 = vmatpush1.bf16.msra.mxu0 %v1555
  %2068 = vmatprep.subr.bf16.mxu0 %v1544
  %2069 = vmatpush1.bf16.msra.mxu0 %v1543
  %2070 = vmatprep.subr.bf16.mxu0 %v1532
  %2071 = vmatpush1.bf16.msra.mxu0 %v1531
  %2072 = vmatprep.subr.bf16.mxu0 %v1520
  %2073 = vmatpush1.bf16.msra.mxu0 %v1519
  %2074 = vmatprep.subr.bf16.mxu0 %v1508
  %2075 = vmatpush1.bf16.msra.mxu0 %v1507
  %2076 = vmatprep.subr.bf16.mxu0 %v1496
  %2077 = vmatpush1.bf16.msra.mxu0 %v1495
  %2078 = vmatprep.subr.bf16.mxu0 %v1484
  %2079 = vmatpush1.bf16.msra.mxu0 %v1483
  %2080 = vmatprep.subr.bf16.mxu0 %v1472
  %2081 = vmatpush1.bf16.msra.mxu0 %v1471
  %2082 = vmatprep.subr.bf16.mxu0 0
  %2083 = vmatpush2.bf16.msra.mxu0 0
  %2084 = vmatprep.subr.bf16.mxu0 0
  %2085 = vmatpush2.bf16.msra.mxu0 0
  %2086 = vmatprep.subr.bf16.mxu0 0
  %2087 = vmatpush2.bf16.msra.mxu0 0
  %2088 = vmatprep.subr.bf16.mxu0 0
  %2089 = vmatpush2.bf16.msra.mxu0 0
  %2090 = vmatprep.subr.bf16.mxu0 0
  %2091 = vmatpush2.bf16.msra.mxu0 0
  %2092 = vmatprep.subr.bf16.mxu0 0
  %2093 = vmatpush2.bf16.msra.mxu0 0
  %2094 = vmatprep.subr.bf16.mxu0 0
  %2095 = vmatpush2.bf16.msra.mxu0 0
  %2096 = vmatprep.subr.bf16.mxu0 0
  %2097 = vmatpush2.bf16.msra.mxu0 0
  %2098 = vmatprep.mubr.bf16.mxu0 0
  %2099 = vmatmul.mubr.bf16.gmra.mxu0 %v407
  %v2100 = vpop.f32.mrf.mxu0
  %v2101 = vadd.f32 %v2058, %v2100
  %v2102 = vpop.f32.mrf.mxu0
  %v2103 = vadd.f32 %v2060, %v2102
  %v2104 = vpop.f32.mrf.mxu0
  %v2105 = vadd.f32 %v2062, %v2104
  %v2106 = vpop.f32.mrf.mxu0
  %v2107 = vadd.f32 %v2064, %v2106
  %2108 = vdwg.mxu0
  %2109 = vmatprep.subr.bf16.mxu0 %v1366
  %2110 = vmatpush1.bf16.msra.mxu0 %v1365
  %2111 = vmatprep.subr.bf16.mxu0 %v1354
  %2112 = vmatpush1.bf16.msra.mxu0 %v1353
  %2113 = vmatprep.subr.bf16.mxu0 %v1342
  %2114 = vmatpush1.bf16.msra.mxu0 %v1341
  %2115 = vmatprep.subr.bf16.mxu0 %v1330
  %2116 = vmatpush1.bf16.msra.mxu0 %v1329
  %2117 = vmatprep.subr.bf16.mxu0 %v1318
  %2118 = vmatpush1.bf16.msra.mxu0 %v1317
  %2119 = vmatprep.subr.bf16.mxu0 %v1306
  %2120 = vmatpush1.bf16.msra.mxu0 %v1305
  %2121 = vmatprep.subr.bf16.mxu0 %v1294
  %2122 = vmatpush1.bf16.msra.mxu0 %v1293
  %2123 = vmatprep.subr.bf16.mxu0 %v1282
  %2124 = vmatpush1.bf16.msra.mxu0 %v1281
  %2125 = vmatprep.subr.bf16.mxu0 %v1462
  %2126 = vmatpush2.bf16.msra.mxu0 %v1461
  %2127 = vmatprep.subr.bf16.mxu0 %v1450
  %2128 = vmatpush2.bf16.msra.mxu0 %v1449
  %2129 = vmatprep.subr.bf16.mxu0 %v1438
  %2130 = vmatpush2.bf16.msra.mxu0 %v1437
  %2131 = vmatprep.subr.bf16.mxu0 %v1426
  %2132 = vmatpush2.bf16.msra.mxu0 %v1425
  %2133 = vmatprep.subr.bf16.mxu0 %v1414
  %2134 = vmatpush2.bf16.msra.mxu0 %v1413
  %2135 = vmatprep.subr.bf16.mxu0 %v1402
  %2136 = vmatpush2.bf16.msra.mxu0 %v1401
  %2137 = vmatprep.subr.bf16.mxu0 %v1390
  %2138 = vmatpush2.bf16.msra.mxu0 %v1389
  %2139 = vmatprep.subr.bf16.mxu0 %v1378
  %2140 = vmatpush2.bf16.msra.mxu0 %v1377
  %2141 = vmatprep.mubr.bf16.mxu0 %v406
  %2142 = vmatmul.mubr.bf16.gmra.mxu0 %v405
  %v2143 = vpop.f32.mrf.mxu0
  %v2144 = vadd.f32 %v362, %v2143
  %v2145 = vpop.f32.mrf.mxu0
  %v2146 = vadd.f32 %v366, %v2145
  %v2147 = vpop.f32.mrf.mxu0
  %v2148 = vadd.f32 %v362, %v2147
  %v2149 = vpop.f32.mrf.mxu0
  %v2150 = vadd.f32 %v366, %v2149
  %2151 = vdwg.mxu0
  %2152 = vmatprep.subr.bf16.mxu0 %v1558
  %2153 = vmatpush1.bf16.msra.mxu0 %v1557
  %2154 = vmatprep.subr.bf16.mxu0 %v1546
  %2155 = vmatpush1.bf16.msra.mxu0 %v1545
  %2156 = vmatprep.subr.bf16.mxu0 %v1534
  %2157 = vmatpush1.bf16.msra.mxu0 %v1533
  %2158 = vmatprep.subr.bf16.mxu0 %v1522
  %2159 = vmatpush1.bf16.msra.mxu0 %v1521
  %2160 = vmatprep.subr.bf16.mxu0 %v1510
  %2161 = vmatpush1.bf16.msra.mxu0 %v1509
  %2162 = vmatprep.subr.bf16.mxu0 %v1498
  %2163 = vmatpush1.bf16.msra.mxu0 %v1497
  %2164 = vmatprep.subr.bf16.mxu0 %v1486
  %2165 = vmatpush1.bf16.msra.mxu0 %v1485
  %2166 = vmatprep.subr.bf16.mxu0 %v1474
  %2167 = vmatpush1.bf16.msra.mxu0 %v1473
  %2168 = vmatprep.subr.bf16.mxu0 0
  %2169 = vmatpush2.bf16.msra.mxu0 0
  %2170 = vmatprep.subr.bf16.mxu0 0
  %2171 = vmatpush2.bf16.msra.mxu0 0
  %2172 = vmatprep.subr.bf16.mxu0 0
  %2173 = vmatpush2.bf16.msra.mxu0 0
  %2174 = vmatprep.subr.bf16.mxu0 0
  %2175 = vmatpush2.bf16.msra.mxu0 0
  %2176 = vmatprep.subr.bf16.mxu0 0
  %2177 = vmatpush2.bf16.msra.mxu0 0
  %2178 = vmatprep.subr.bf16.mxu0 0
  %2179 = vmatpush2.bf16.msra.mxu0 0
  %2180 = vmatprep.subr.bf16.mxu0 0
  %2181 = vmatpush2.bf16.msra.mxu0 0
  %2182 = vmatprep.subr.bf16.mxu0 0
  %2183 = vmatpush2.bf16.msra.mxu0 0
  %2184 = vmatprep.mubr.bf16.mxu0 0
  %2185 = vmatmul.mubr.bf16.gmra.mxu0 %v407
  %v2186 = vpop.f32.mrf.mxu0
  %v2187 = vadd.f32 %v2144, %v2186
  %v2188 = vpop.f32.mrf.mxu0
  %v2189 = vadd.f32 %v2146, %v2188
  %v2190 = vpop.f32.mrf.mxu0
  %v2191 = vadd.f32 %v2148, %v2190
  %v2192 = vpop.f32.mrf.mxu0
  %v2193 = vadd.f32 %v2150, %v2192
  %2194 = vdwg.mxu0
  %2195 = vmatprep.subr.bf16.mxu0 %v1368
  %2196 = vmatpush1.bf16.msra.mxu0 %v1367
  %2197 = vmatprep.subr.bf16.mxu0 %v1356
  %2198 = vmatpush1.bf16.msra.mxu0 %v1355
  %2199 = vmatprep.subr.bf16.mxu0 %v1344
  %2200 = vmatpush1.bf16.msra.mxu0 %v1343
  %2201 = vmatprep.subr.bf16.mxu0 %v1332
  %2202 = vmatpush1.bf16.msra.mxu0 %v1331
  %2203 = vmatprep.subr.bf16.mxu0 %v1320
  %2204 = vmatpush1.bf16.msra.mxu0 %v1319
  %2205 = vmatprep.subr.bf16.mxu0 %v1308
  %2206 = vmatpush1.bf16.msra.mxu0 %v1307
  %2207 = vmatprep.subr.bf16.mxu0 %v1296
  %2208 = vmatpush1.bf16.msra.mxu0 %v1295
  %2209 = vmatprep.subr.bf16.mxu0 %v1284
  %2210 = vmatpush1.bf16.msra.mxu0 %v1283
  %2211 = vmatprep.subr.bf16.mxu0 %v1464
  %2212 = vmatpush2.bf16.msra.mxu0 %v1463
  %2213 = vmatprep.subr.bf16.mxu0 %v1452
  %2214 = vmatpush2.bf16.msra.mxu0 %v1451
  %2215 = vmatprep.subr.bf16.mxu0 %v1440
  %2216 = vmatpush2.bf16.msra.mxu0 %v1439
  %2217 = vmatprep.subr.bf16.mxu0 %v1428
  %2218 = vmatpush2.bf16.msra.mxu0 %v1427
  %2219 = vmatprep.subr.bf16.mxu0 %v1416
  %2220 = vmatpush2.bf16.msra.mxu0 %v1415
  %2221 = vmatprep.subr.bf16.mxu0 %v1404
  %2222 = vmatpush2.bf16.msra.mxu0 %v1403
  %2223 = vmatprep.subr.bf16.mxu0 %v1392
  %2224 = vmatpush2.bf16.msra.mxu0 %v1391
  %2225 = vmatprep.subr.bf16.mxu0 %v1380
  %2226 = vmatpush2.bf16.msra.mxu0 %v1379
  %2227 = vmatprep.mubr.bf16.mxu0 %v406
  %2228 = vmatmul.mubr.bf16.gmra.mxu0 %v405
  %v2229 = vpop.f32.mrf.mxu0
  %v2230 = vadd.f32 %v370, %v2229
  %v2231 = vpop.f32.mrf.mxu0
  %v2232 = vadd.f32 %v374, %v2231
  %v2233 = vpop.f32.mrf.mxu0
  %v2234 = vadd.f32 %v370, %v2233
  %v2235 = vpop.f32.mrf.mxu0
  %v2236 = vadd.f32 %v374, %v2235
  %2237 = vdwg.mxu0
  %2238 = vmatprep.subr.bf16.mxu0 %v1560
  %2239 = vmatpush1.bf16.msra.mxu0 %v1559
  %2240 = vmatprep.subr.bf16.mxu0 %v1548
  %2241 = vmatpush1.bf16.msra.mxu0 %v1547
  %2242 = vmatprep.subr.bf16.mxu0 %v1536
  %2243 = vmatpush1.bf16.msra.mxu0 %v1535
  %2244 = vmatprep.subr.bf16.mxu0 %v1524
  %2245 = vmatpush1.bf16.msra.mxu0 %v1523
  %2246 = vmatprep.subr.bf16.mxu0 %v1512
  %2247 = vmatpush1.bf16.msra.mxu0 %v1511
  %2248 = vmatprep.subr.bf16.mxu0 %v1500
  %2249 = vmatpush1.bf16.msra.mxu0 %v1499
  %2250 = vmatprep.subr.bf16.mxu0 %v1488
  %2251 = vmatpush1.bf16.msra.mxu0 %v1487
  %2252 = vmatprep.subr.bf16.mxu0 %v1476
  %2253 = vmatpush1.bf16.msra.mxu0 %v1475
  %2254 = vmatprep.subr.bf16.mxu0 0
  %2255 = vmatpush2.bf16.msra.mxu0 0
  %2256 = vmatprep.subr.bf16.mxu0 0
  %2257 = vmatpush2.bf16.msra.mxu0 0
  %2258 = vmatprep.subr.bf16.mxu0 0
  %2259 = vmatpush2.bf16.msra.mxu0 0
  %2260 = vmatprep.subr.bf16.mxu0 0
  %2261 = vmatpush2.bf16.msra.mxu0 0
  %2262 = vmatprep.subr.bf16.mxu0 0
  %2263 = vmatpush2.bf16.msra.mxu0 0
  %2264 = vmatprep.subr.bf16.mxu0 0
  %2265 = vmatpush2.bf16.msra.mxu0 0
  %2266 = vmatprep.subr.bf16.mxu0 0
  %2267 = vmatpush2.bf16.msra.mxu0 0
  %2268 = vmatprep.subr.bf16.mxu0 0
  %2269 = vmatpush2.bf16.msra.mxu0 0
  %2270 = vmatprep.mubr.bf16.mxu0 0
  %2271 = vmatmul.mubr.bf16.gmra.mxu0 %v407
  %v2272 = vpop.f32.mrf.mxu0
  %v2273 = vadd.f32 %v2230, %v2272
  %v2274 = vpop.f32.mrf.mxu0
  %v2275 = vadd.f32 %v2232, %v2274
  %v2276 = vpop.f32.mrf.mxu0
  %v2277 = vadd.f32 %v2234, %v2276
  %v2278 = vpop.f32.mrf.mxu0
  %v2279 = vadd.f32 %v2236, %v2278
  %2280 = vdwg.mxu0
  %2281 = vmatprep.subr.bf16.mxu0 %v1370
  %2282 = vmatpush1.bf16.msra.mxu0 %v1369
  %2283 = vmatprep.subr.bf16.mxu0 %v1358
  %2284 = vmatpush1.bf16.msra.mxu0 %v1357
  %2285 = vmatprep.subr.bf16.mxu0 %v1346
  %2286 = vmatpush1.bf16.msra.mxu0 %v1345
  %2287 = vmatprep.subr.bf16.mxu0 %v1334
  %2288 = vmatpush1.bf16.msra.mxu0 %v1333
  %2289 = vmatprep.subr.bf16.mxu0 %v1322
  %2290 = vmatpush1.bf16.msra.mxu0 %v1321
  %2291 = vmatprep.subr.bf16.mxu0 %v1310
  %2292 = vmatpush1.bf16.msra.mxu0 %v1309
  %2293 = vmatprep.subr.bf16.mxu0 %v1298
  %2294 = vmatpush1.bf16.msra.mxu0 %v1297
  %2295 = vmatprep.subr.bf16.mxu0 %v1286
  %2296 = vmatpush1.bf16.msra.mxu0 %v1285
  %2297 = vmatprep.subr.bf16.mxu0 %v1466
  %2298 = vmatpush2.bf16.msra.mxu0 %v1465
  %2299 = vmatprep.subr.bf16.mxu0 %v1454
  %2300 = vmatpush2.bf16.msra.mxu0 %v1453
  %2301 = vmatprep.subr.bf16.mxu0 %v1442
  %2302 = vmatpush2.bf16.msra.mxu0 %v1441
  %2303 = vmatprep.subr.bf16.mxu0 %v1430
  %2304 = vmatpush2.bf16.msra.mxu0 %v1429
  %2305 = vmatprep.subr.bf16.mxu0 %v1418
  %2306 = vmatpush2.bf16.msra.mxu0 %v1417
  %2307 = vmatprep.subr.bf16.mxu0 %v1406
  %2308 = vmatpush2.bf16.msra.mxu0 %v1405
  %2309 = vmatprep.subr.bf16.mxu0 %v1394
  %2310 = vmatpush2.bf16.msra.mxu0 %v1393
  %2311 = vmatprep.subr.bf16.mxu0 %v1382
  %2312 = vmatpush2.bf16.msra.mxu0 %v1381
  %2313 = vmatprep.mubr.bf16.mxu0 %v406
  %2314 = vmatmul.mubr.bf16.gmra.mxu0 %v405
  %v2315 = vpop.f32.mrf.mxu0
  %v2316 = vadd.f32 %v378, %v2315
  %v2317 = vpop.f32.mrf.mxu0
  %v2318 = vadd.f32 %v382, %v2317
  %v2319 = vpop.f32.mrf.mxu0
  %v2320 = vadd.f32 %v378, %v2319
  %v2321 = vpop.f32.mrf.mxu0
  %v2322 = vadd.f32 %v382, %v2321
  %2323 = vdwg.mxu0
  %2324 = vmatprep.subr.bf16.mxu0 %v1562
  %2325 = vmatpush1.bf16.msra.mxu0 %v1561
  %2326 = vmatprep.subr.bf16.mxu0 %v1550
  %2327 = vmatpush1.bf16.msra.mxu0 %v1549
  %2328 = vmatprep.subr.bf16.mxu0 %v1538
  %2329 = vmatpush1.bf16.msra.mxu0 %v1537
  %2330 = vmatprep.subr.bf16.mxu0 %v1526
  %2331 = vmatpush1.bf16.msra.mxu0 %v1525
  %2332 = vmatprep.subr.bf16.mxu0 %v1514
  %2333 = vmatpush1.bf16.msra.mxu0 %v1513
  %2334 = vmatprep.subr.bf16.mxu0 %v1502
  %2335 = vmatpush1.bf16.msra.mxu0 %v1501
  %2336 = vmatprep.subr.bf16.mxu0 %v1490
  %2337 = vmatpush1.bf16.msra.mxu0 %v1489
  %2338 = vmatprep.subr.bf16.mxu0 %v1478
  %2339 = vmatpush1.bf16.msra.mxu0 %v1477
  %2340 = vmatprep.subr.bf16.mxu0 0
  %2341 = vmatpush2.bf16.msra.mxu0 0
  %2342 = vmatprep.subr.bf16.mxu0 0
  %2343 = vmatpush2.bf16.msra.mxu0 0
  %2344 = vmatprep.subr.bf16.mxu0 0
  %2345 = vmatpush2.bf16.msra.mxu0 0
  %2346 = vmatprep.subr.bf16.mxu0 0
  %2347 = vmatpush2.bf16.msra.mxu0 0
  %2348 = vmatprep.subr.bf16.mxu0 0
  %2349 = vmatpush2.bf16.msra.mxu0 0
  %2350 = vmatprep.subr.bf16.mxu0 0
  %2351 = vmatpush2.bf16.msra.mxu0 0
  %2352 = vmatprep.subr.bf16.mxu0 0
  %2353 = vmatpush2.bf16.msra.mxu0 0
  %2354 = vmatprep.subr.bf16.mxu0 0
  %2355 = vmatpush2.bf16.msra.mxu0 0
  %2356 = vmatprep.mubr.bf16.mxu0 0
  %2357 = vmatmul.mubr.bf16.gmra.mxu0 %v407
  %v2358 = vpop.f32.mrf.mxu0
  %v2359 = vadd.f32 %v2316, %v2358
  %v2360 = vpop.f32.mrf.mxu0
  %v2361 = vadd.f32 %v2318, %v2360
  %v2362 = vpop.f32.mrf.mxu0
  %v2363 = vadd.f32 %v2320, %v2362
  %v2364 = vpop.f32.mrf.mxu0
  %v2365 = vadd.f32 %v2322, %v2364
  %2366 = vdwg.mxu0
  %vm2367 = vcmp.gt.f32.partialorder %v1929, 0.0
  %vm2368 = vcmp.gt.f32.partialorder %v1931, 0.0
  %vm2369 = vcmp.gt.f32.partialorder %v2015, 0.0
  %vm2370 = vcmp.gt.f32.partialorder %v1933, 0.0
  %vm2371 = vcmp.gt.f32.partialorder %v1935, 0.0
  %vm2372 = vcmp.gt.f32.partialorder %v2019, 0.0
  %v2373 = vmul.f32 %v1929, 0.01
  %v2374 = vmul.f32 %v1931, 0.01
  %v2375 = vmul.f32 %v2015, 0.01
  %v2376 = vmul.f32 %v1933, 0.01
  %v2377 = vmul.f32 %v1935, 0.01
  %v2378 = vmul.f32 %v2019, 0.01
  %v2379 = vsel %vm2367, %v1929, %v2373
  %v2380 = vsel %vm2368, %v1931, %v2374
  %v2381 = vsel %vm2369, %v2015, %v2375
  %v2382 = vsel %vm2370, %v1933, %v2376
  %v2383 = vsel %vm2371, %v1935, %v2377
  %v2384 = vsel %vm2372, %v2019, %v2378
  %v2385 = vxor.u32 %v2017, 2147483648
  %v2386 = vxor.u32 %v2101, 2147483648
  %v2387 = vxor.u32 %v2103, 2147483648
  %v2388 = vxor.u32 %v2021, 2147483648
  %v2389 = vxor.u32 %v2105, 2147483648
  %v2390 = vxor.u32 %v2107, 2147483648
  %v2391 = vmul.f32 %v2385, 1.442695
  %v2392 = vpow.pop %v2391
  %v2393 = vmul.f32 %v2386, 1.442695
  %v2394 = vpow.pop %v2393
  %v2395 = vmul.f32 %v2387, 1.442695
  %v2396 = vpow.pop %v2395
  %v2397 = vmul.f32 %v2388, 1.442695
  %v2398 = vpow.pop %v2397
  %v2399 = vmul.f32 %v2389, 1.442695
  %v2400 = vpow.pop %v2399
  %v2401 = vmul.f32 %v2390, 1.442695
  %v2402 = vpow.pop %v2401
  %v2403 = vadd.f32 %v2392, 1.0
  %v2404 = vadd.f32 %v2394, 1.0
  %v2405 = vadd.f32 %v2396, 1.0
  %v2406 = vadd.f32 %v2398, 1.0
  %v2407 = vadd.f32 %v2400, 1.0
  %v2408 = vadd.f32 %v2402, 1.0
  %v2409 = vrcp.pop %v2403
  %v2410 = vmul.f32 1.0, %v2409
  %v2411 = vrcp.pop %v2404
  %v2412 = vmul.f32 1.0, %v2411
  %v2413 = vrcp.pop %v2405
  %v2414 = vmul.f32 1.0, %v2413
  %v2415 = vrcp.pop %v2406
  %v2416 = vmul.f32 1.0, %v2415
  %v2417 = vrcp.pop %v2407
  %v2418 = vmul.f32 1.0, %v2417
  %v2419 = vrcp.pop %v2408
  %v2420 = vmul.f32 1.0, %v2419
  %vm2421 = vcmp.gt.f32.partialorder %v2187, 0.0
  %vm2422 = vcmp.gt.f32.partialorder %v2189, 0.0
  %vm2423 = vcmp.gt.f32.partialorder %v2273, 0.0
  %vm2424 = vcmp.gt.f32.partialorder %v2191, 0.0
  %vm2425 = vcmp.gt.f32.partialorder %v2193, 0.0
  %vm2426 = vcmp.gt.f32.partialorder %v2277, 0.0
  %v2427 = vmul.f32 %v2187, 0.01
  %v2428 = vmul.f32 %v2189, 0.01
  %v2429 = vmul.f32 %v2273, 0.01
  %v2430 = vmul.f32 %v2191, 0.01
  %v2431 = vmul.f32 %v2193, 0.01
  %v2432 = vmul.f32 %v2277, 0.01
  %v2433 = vsel %vm2421, %v2187, %v2427
  %v2434 = vsel %vm2422, %v2189, %v2428
  %v2435 = vsel %vm2423, %v2273, %v2429
  %v2436 = vsel %vm2424, %v2191, %v2430
  %v2437 = vsel %vm2425, %v2193, %v2431
  %v2438 = vsel %vm2426, %v2277, %v2432
  %v2439 = vxor.u32 %v2275, 2147483648
  %v2440 = vxor.u32 %v2359, 2147483648
  %v2441 = vxor.u32 %v2361, 2147483648
  %v2442 = vxor.u32 %v2279, 2147483648
  %v2443 = vxor.u32 %v2363, 2147483648
  %v2444 = vxor.u32 %v2365, 2147483648
  %v2445 = vmul.f32 %v2439, 1.442695
  %v2446 = vpow.pop %v2445
  %v2447 = vmul.f32 %v2440, 1.442695
  %v2448 = vpow.pop %v2447
  %v2449 = vmul.f32 %v2441, 1.442695
  %v2450 = vpow.pop %v2449
  %v2451 = vmul.f32 %v2442, 1.442695
  %v2452 = vpow.pop %v2451
  %v2453 = vmul.f32 %v2443, 1.442695
  %v2454 = vpow.pop %v2453
  %v2455 = vmul.f32 %v2444, 1.442695
  %v2456 = vpow.pop %v2455
  %v2457 = vadd.f32 %v2446, 1.0
  %v2458 = vadd.f32 %v2448, 1.0
  %v2459 = vadd.f32 %v2450, 1.0
  %v2460 = vadd.f32 %v2452, 1.0
  %v2461 = vadd.f32 %v2454, 1.0
  %v2462 = vadd.f32 %v2456, 1.0
  %v2463 = vrcp.pop %v2457
  %v2464 = vmul.f32 1.0, %v2463
  %v2465 = vrcp.pop %v2458
  %v2466 = vmul.f32 1.0, %v2465
  %v2467 = vrcp.pop %v2459
  %v2468 = vmul.f32 1.0, %v2467
  %v2469 = vrcp.pop %v2460
  %v2470 = vmul.f32 1.0, %v2469
  %v2471 = vrcp.pop %v2461
  %v2472 = vmul.f32 1.0, %v2471
  %v2473 = vrcp.pop %v2462
  %v2474 = vmul.f32 1.0, %v2473
  %v2475 = vmul.f32 %v2410, %v2379
  %v2476 = vmul.f32 %v2412, %v2380
  %v2477 = vmul.f32 %v2414, %v2381
  %v2478 = vmul.f32 %v2416, %v2382
  %v2479 = vmul.f32 %v2418, %v2383
  %v2480 = vmul.f32 %v2420, %v2384
  %v2481 = vsub.f32 1.0, %v2410
  %v2482 = vsub.f32 1.0, %v2412
  %v2483 = vsub.f32 1.0, %v2414
  %v2484 = vsub.f32 1.0, %v2416
  %v2485 = vsub.f32 1.0, %v2418
  %v2486 = vsub.f32 1.0, %v2420
  %v2487 = vmul.f32 %v2481, %v37
  %v2488 = vmul.f32 %v2482, %v38
  %v2489 = vmul.f32 %v2483, %v39
  %v2490 = vmul.f32 %v2484, %v40
  %v2491 = vmul.f32 %v2485, %v41
  %v2492 = vmul.f32 %v2486, %v42
  %v2493 = vadd.f32 %v2475, %v2487
  %v2494 = vadd.f32 %v2476, %v2488
  %v2495 = vadd.f32 %v2477, %v2489
  %v2496 = vadd.f32 %v2478, %v2490
  %v2497 = vadd.f32 %v2479, %v2491
  %v2498 = vadd.f32 %v2480, %v2492
  %v2499 = vmul.f32 %v2464, %v2433
  %v2500 = vmul.f32 %v2466, %v2434
  %v2501 = vmul.f32 %v2468, %v2435
  %v2502 = vmul.f32 %v2470, %v2436
  %v2503 = vmul.f32 %v2472, %v2437
  %v2504 = vmul.f32 %v2474, %v2438
  %v2505 = vsub.f32 1.0, %v2464
  %v2506 = vsub.f32 1.0, %v2466
  %v2507 = vsub.f32 1.0, %v2468
  %v2508 = vsub.f32 1.0, %v2470
  %v2509 = vsub.f32 1.0, %v2472
  %v2510 = vsub.f32 1.0, %v2474
  %v2511 = vmul.f32 %v2505, %v37
  %v2512 = vmul.f32 %v2506, %v38
  %v2513 = vmul.f32 %v2507, %v39
  %v2514 = vmul.f32 %v2508, %v40
  %v2515 = vmul.f32 %v2509, %v41
  %v2516 = vmul.f32 %v2510, %v42
  %v2517 = vadd.f32 %v2499, %v2511
  %v2518 = vadd.f32 %v2500, %v2512
  %v2519 = vadd.f32 %v2501, %v2513
  %v2520 = vadd.f32 %v2502, %v2514
  %v2521 = vadd.f32 %v2503, %v2515
  %v2522 = vadd.f32 %v2504, %v2516
  %v2523 = vpack.c.bf16 %v2496, %v2493
  %v2524 = vpack.c.bf16 %v2497, %v2494
  %v2525 = vpack.c.bf16 %v2498, %v2495
  %v2526 = vld [vmem:[%s3] sm:$0xff]
  %v2527 = vld [vmem:[%s3 + $0x8] sm:$0xff]
  %v2528 = vld [vmem:[%s3 + $0x10] sm:$0xff]
  %v2529 = vld [vmem:[%s3 + $0x18] sm:$0xff]
  %v2530 = vld [vmem:[%s3 + $0x20] sm:$0xff]
  %v2531 = vld [vmem:[%s3 + $0x28] sm:$0xff]
  %v2532 = vld [vmem:[%s3 + $0x30] sm:$0xff]
  %v2533 = vld [vmem:[%s3 + $0x38] sm:$0xff]
  %v2534 = vld [vmem:[%s3 + $0x40] sm:$0xff]
  %v2535 = vld [vmem:[%s3 + $0x48] sm:$0xff]
  %v2536 = vld [vmem:[%s3 + $0x50] sm:$0xff]
  %v2537 = vld [vmem:[%s3 + $0x58] sm:$0xff]
  %v2538 = vld [vmem:[%s3 + $0x60] sm:$0xff]
  %v2539 = vld [vmem:[%s3 + $0x68] sm:$0xff]
  %v2540 = vld [vmem:[%s3 + $0x70] sm:$0xff]
  %v2541 = vld [vmem:[%s3 + $0x78] sm:$0xff]
  %v2542 = vld [vmem:[%s3 + $0x80] sm:$0xff]
  %v2543 = vld [vmem:[%s3 + $0x88] sm:$0xff]
  %v2544 = vld [vmem:[%s3 + $0x90] sm:$0xff]
  %v2545 = vld [vmem:[%s3 + $0x98] sm:$0xff]
  %v2546 = vld [vmem:[%s3 + $0xa0] sm:$0xff]
  %v2547 = vld [vmem:[%s3 + $0xa8] sm:$0xff]
  %v2548 = vld [vmem:[%s3 + $0xb0] sm:$0xff]
  %v2549 = vld [vmem:[%s3 + $0xb8] sm:$0xff]
  %v2550 = vld [vmem:[%s3 + $0xc0] sm:$0xff]
  %v2551 = vld [vmem:[%s3 + $0xc8] sm:$0xff]
  %v2552 = vld [vmem:[%s3 + $0xd0] sm:$0xff]
  %v2553 = vld [vmem:[%s3 + $0xd8] sm:$0xff]
  %v2554 = vld [vmem:[%s3 + $0xe0] sm:$0xff]
  %v2555 = vld [vmem:[%s3 + $0xe8] sm:$0xff]
  %v2556 = vld [vmem:[%s3 + $0xf0] sm:$0xff]
  %v2557 = vld [vmem:[%s3 + $0xf8] sm:$0xff]
  %v2558 = vld [vmem:[%s3 + $0x100] sm:$0xff]
  %v2559 = vld [vmem:[%s3 + $0x108] sm:$0xff]
  %v2560 = vld [vmem:[%s3 + $0x110] sm:$0xff]
  %v2561 = vld [vmem:[%s3 + $0x118] sm:$0xff]
  %v2562 = vld [vmem:[%s3 + $0x120] sm:$0xff]
  %v2563 = vld [vmem:[%s3 + $0x128] sm:$0xff]
  %v2564 = vld [vmem:[%s3 + $0x130] sm:$0xff]
  %v2565 = vld [vmem:[%s3 + $0x138] sm:$0xff]
  %v2566 = vld [vmem:[%s3 + $0x140] sm:$0xff]
  %v2567 = vld [vmem:[%s3 + $0x148] sm:$0xff]
  %v2568 = vld [vmem:[%s3 + $0x150] sm:$0xff]
  %v2569 = vld [vmem:[%s3 + $0x158] sm:$0xff]
  %v2570 = vld [vmem:[%s3 + $0x160] sm:$0xff]
  %v2571 = vld [vmem:[%s3 + $0x168] sm:$0xff]
  %v2572 = vld [vmem:[%s3 + $0x170] sm:$0xff]
  %v2573 = vld [vmem:[%s3 + $0x178] sm:$0xff]
  %v2574 = vld [vmem:[%s3 + $0x180] sm:$0xff]
  %v2575 = vld [vmem:[%s3 + $0x188] sm:$0xff]
  %v2576 = vld [vmem:[%s3 + $0x190] sm:$0xff]
  %v2577 = vld [vmem:[%s3 + $0x198] sm:$0xff]
  %v2578 = vld [vmem:[%s3 + $0x1a0] sm:$0xff]
  %v2579 = vld [vmem:[%s3 + $0x1a8] sm:$0xff]
  %v2580 = vld [vmem:[%s3 + $0x1b0] sm:$0xff]
  %v2581 = vld [vmem:[%s3 + $0x1b8] sm:$0xff]
  %v2582 = vld [vmem:[%s3 + $0x1c0] sm:$0xff]
  %v2583 = vld [vmem:[%s3 + $0x1c8] sm:$0xff]
  %v2584 = vld [vmem:[%s3 + $0x1d0] sm:$0xff]
  %v2585 = vld [vmem:[%s3 + $0x1d8] sm:$0xff]
  %v2586 = vld [vmem:[%s3 + $0x1e0] sm:$0xff]
  %v2587 = vld [vmem:[%s3 + $0x1e8] sm:$0xff]
  %v2588 = vld [vmem:[%s3 + $0x1f0] sm:$0xff]
  %v2589 = vld [vmem:[%s3 + $0x1f8] sm:$0xff]
  %v2590 = vld [vmem:[%s3 + $0x200] sm:$0xff]
  %v2591 = vld [vmem:[%s3 + $0x208] sm:$0xff]
  %v2592 = vld [vmem:[%s3 + $0x210] sm:$0xff]
  %v2593 = vld [vmem:[%s3 + $0x218] sm:$0xff]
  %v2594 = vld [vmem:[%s3 + $0x220] sm:$0xff]
  %v2595 = vld [vmem:[%s3 + $0x228] sm:$0xff]
  %v2596 = vld [vmem:[%s3 + $0x230] sm:$0xff]
  %v2597 = vld [vmem:[%s3 + $0x238] sm:$0xff]
  %v2598 = vld [vmem:[%s3 + $0x240] sm:$0xff]
  %v2599 = vld [vmem:[%s3 + $0x248] sm:$0xff]
  %v2600 = vld [vmem:[%s3 + $0x250] sm:$0xff]
  %v2601 = vld [vmem:[%s3 + $0x258] sm:$0xff]
  %v2602 = vld [vmem:[%s3 + $0x260] sm:$0xff]
  %v2603 = vld [vmem:[%s3 + $0x268] sm:$0xff]
  %v2604 = vld [vmem:[%s3 + $0x270] sm:$0xff]
  %v2605 = vld [vmem:[%s3 + $0x278] sm:$0xff]
  %v2606 = vld [vmem:[%s3 + $0x280] sm:$0xff]
  %v2607 = vld [vmem:[%s3 + $0x288] sm:$0xff]
  %v2608 = vld [vmem:[%s3 + $0x290] sm:$0xff]
  %v2609 = vld [vmem:[%s3 + $0x298] sm:$0xff]
  %v2610 = vld [vmem:[%s3 + $0x2a0] sm:$0xff]
  %v2611 = vld [vmem:[%s3 + $0x2a8] sm:$0xff]
  %v2612 = vld [vmem:[%s3 + $0x2b0] sm:$0xff]
  %v2613 = vld [vmem:[%s3 + $0x2b8] sm:$0xff]
  %v2614 = vld [vmem:[%s3 + $0x2c0] sm:$0xff]
  %v2615 = vld [vmem:[%s3 + $0x2c8] sm:$0xff]
  %v2616 = vld [vmem:[%s3 + $0x2d0] sm:$0xff]
  %v2617 = vld [vmem:[%s3 + $0x2d8] sm:$0xff]
  %v2618 = vld [vmem:[%s3 + $0x2e0] sm:$0xff]
  %v2619 = vld [vmem:[%s3 + $0x2e8] sm:$0xff]
  %v2620 = vld [vmem:[%s3 + $0x2f0] sm:$0xff]
  %v2621 = vld [vmem:[%s3 + $0x2f8] sm:$0xff]
  %v2622 = vld [vmem:[%s3 + $0x300] sm:$0xff]
  %v2623 = vld [vmem:[%s3 + $0x308] sm:$0xff]
  %v2624 = vld [vmem:[%s3 + $0x310] sm:$0xff]
  %v2625 = vld [vmem:[%s3 + $0x318] sm:$0xff]
  %v2626 = vld [vmem:[%s3 + $0x320] sm:$0xff]
  %v2627 = vld [vmem:[%s3 + $0x328] sm:$0xff]
  %v2628 = vld [vmem:[%s3 + $0x330] sm:$0xff]
  %v2629 = vld [vmem:[%s3 + $0x338] sm:$0xff]
  %v2630 = vld [vmem:[%s3 + $0x340] sm:$0xff]
  %v2631 = vld [vmem:[%s3 + $0x348] sm:$0xff]
  %v2632 = vld [vmem:[%s3 + $0x350] sm:$0xff]
  %v2633 = vld [vmem:[%s3 + $0x358] sm:$0xff]
  %v2634 = vld [vmem:[%s3 + $0x360] sm:$0xff]
  %v2635 = vld [vmem:[%s3 + $0x368] sm:$0xff]
  %v2636 = vld [vmem:[%s3 + $0x370] sm:$0xff]
  %v2637 = vld [vmem:[%s3 + $0x378] sm:$0xff]
  %v2638 = vld [vmem:[%s3 + $0x380] sm:$0xff]
  %v2639 = vld [vmem:[%s3 + $0x388] sm:$0xff]
  %v2640 = vld [vmem:[%s3 + $0x390] sm:$0xff]
  %v2641 = vld [vmem:[%s3 + $0x398] sm:$0xff]
  %v2642 = vld [vmem:[%s3 + $0x3a0] sm:$0xff]
  %v2643 = vld [vmem:[%s3 + $0x3a8] sm:$0xff]
  %v2644 = vld [vmem:[%s3 + $0x3b0] sm:$0xff]
  %v2645 = vld [vmem:[%s3 + $0x3b8] sm:$0xff]
  %v2646 = vld [vmem:[%s3 + $0x3c0] sm:$0xff]
  %v2647 = vld [vmem:[%s3 + $0x3c8] sm:$0xff]
  %v2648 = vld [vmem:[%s3 + $0x3d0] sm:$0xff]
  %v2649 = vld [vmem:[%s3 + $0x3d8] sm:$0xff]
  %v2650 = vld [vmem:[%s3 + $0x3e0] sm:$0xff]
  %v2651 = vld [vmem:[%s3 + $0x3e8] sm:$0xff]
  %v2652 = vld [vmem:[%s3 + $0x3f0] sm:$0xff]
  %v2653 = vld [vmem:[%s3 + $0x3f8] sm:$0xff]
  %v2654 = vld [vmem:[%s3 + $0x400] sm:$0xff]
  %v2655 = vld [vmem:[%s3 + $0x408] sm:$0xff]
  %v2656 = vld [vmem:[%s3 + $0x410] sm:$0xff]
  %v2657 = vld [vmem:[%s3 + $0x418] sm:$0xff]
  %v2658 = vld [vmem:[%s3 + $0x420] sm:$0xff]
  %v2659 = vld [vmem:[%s3 + $0x428] sm:$0xff]
  %v2660 = vld [vmem:[%s3 + $0x430] sm:$0xff]
  %v2661 = vld [vmem:[%s3 + $0x438] sm:$0xff]
  %v2662 = vld [vmem:[%s3 + $0x440] sm:$0xff]
  %v2663 = vld [vmem:[%s3 + $0x448] sm:$0xff]
  %v2664 = vld [vmem:[%s3 + $0x450] sm:$0xff]
  %v2665 = vld [vmem:[%s3 + $0x458] sm:$0xff]
  %v2666 = vld [vmem:[%s3 + $0x460] sm:$0xff]
  %v2667 = vld [vmem:[%s3 + $0x468] sm:$0xff]
  %v2668 = vld [vmem:[%s3 + $0x470] sm:$0xff]
  %v2669 = vld [vmem:[%s3 + $0x478] sm:$0xff]
  %v2670 = vld [vmem:[%s4] sm:$0x3f]
  %v2672 = vlaneseq
  %v2673 = vshrl.u32 %v2672, 7
  %v2674 = vsub.s32 0, %v2673
  %v2675 = vrot.slane %v2670, %v2674
  %v2676 = vlaneseq
  %v2677 = vshrl.u32 %v2676, 7
  %v2678 = vsub.s32 1, %v2677
  %v2679 = vrot.slane %v2670, %v2678
  %v2680 = vlaneseq
  %v2681 = vshrl.u32 %v2680, 7
  %v2682 = vsub.s32 2, %v2681
  %v2683 = vrot.slane %v2670, %v2682
  %v2684 = vlaneseq
  %v2685 = vshrl.u32 %v2684, 7
  %v2686 = vsub.s32 3, %v2685
  %v2687 = vrot.slane %v2670, %v2686
  %v2688 = vlaneseq
  %v2689 = vshrl.u32 %v2688, 7
  %v2690 = vsub.s32 4, %v2689
  %v2691 = vrot.slane %v2670, %v2690
  %v2692 = vlaneseq
  %v2693 = vshrl.u32 %v2692, 7
  %v2694 = vsub.s32 5, %v2693
  %v2695 = vrot.slane %v2670, %v2694
  %v2846 = vunpack.c.l.b16 %v2526
  %v2847 = vunpack.c.h.b16 %v2526
  %v2848 = vunpack.c.l.b16 %v2527
  %v2849 = vunpack.c.h.b16 %v2527
  %v2850 = vunpack.c.l.b16 %v2528
  %v2851 = vunpack.c.h.b16 %v2528
  %v2852 = vunpack.c.l.b16 %v2529
  %v2853 = vunpack.c.h.b16 %v2529
  %v2854 = vunpack.c.l.b16 %v2530
  %v2855 = vunpack.c.h.b16 %v2530
  %v2856 = vunpack.c.l.b16 %v2531
  %v2857 = vunpack.c.h.b16 %v2531
  %v2858 = vunpack.c.l.b16 %v2532
  %v2859 = vunpack.c.h.b16 %v2532
  %v2860 = vunpack.c.l.b16 %v2533
  %v2861 = vunpack.c.h.b16 %v2533
  %v2862 = vunpack.c.l.b16 %v2534
  %v2863 = vunpack.c.h.b16 %v2534
  %v2864 = vunpack.c.l.b16 %v2535
  %v2865 = vunpack.c.h.b16 %v2535
  %v2866 = vunpack.c.l.b16 %v2536
  %v2867 = vunpack.c.h.b16 %v2536
  %v2868 = vunpack.c.l.b16 %v2537
  %v2869 = vunpack.c.h.b16 %v2537
  %v2870 = vunpack.c.l.b16 %v2538
  %v2871 = vunpack.c.h.b16 %v2538
  %v2872 = vunpack.c.l.b16 %v2539
  %v2873 = vunpack.c.h.b16 %v2539
  %v2874 = vunpack.c.l.b16 %v2540
  %v2875 = vunpack.c.h.b16 %v2540
  %v2876 = vunpack.c.l.b16 %v2541
  %v2877 = vunpack.c.h.b16 %v2541
  %v2878 = vunpack.c.l.b16 %v2542
  %v2879 = vunpack.c.h.b16 %v2542
  %v2880 = vunpack.c.l.b16 %v2543
  %v2881 = vunpack.c.h.b16 %v2543
  %v2882 = vunpack.c.l.b16 %v2544
  %v2883 = vunpack.c.h.b16 %v2544
  %v2884 = vunpack.c.l.b16 %v2545
  %v2885 = vunpack.c.h.b16 %v2545
  %v2886 = vunpack.c.l.b16 %v2546
  %v2887 = vunpack.c.h.b16 %v2546
  %v2888 = vunpack.c.l.b16 %v2547
  %v2889 = vunpack.c.h.b16 %v2547
  %v2890 = vunpack.c.l.b16 %v2548
  %v2891 = vunpack.c.h.b16 %v2548
  %v2892 = vunpack.c.l.b16 %v2549
  %v2893 = vunpack.c.h.b16 %v2549
  %v2894 = vunpack.c.l.b16 %v2550
  %v2895 = vunpack.c.h.b16 %v2550
  %v2896 = vunpack.c.l.b16 %v2551
  %v2897 = vunpack.c.h.b16 %v2551
  %v2898 = vunpack.c.l.b16 %v2552
  %v2899 = vunpack.c.h.b16 %v2552
  %v2900 = vunpack.c.l.b16 %v2553
  %v2901 = vunpack.c.h.b16 %v2553
  %v2902 = vunpack.c.l.b16 %v2554
  %v2903 = vunpack.c.h.b16 %v2554
  %v2904 = vunpack.c.l.b16 %v2555
  %v2905 = vunpack.c.h.b16 %v2555
  %v2906 = vunpack.c.l.b16 %v2556
  %v2907 = vunpack.c.h.b16 %v2556
  %v2908 = vunpack.c.l.b16 %v2557
  %v2909 = vunpack.c.h.b16 %v2557
  %v2910 = vunpack.c.l.b16 %v2558
  %v2911 = vunpack.c.h.b16 %v2558
  %v2912 = vunpack.c.l.b16 %v2559
  %v2913 = vunpack.c.h.b16 %v2559
  %v2914 = vunpack.c.l.b16 %v2560
  %v2915 = vunpack.c.h.b16 %v2560
  %v2916 = vunpack.c.l.b16 %v2561
  %v2917 = vunpack.c.h.b16 %v2561
  %v2918 = vunpack.c.l.b16 %v2562
  %v2919 = vunpack.c.h.b16 %v2562
  %v2920 = vunpack.c.l.b16 %v2563
  %v2921 = vunpack.c.h.b16 %v2563
  %v2922 = vunpack.c.l.b16 %v2564
  %v2923 = vunpack.c.h.b16 %v2564
  %v2924 = vunpack.c.l.b16 %v2565
  %v2925 = vunpack.c.h.b16 %v2565
  %v2926 = vunpack.c.l.b16 %v2566
  %v2927 = vunpack.c.h.b16 %v2566
  %v2928 = vunpack.c.l.b16 %v2567
  %v2929 = vunpack.c.h.b16 %v2567
  %v2930 = vunpack.c.l.b16 %v2568
  %v2931 = vunpack.c.h.b16 %v2568
  %v2932 = vunpack.c.l.b16 %v2569
  %v2933 = vunpack.c.h.b16 %v2569
  %v2934 = vunpack.c.l.b16 %v2570
  %v2935 = vunpack.c.h.b16 %v2570
  %v2936 = vunpack.c.l.b16 %v2571
  %v2937 = vunpack.c.h.b16 %v2571
  %v2938 = vunpack.c.l.b16 %v2572
  %v2939 = vunpack.c.h.b16 %v2572
  %v2940 = vunpack.c.l.b16 %v2573
  %v2941 = vunpack.c.h.b16 %v2573
  %v2942 = vunpack.c.l.b16 %v2574
  %v2943 = vunpack.c.h.b16 %v2574
  %v2944 = vunpack.c.l.b16 %v2575
  %v2945 = vunpack.c.h.b16 %v2575
  %v2946 = vunpack.c.l.b16 %v2576
  %v2947 = vunpack.c.h.b16 %v2576
  %v2948 = vunpack.c.l.b16 %v2577
  %v2949 = vunpack.c.h.b16 %v2577
  %v2950 = vunpack.c.l.b16 %v2578
  %v2951 = vunpack.c.h.b16 %v2578
  %v2952 = vunpack.c.l.b16 %v2579
  %v2953 = vunpack.c.h.b16 %v2579
  %v2954 = vunpack.c.l.b16 %v2580
  %v2955 = vunpack.c.h.b16 %v2580
  %v2956 = vunpack.c.l.b16 %v2581
  %v2957 = vunpack.c.h.b16 %v2581
  %v2958 = vunpack.c.l.b16 %v2582
  %v2959 = vunpack.c.h.b16 %v2582
  %v2960 = vunpack.c.l.b16 %v2583
  %v2961 = vunpack.c.h.b16 %v2583
  %v2962 = vunpack.c.l.b16 %v2584
  %v2963 = vunpack.c.h.b16 %v2584
  %v2964 = vunpack.c.l.b16 %v2585
  %v2965 = vunpack.c.h.b16 %v2585
  %v2966 = vunpack.c.l.b16 %v2586
  %v2967 = vunpack.c.h.b16 %v2586
  %v2968 = vunpack.c.l.b16 %v2587
  %v2969 = vunpack.c.h.b16 %v2587
  %v2970 = vunpack.c.l.b16 %v2588
  %v2971 = vunpack.c.h.b16 %v2588
  %v2972 = vunpack.c.l.b16 %v2589
  %v2973 = vunpack.c.h.b16 %v2589
  %v2974 = vunpack.c.l.b16 %v2590
  %v2975 = vunpack.c.h.b16 %v2590
  %v2976 = vunpack.c.l.b16 %v2591
  %v2977 = vunpack.c.h.b16 %v2591
  %v2978 = vunpack.c.l.b16 %v2592
  %v2979 = vunpack.c.h.b16 %v2592
  %v2980 = vunpack.c.l.b16 %v2593
  %v2981 = vunpack.c.h.b16 %v2593
  %v2982 = vunpack.c.l.b16 %v2594
  %v2983 = vunpack.c.h.b16 %v2594
  %v2984 = vunpack.c.l.b16 %v2595
  %v2985 = vunpack.c.h.b16 %v2595
  %v2986 = vunpack.c.l.b16 %v2596
  %v2987 = vunpack.c.h.b16 %v2596
  %v2988 = vunpack.c.l.b16 %v2597
  %v2989 = vunpack.c.h.b16 %v2597
  %v2990 = vunpack.c.l.b16 %v2598
  %v2991 = vunpack.c.h.b16 %v2598
  %v2992 = vunpack.c.l.b16 %v2599
  %v2993 = vunpack.c.h.b16 %v2599
  %v2994 = vunpack.c.l.b16 %v2600
  %v2995 = vunpack.c.h.b16 %v2600
  %v2996 = vunpack.c.l.b16 %v2601
  %v2997 = vunpack.c.h.b16 %v2601
  %v2998 = vunpack.c.l.b16 %v2602
  %v2999 = vunpack.c.h.b16 %v2602
  %v3000 = vunpack.c.l.b16 %v2603
  %v3001 = vunpack.c.h.b16 %v2603
  %v3002 = vunpack.c.l.b16 %v2604
  %v3003 = vunpack.c.h.b16 %v2604
  %v3004 = vunpack.c.l.b16 %v2605
  %v3005 = vunpack.c.h.b16 %v2605
  %v3006 = vunpack.c.l.b16 %v2606
  %v3007 = vunpack.c.h.b16 %v2606
  %v3008 = vunpack.c.l.b16 %v2607
  %v3009 = vunpack.c.h.b16 %v2607
  %v3010 = vunpack.c.l.b16 %v2608
  %v3011 = vunpack.c.h.b16 %v2608
  %v3012 = vunpack.c.l.b16 %v2609
  %v3013 = vunpack.c.h.b16 %v2609
  %v3014 = vunpack.c.l.b16 %v2610
  %v3015 = vunpack.c.h.b16 %v2610
  %v3016 = vunpack.c.l.b16 %v2611
  %v3017 = vunpack.c.h.b16 %v2611
  %v3018 = vunpack.c.l.b16 %v2612
  %v3019 = vunpack.c.h.b16 %v2612
  %v3020 = vunpack.c.l.b16 %v2613
  %v3021 = vunpack.c.h.b16 %v2613
  %v3022 = vunpack.c.l.b16 %v2614
  %v3023 = vunpack.c.h.b16 %v2614
  %v3024 = vunpack.c.l.b16 %v2615
  %v3025 = vunpack.c.h.b16 %v2615
  %v3026 = vunpack.c.l.b16 %v2616
  %v3027 = vunpack.c.h.b16 %v2616
  %v3028 = vunpack.c.l.b16 %v2617
  %v3029 = vunpack.c.h.b16 %v2617
  %v3030 = vunpack.c.l.b16 %v2618
  %v3031 = vunpack.c.h.b16 %v2618
  %v3032 = vunpack.c.l.b16 %v2619
  %v3033 = vunpack.c.h.b16 %v2619
  %v3034 = vunpack.c.l.b16 %v2620
  %v3035 = vunpack.c.h.b16 %v2620
  %v3036 = vunpack.c.l.b16 %v2621
  %v3037 = vunpack.c.h.b16 %v2621
  %v3038 = vunpack.c.l.b16 %v2622
  %v3039 = vunpack.c.h.b16 %v2622
  %v3040 = vunpack.c.l.b16 %v2623
  %v3041 = vunpack.c.h.b16 %v2623
  %v3042 = vunpack.c.l.b16 %v2624
  %v3043 = vunpack.c.h.b16 %v2624
  %v3044 = vunpack.c.l.b16 %v2625
  %v3045 = vunpack.c.h.b16 %v2625
  %v3046 = vunpack.c.l.b16 %v2626
  %v3047 = vunpack.c.h.b16 %v2626
  %v3048 = vunpack.c.l.b16 %v2627
  %v3049 = vunpack.c.h.b16 %v2627
  %v3050 = vunpack.c.l.b16 %v2628
  %v3051 = vunpack.c.h.b16 %v2628
  %v3052 = vunpack.c.l.b16 %v2629
  %v3053 = vunpack.c.h.b16 %v2629
  %v3054 = vunpack.c.l.b16 %v2630
  %v3055 = vunpack.c.h.b16 %v2630
  %v3056 = vunpack.c.l.b16 %v2631
  %v3057 = vunpack.c.h.b16 %v2631
  %v3058 = vunpack.c.l.b16 %v2632
  %v3059 = vunpack.c.h.b16 %v2632
  %v3060 = vunpack.c.l.b16 %v2633
  %v3061 = vunpack.c.h.b16 %v2633
  %v3062 = vunpack.c.l.b16 %v2634
  %v3063 = vunpack.c.h.b16 %v2634
  %v3064 = vunpack.c.l.b16 %v2635
  %v3065 = vunpack.c.h.b16 %v2635
  %v3066 = vunpack.c.l.b16 %v2636
  %v3067 = vunpack.c.h.b16 %v2636
  %v3068 = vunpack.c.l.b16 %v2637
  %v3069 = vunpack.c.h.b16 %v2637
  %v3070 = vunpack.c.l.b16 %v2638
  %v3071 = vunpack.c.h.b16 %v2638
  %v3072 = vunpack.c.l.b16 %v2639
  %v3073 = vunpack.c.h.b16 %v2639
  %v3074 = vunpack.c.l.b16 %v2640
  %v3075 = vunpack.c.h.b16 %v2640
  %v3076 = vunpack.c.l.b16 %v2641
  %v3077 = vunpack.c.h.b16 %v2641
  %v3078 = vunpack.c.l.b16 %v2642
  %v3079 = vunpack.c.h.b16 %v2642
  %v3080 = vunpack.c.l.b16 %v2643
  %v3081 = vunpack.c.h.b16 %v2643
  %v3082 = vunpack.c.l.b16 %v2644
  %v3083 = vunpack.c.h.b16 %v2644
  %v3084 = vunpack.c.l.b16 %v2645
  %v3085 = vunpack.c.h.b16 %v2645
  %v3086 = vunpack.c.l.b16 %v2646
  %v3087 = vunpack.c.h.b16 %v2646
  %v3088 = vunpack.c.l.b16 %v2647
  %v3089 = vunpack.c.h.b16 %v2647
  %v3090 = vunpack.c.l.b16 %v2648
  %v3091 = vunpack.c.h.b16 %v2648
  %v3092 = vunpack.c.l.b16 %v2649
  %v3093 = vunpack.c.h.b16 %v2649
  %v3094 = vunpack.c.l.b16 %v2650
  %v3095 = vunpack.c.h.b16 %v2650
  %v3096 = vunpack.c.l.b16 %v2651
  %v3097 = vunpack.c.h.b16 %v2651
  %v3098 = vunpack.c.l.b16 %v2652
  %v3099 = vunpack.c.h.b16 %v2652
  %v3100 = vunpack.c.l.b16 %v2653
  %v3101 = vunpack.c.h.b16 %v2653
  %v3102 = vunpack.c.l.b16 %v2654
  %v3103 = vunpack.c.h.b16 %v2654
  %v3104 = vunpack.c.l.b16 %v2655
  %v3105 = vunpack.c.h.b16 %v2655
  %v3106 = vunpack.c.l.b16 %v2656
  %v3107 = vunpack.c.h.b16 %v2656
  %v3108 = vunpack.c.l.b16 %v2657
  %v3109 = vunpack.c.h.b16 %v2657
  %v3110 = vunpack.c.l.b16 %v2658
  %v3111 = vunpack.c.h.b16 %v2658
  %v3112 = vunpack.c.l.b16 %v2659
  %v3113 = vunpack.c.h.b16 %v2659
  %v3114 = vunpack.c.l.b16 %v2660
  %v3115 = vunpack.c.h.b16 %v2660
  %v3116 = vunpack.c.l.b16 %v2661
  %v3117 = vunpack.c.h.b16 %v2661
  %v3118 = vunpack.c.l.b16 %v2662
  %v3119 = vunpack.c.h.b16 %v2662
  %v3120 = vunpack.c.l.b16 %v2663
  %v3121 = vunpack.c.h.b16 %v2663
  %v3122 = vunpack.c.l.b16 %v2664
  %v3123 = vunpack.c.h.b16 %v2664
  %v3124 = vunpack.c.l.b16 %v2665
  %v3125 = vunpack.c.h.b16 %v2665
  %v3126 = vunpack.c.l.b16 %v2666
  %v3127 = vunpack.c.h.b16 %v2666
  %v3128 = vunpack.c.l.b16 %v2667
  %v3129 = vunpack.c.h.b16 %v2667
  %v3130 = vunpack.c.l.b16 %v2668
  %v3131 = vunpack.c.h.b16 %v2668
  %v3132 = vunpack.c.l.b16 %v2669
  %v3133 = vunpack.c.h.b16 %v2669
  %v3134 = vpack.c.b16 %v2852, %v2846
  %v3135 = vpack.c.b16 %v2853, %v2847
  %v3136 = vpack.c.b16 %v2854, %v2848
  %v3137 = vpack.c.b16 %v2855, %v2849
  %v3138 = vpack.c.b16 %v2856, %v2850
  %v3139 = vpack.c.b16 %v2857, %v2851
  %v3140 = vpack.c.b16 %v2864, %v2858
  %v3141 = vpack.c.b16 %v2865, %v2859
  %v3142 = vpack.c.b16 %v2866, %v2860
  %v3143 = vpack.c.b16 %v2867, %v2861
  %v3144 = vpack.c.b16 %v2868, %v2862
  %v3145 = vpack.c.b16 %v2869, %v2863
  %v3146 = vpack.c.b16 %v2876, %v2870
  %v3147 = vpack.c.b16 %v2877, %v2871
  %v3148 = vpack.c.b16 %v2878, %v2872
  %v3149 = vpack.c.b16 %v2879, %v2873
  %v3150 = vpack.c.b16 %v2880, %v2874
  %v3151 = vpack.c.b16 %v2881, %v2875
  %v3152 = vpack.c.b16 %v2888, %v2882
  %v3153 = vpack.c.b16 %v2889, %v2883
  %v3154 = vpack.c.b16 %v2890, %v2884
  %v3155 = vpack.c.b16 %v2891, %v2885
  %v3156 = vpack.c.b16 %v2892, %v2886
  %v3157 = vpack.c.b16 %v2893, %v2887
  %v3158 = vpack.c.b16 %v2900, %v2894
  %v3159 = vpack.c.b16 %v2901, %v2895
  %v3160 = vpack.c.b16 %v2902, %v2896
  %v3161 = vpack.c.b16 %v2903, %v2897
  %v3162 = vpack.c.b16 %v2904, %v2898
  %v3163 = vpack.c.b16 %v2905, %v2899
  %v3164 = vpack.c.b16 %v2912, %v2906
  %v3165 = vpack.c.b16 %v2913, %v2907
  %v3166 = vpack.c.b16 %v2914, %v2908
  %v3167 = vpack.c.b16 %v2915, %v2909
  %v3168 = vpack.c.b16 %v2916, %v2910
  %v3169 = vpack.c.b16 %v2917, %v2911
  %v3170 = vpack.c.b16 %v2924, %v2918
  %v3171 = vpack.c.b16 %v2925, %v2919
  %v3172 = vpack.c.b16 %v2926, %v2920
  %v3173 = vpack.c.b16 %v2927, %v2921
  %v3174 = vpack.c.b16 %v2928, %v2922
  %v3175 = vpack.c.b16 %v2929, %v2923
  %v3176 = vpack.c.b16 %v2936, %v2930
  %v3177 = vpack.c.b16 %v2937, %v2931
  %v3178 = vpack.c.b16 %v2938, %v2932
  %v3179 = vpack.c.b16 %v2939, %v2933
  %v3180 = vpack.c.b16 %v2940, %v2934
  %v3181 = vpack.c.b16 %v2941, %v2935
  %v3182 = vpack.c.b16 %v2948, %v2942
  %v3183 = vpack.c.b16 %v2949, %v2943
  %v3184 = vpack.c.b16 %v2950, %v2944
  %v3185 = vpack.c.b16 %v2951, %v2945
  %v3186 = vpack.c.b16 %v2952, %v2946
  %v3187 = vpack.c.b16 %v2953, %v2947
  %v3188 = vpack.c.b16 %v2960, %v2954
  %v3189 = vpack.c.b16 %v2961, %v2955
  %v3190 = vpack.c.b16 %v2962, %v2956
  %v3191 = vpack.c.b16 %v2963, %v2957
  %v3192 = vpack.c.b16 %v2964, %v2958
  %v3193 = vpack.c.b16 %v2965, %v2959
  %v3194 = vpack.c.b16 %v2972, %v2966
  %v3195 = vpack.c.b16 %v2973, %v2967
  %v3196 = vpack.c.b16 %v2974, %v2968
  %v3197 = vpack.c.b16 %v2975, %v2969
  %v3198 = vpack.c.b16 %v2976, %v2970
  %v3199 = vpack.c.b16 %v2977, %v2971
  %v3200 = vpack.c.b16 %v2984, %v2978
  %v3201 = vpack.c.b16 %v2985, %v2979
  %v3202 = vpack.c.b16 %v2986, %v2980
  %v3203 = vpack.c.b16 %v2987, %v2981
  %v3204 = vpack.c.b16 %v2988, %v2982
  %v3205 = vpack.c.b16 %v2989, %v2983
  %v3206 = vpack.c.b16 %v2996, %v2990
  %v3207 = vpack.c.b16 %v2997, %v2991
  %v3208 = vpack.c.b16 %v2998, %v2992
  %v3209 = vpack.c.b16 %v2999, %v2993
  %v3210 = vpack.c.b16 %v3000, %v2994
  %v3211 = vpack.c.b16 %v3001, %v2995
  %v3212 = vpack.c.b16 %v3008, %v3002
  %v3213 = vpack.c.b16 %v3009, %v3003
  %v3214 = vpack.c.b16 %v3010, %v3004
  %v3215 = vpack.c.b16 %v3011, %v3005
  %v3216 = vpack.c.b16 %v3012, %v3006
  %v3217 = vpack.c.b16 %v3013, %v3007
  %v3218 = vpack.c.b16 %v3020, %v3014
  %v3219 = vpack.c.b16 %v3021, %v3015
  %v3220 = vpack.c.b16 %v3022, %v3016
  %v3221 = vpack.c.b16 %v3023, %v3017
  %v3222 = vpack.c.b16 %v3024, %v3018
  %v3223 = vpack.c.b16 %v3025, %v3019
  %v3224 = vpack.c.b16 %v3032, %v3026
  %v3225 = vpack.c.b16 %v3033, %v3027
  %v3226 = vpack.c.b16 %v3034, %v3028
  %v3227 = vpack.c.b16 %v3035, %v3029
  %v3228 = vpack.c.b16 %v3036, %v3030
  %v3229 = vpack.c.b16 %v3037, %v3031
  %v3230 = vpack.c.b16 %v3044, %v3038
  %v3231 = vpack.c.b16 %v3045, %v3039
  %v3232 = vpack.c.b16 %v3046, %v3040
  %v3233 = vpack.c.b16 %v3047, %v3041
  %v3234 = vpack.c.b16 %v3048, %v3042
  %v3235 = vpack.c.b16 %v3049, %v3043
  %v3236 = vpack.c.b16 %v3056, %v3050
  %v3237 = vpack.c.b16 %v3057, %v3051
  %v3238 = vpack.c.b16 %v3058, %v3052
  %v3239 = vpack.c.b16 %v3059, %v3053
  %v3240 = vpack.c.b16 %v3060, %v3054
  %v3241 = vpack.c.b16 %v3061, %v3055
  %v3242 = vpack.c.b16 %v3068, %v3062
  %v3243 = vpack.c.b16 %v3069, %v3063
  %v3244 = vpack.c.b16 %v3070, %v3064
  %v3245 = vpack.c.b16 %v3071, %v3065
  %v3246 = vpack.c.b16 %v3072, %v3066
  %v3247 = vpack.c.b16 %v3073, %v3067
  %v3248 = vpack.c.b16 %v3080, %v3074
  %v3249 = vpack.c.b16 %v3081, %v3075
  %v3250 = vpack.c.b16 %v3082, %v3076
  %v3251 = vpack.c.b16 %v3083, %v3077
  %v3252 = vpack.c.b16 %v3084, %v3078
  %v3253 = vpack.c.b16 %v3085, %v3079
  %v3254 = vpack.c.b16 %v3092, %v3086
  %v3255 = vpack.c.b16 %v3093, %v3087
  %v3256 = vpack.c.b16 %v3094, %v3088
  %v3257 = vpack.c.b16 %v3095, %v3089
  %v3258 = vpack.c.b16 %v3096, %v3090
  %v3259 = vpack.c.b16 %v3097, %v3091
  %v3260 = vpack.c.b16 %v3104, %v3098
  %v3261 = vpack.c.b16 %v3105, %v3099
  %v3262 = vpack.c.b16 %v3106, %v3100
  %v3263 = vpack.c.b16 %v3107, %v3101
  %v3264 = vpack.c.b16 %v3108, %v3102
  %v3265 = vpack.c.b16 %v3109, %v3103
  %v3266 = vpack.c.b16 %v3116, %v3110
  %v3267 = vpack.c.b16 %v3117, %v3111
  %v3268 = vpack.c.b16 %v3118, %v3112
  %v3269 = vpack.c.b16 %v3119, %v3113
  %v3270 = vpack.c.b16 %v3120, %v3114
  %v3271 = vpack.c.b16 %v3121, %v3115
  %v3272 = vpack.c.b16 %v3128, %v3122
  %v3273 = vpack.c.b16 %v3129, %v3123
  %v3274 = vpack.c.b16 %v3130, %v3124
  %v3275 = vpack.c.b16 %v3131, %v3125
  %v3276 = vpack.c.b16 %v3132, %v3126
  %v3277 = vpack.c.b16 %v3133, %v3127
  %3422 = vmatprep.subr.bf16.mxu0 %v3177
  %3423 = vmatpush1.bf16.msra.mxu0 %v3176
  %3424 = vmatprep.subr.bf16.mxu0 %v3171
  %3425 = vmatpush1.bf16.msra.mxu0 %v3170
  %3426 = vmatprep.subr.bf16.mxu0 %v3165
  %3427 = vmatpush1.bf16.msra.mxu0 %v3164
  %3428 = vmatprep.subr.bf16.mxu0 %v3159
  %3429 = vmatpush1.bf16.msra.mxu0 %v3158
  %3430 = vmatprep.subr.bf16.mxu0 %v3153
  %3431 = vmatpush1.bf16.msra.mxu0 %v3152
  %3432 = vmatprep.subr.bf16.mxu0 %v3147
  %3433 = vmatpush1.bf16.msra.mxu0 %v3146
  %3434 = vmatprep.subr.bf16.mxu0 %v3141
  %3435 = vmatpush1.bf16.msra.mxu0 %v3140
  %3436 = vmatprep.subr.bf16.mxu0 %v3135
  %3437 = vmatpush1.bf16.msra.mxu0 %v3134
  %3438 = vmatprep.subr.bf16.mxu0 %v3225
  %3439 = vmatpush2.bf16.msra.mxu0 %v3224
  %3440 = vmatprep.subr.bf16.mxu0 %v3219
  %3441 = vmatpush2.bf16.msra.mxu0 %v3218
  %3442 = vmatprep.subr.bf16.mxu0 %v3213
  %3443 = vmatpush2.bf16.msra.mxu0 %v3212
  %3444 = vmatprep.subr.bf16.mxu0 %v3207
  %3445 = vmatpush2.bf16.msra.mxu0 %v3206
  %3446 = vmatprep.subr.bf16.mxu0 %v3201
  %3447 = vmatpush2.bf16.msra.mxu0 %v3200
  %3448 = vmatprep.subr.bf16.mxu0 %v3195
  %3449 = vmatpush2.bf16.msra.mxu0 %v3194
  %3450 = vmatprep.subr.bf16.mxu0 %v3189
  %3451 = vmatpush2.bf16.msra.mxu0 %v3188
  %3452 = vmatprep.subr.bf16.mxu0 %v3183
  %3453 = vmatpush2.bf16.msra.mxu0 %v3182
  %3454 = vmatprep.mubr.bf16.mxu0 %v2524
  %3455 = vmatmul.mubr.bf16.gmra.mxu0 %v2523
  %v3456 = vpop.f32.mrf.mxu0
  %v3457 = vadd.f32 %v2675, %v3456
  %v3458 = vpop.f32.mrf.mxu0
  %v3459 = vadd.f32 %v2679, %v3458
  %v3460 = vpop.f32.mrf.mxu0
  %v3461 = vadd.f32 %v2675, %v3460
  %v3462 = vpop.f32.mrf.mxu0
  %v3463 = vadd.f32 %v2679, %v3462
  %3464 = vdwg.mxu0
  %3465 = vmatprep.subr.bf16.mxu0 %v3273
  %3466 = vmatpush1.bf16.msra.mxu0 %v3272
  %3467 = vmatprep.subr.bf16.mxu0 %v3267
  %3468 = vmatpush1.bf16.msra.mxu0 %v3266
  %3469 = vmatprep.subr.bf16.mxu0 %v3261
  %3470 = vmatpush1.bf16.msra.mxu0 %v3260
  %3471 = vmatprep.subr.bf16.mxu0 %v3255
  %3472 = vmatpush1.bf16.msra.mxu0 %v3254
  %3473 = vmatprep.subr.bf16.mxu0 %v3249
  %3474 = vmatpush1.bf16.msra.mxu0 %v3248
  %3475 = vmatprep.subr.bf16.mxu0 %v3243
  %3476 = vmatpush1.bf16.msra.mxu0 %v3242
  %3477 = vmatprep.subr.bf16.mxu0 %v3237
  %3478 = vmatpush1.bf16.msra.mxu0 %v3236
  %3479 = vmatprep.subr.bf16.mxu0 %v3231
  %3480 = vmatpush1.bf16.msra.mxu0 %v3230
  %3481 = vmatprep.subr.bf16.mxu0 0
  %3482 = vmatpush2.bf16.msra.mxu0 0
  %3483 = vmatprep.subr.bf16.mxu0 0
  %3484 = vmatpush2.bf16.msra.mxu0 0
  %3485 = vmatprep.subr.bf16.mxu0 0
  %3486 = vmatpush2.bf16.msra.mxu0 0
  %3487 = vmatprep.subr.bf16.mxu0 0
  %3488 = vmatpush2.bf16.msra.mxu0 0
  %3489 = vmatprep.subr.bf16.mxu0 0
  %3490 = vmatpush2.bf16.msra.mxu0 0
  %3491 = vmatprep.subr.bf16.mxu0 0
  %3492 = vmatpush2.bf16.msra.mxu0 0
  %3493 = vmatprep.subr.bf16.mxu0 0
  %3494 = vmatpush2.bf16.msra.mxu0 0
  %3495 = vmatprep.subr.bf16.mxu0 0
  %3496 = vmatpush2.bf16.msra.mxu0 0
  %3497 = vmatprep.mubr.bf16.mxu0 0
  %3498 = vmatmul.mubr.bf16.gmra.mxu0 %v2525
  %v3499 = vpop.f32.mrf.mxu0
  %v3500 = vadd.f32 %v3457, %v3499
  %v3501 = vpop.f32.mrf.mxu0
  %v3502 = vadd.f32 %v3459, %v3501
  %v3503 = vpop.f32.mrf.mxu0
  %v3504 = vadd.f32 %v3461, %v3503
  %v3505 = vpop.f32.mrf.mxu0
  %v3506 = vadd.f32 %v3463, %v3505
  %3507 = vdwg.mxu0
  %3508 = vmatprep.subr.bf16.mxu0 %v3179
  %3509 = vmatpush1.bf16.msra.mxu0 %v3178
  %3510 = vmatprep.subr.bf16.mxu0 %v3173
  %3511 = vmatpush1.bf16.msra.mxu0 %v3172
  %3512 = vmatprep.subr.bf16.mxu0 %v3167
  %3513 = vmatpush1.bf16.msra.mxu0 %v3166
  %3514 = vmatprep.subr.bf16.mxu0 %v3161
  %3515 = vmatpush1.bf16.msra.mxu0 %v3160
  %3516 = vmatprep.subr.bf16.mxu0 %v3155
  %3517 = vmatpush1.bf16.msra.mxu0 %v3154
  %3518 = vmatprep.subr.bf16.mxu0 %v3149
  %3519 = vmatpush1.bf16.msra.mxu0 %v3148
  %3520 = vmatprep.subr.bf16.mxu0 %v3143
  %3521 = vmatpush1.bf16.msra.mxu0 %v3142
  %3522 = vmatprep.subr.bf16.mxu0 %v3137
  %3523 = vmatpush1.bf16.msra.mxu0 %v3136
  %3524 = vmatprep.subr.bf16.mxu0 %v3227
  %3525 = vmatpush2.bf16.msra.mxu0 %v3226
  %3526 = vmatprep.subr.bf16.mxu0 %v3221
  %3527 = vmatpush2.bf16.msra.mxu0 %v3220
  %3528 = vmatprep.subr.bf16.mxu0 %v3215
  %3529 = vmatpush2.bf16.msra.mxu0 %v3214
  %3530 = vmatprep.subr.bf16.mxu0 %v3209
  %3531 = vmatpush2.bf16.msra.mxu0 %v3208
  %3532 = vmatprep.subr.bf16.mxu0 %v3203
  %3533 = vmatpush2.bf16.msra.mxu0 %v3202
  %3534 = vmatprep.subr.bf16.mxu0 %v3197
  %3535 = vmatpush2.bf16.msra.mxu0 %v3196
  %3536 = vmatprep.subr.bf16.mxu0 %v3191
  %3537 = vmatpush2.bf16.msra.mxu0 %v3190
  %3538 = vmatprep.subr.bf16.mxu0 %v3185
  %3539 = vmatpush2.bf16.msra.mxu0 %v3184
  %3540 = vmatprep.mubr.bf16.mxu0 %v2524
  %3541 = vmatmul.mubr.bf16.gmra.mxu0 %v2523
  %v3542 = vpop.f32.mrf.mxu0
  %v3543 = vadd.f32 %v2683, %v3542
  %v3544 = vpop.f32.mrf.mxu0
  %v3545 = vadd.f32 %v2687, %v3544
  %v3546 = vpop.f32.mrf.mxu0
  %v3547 = vadd.f32 %v2683, %v3546
  %v3548 = vpop.f32.mrf.mxu0
  %v3549 = vadd.f32 %v2687, %v3548
  %3550 = vdwg.mxu0
  %3551 = vmatprep.subr.bf16.mxu0 %v3275
  %3552 = vmatpush1.bf16.msra.mxu0 %v3274
  %3553 = vmatprep.subr.bf16.mxu0 %v3269
  %3554 = vmatpush1.bf16.msra.mxu0 %v3268
  %3555 = vmatprep.subr.bf16.mxu0 %v3263
  %3556 = vmatpush1.bf16.msra.mxu0 %v3262
  %3557 = vmatprep.subr.bf16.mxu0 %v3257
  %3558 = vmatpush1.bf16.msra.mxu0 %v3256
  %3559 = vmatprep.subr.bf16.mxu0 %v3251
  %3560 = vmatpush1.bf16.msra.mxu0 %v3250
  %3561 = vmatprep.subr.bf16.mxu0 %v3245
  %3562 = vmatpush1.bf16.msra.mxu0 %v3244
  %3563 = vmatprep.subr.bf16.mxu0 %v3239
  %3564 = vmatpush1.bf16.msra.mxu0 %v3238
  %3565 = vmatprep.subr.bf16.mxu0 %v3233
  %3566 = vmatpush1.bf16.msra.mxu0 %v3232
  %3567 = vmatprep.subr.bf16.mxu0 0
  %3568 = vmatpush2.bf16.msra.mxu0 0
  %3569 = vmatprep.subr.bf16.mxu0 0
  %3570 = vmatpush2.bf16.msra.mxu0 0
  %3571 = vmatprep.subr.bf16.mxu0 0
  %3572 = vmatpush2.bf16.msra.mxu0 0
  %3573 = vmatprep.subr.bf16.mxu0 0
  %3574 = vmatpush2.bf16.msra.mxu0 0
  %3575 = vmatprep.subr.bf16.mxu0 0
  %3576 = vmatpush2.bf16.msra.mxu0 0
  %3577 = vmatprep.subr.bf16.mxu0 0
  %3578 = vmatpush2.bf16.msra.mxu0 0
  %3579 = vmatprep.subr.bf16.mxu0 0
  %3580 = vmatpush2.bf16.msra.mxu0 0
  %3581 = vmatprep.subr.bf16.mxu0 0
  %3582 = vmatpush2.bf16.msra.mxu0 0
  %3583 = vmatprep.mubr.bf16.mxu0 0
  %3584 = vmatmul.mubr.bf16.gmra.mxu0 %v2525
  %v3585 = vpop.f32.mrf.mxu0
  %v3586 = vadd.f32 %v3543, %v3585
  %v3587 = vpop.f32.mrf.mxu0
  %v3588 = vadd.f32 %v3545, %v3587
  %v3589 = vpop.f32.mrf.mxu0
  %v3590 = vadd.f32 %v3547, %v3589
  %v3591 = vpop.f32.mrf.mxu0
  %v3592 = vadd.f32 %v3549, %v3591
  %3593 = vdwg.mxu0
  %3594 = vmatprep.subr.bf16.mxu0 %v3181
  %3595 = vmatpush1.bf16.msra.mxu0 %v3180
  %3596 = vmatprep.subr.bf16.mxu0 %v3175
  %3597 = vmatpush1.bf16.msra.mxu0 %v3174
  %3598 = vmatprep.subr.bf16.mxu0 %v3169
  %3599 = vmatpush1.bf16.msra.mxu0 %v3168
  %3600 = vmatprep.subr.bf16.mxu0 %v3163
  %3601 = vmatpush1.bf16.msra.mxu0 %v3162
  %3602 = vmatprep.subr.bf16.mxu0 %v3157
  %3603 = vmatpush1.bf16.msra.mxu0 %v3156
  %3604 = vmatprep.subr.bf16.mxu0 %v3151
  %3605 = vmatpush1.bf16.msra.mxu0 %v3150
  %3606 = vmatprep.subr.bf16.mxu0 %v3145
  %3607 = vmatpush1.bf16.msra.mxu0 %v3144
  %3608 = vmatprep.subr.bf16.mxu0 %v3139
  %3609 = vmatpush1.bf16.msra.mxu0 %v3138
  %3610 = vmatprep.subr.bf16.mxu0 %v3229
  %3611 = vmatpush2.bf16.msra.mxu0 %v3228
  %3612 = vmatprep.subr.bf16.mxu0 %v3223
  %3613 = vmatpush2.bf16.msra.mxu0 %v3222
  %3614 = vmatprep.subr.bf16.mxu0 %v3217
  %3615 = vmatpush2.bf16.msra.mxu0 %v3216
  %3616 = vmatprep.subr.bf16.mxu0 %v3211
  %3617 = vmatpush2.bf16.msra.mxu0 %v3210
  %3618 = vmatprep.subr.bf16.mxu0 %v3205
  %3619 = vmatpush2.bf16.msra.mxu0 %v3204
  %3620 = vmatprep.subr.bf16.mxu0 %v3199
  %3621 = vmatpush2.bf16.msra.mxu0 %v3198
  %3622 = vmatprep.subr.bf16.mxu0 %v3193
  %3623 = vmatpush2.bf16.msra.mxu0 %v3192
  %3624 = vmatprep.subr.bf16.mxu0 %v3187
  %3625 = vmatpush2.bf16.msra.mxu0 %v3186
  %3626 = vmatprep.mubr.bf16.mxu0 %v2524
  %3627 = vmatmul.mubr.bf16.gmra.mxu0 %v2523
  %v3628 = vpop.f32.mrf.mxu0
  %v3629 = vadd.f32 %v2691, %v3628
  %v3630 = vpop.f32.mrf.mxu0
  %v3631 = vadd.f32 %v2695, %v3630
  %v3632 = vpop.f32.mrf.mxu0
  %v3633 = vadd.f32 %v2691, %v3632
  %v3634 = vpop.f32.mrf.mxu0
  %v3635 = vadd.f32 %v2695, %v3634
  %3636 = vdwg.mxu0
  %3637 = vmatprep.subr.bf16.mxu0 %v3277
  %3638 = vmatpush1.bf16.msra.mxu0 %v3276
  %3639 = vmatprep.subr.bf16.mxu0 %v3271
  %3640 = vmatpush1.bf16.msra.mxu0 %v3270
  %3641 = vmatprep.subr.bf16.mxu0 %v3265
  %3642 = vmatpush1.bf16.msra.mxu0 %v3264
  %3643 = vmatprep.subr.bf16.mxu0 %v3259
  %3644 = vmatpush1.bf16.msra.mxu0 %v3258
  %3645 = vmatprep.subr.bf16.mxu0 %v3253
  %3646 = vmatpush1.bf16.msra.mxu0 %v3252
  %3647 = vmatprep.subr.bf16.mxu0 %v3247
  %3648 = vmatpush1.bf16.msra.mxu0 %v3246
  %3649 = vmatprep.subr.bf16.mxu0 %v3241
  %3650 = vmatpush1.bf16.msra.mxu0 %v3240
  %3651 = vmatprep.subr.bf16.mxu0 %v3235
  %3652 = vmatpush1.bf16.msra.mxu0 %v3234
  %3653 = vmatprep.subr.bf16.mxu0 0
  %3654 = vmatpush2.bf16.msra.mxu0 0
  %3655 = vmatprep.subr.bf16.mxu0 0
  %3656 = vmatpush2.bf16.msra.mxu0 0
  %3657 = vmatprep.subr.bf16.mxu0 0
  %3658 = vmatpush2.bf16.msra.mxu0 0
  %3659 = vmatprep.subr.bf16.mxu0 0
  %3660 = vmatpush2.bf16.msra.mxu0 0
  %3661 = vmatprep.subr.bf16.mxu0 0
  %3662 = vmatpush2.bf16.msra.mxu0 0
  %3663 = vmatprep.subr.bf16.mxu0 0
  %3664 = vmatpush2.bf16.msra.mxu0 0
  %3665 = vmatprep.subr.bf16.mxu0 0
  %3666 = vmatpush2.bf16.msra.mxu0 0
  %3667 = vmatprep.subr.bf16.mxu0 0
  %3668 = vmatpush2.bf16.msra.mxu0 0
  %3669 = vmatprep.mubr.bf16.mxu0 0
  %3670 = vmatmul.mubr.bf16.gmra.mxu0 %v2525
  %v3671 = vpop.f32.mrf.mxu0
  %v3672 = vadd.f32 %v3629, %v3671
  %v3673 = vpop.f32.mrf.mxu0
  %v3674 = vadd.f32 %v3631, %v3673
  %v3675 = vpop.f32.mrf.mxu0
  %v3676 = vadd.f32 %v3633, %v3675
  %v3677 = vpop.f32.mrf.mxu0
  %v3678 = vadd.f32 %v3635, %v3677
  %3679 = vdwg.mxu0
  %vm3680 = vcmp.gt.f32.partialorder %v3500, 0.0
  %vm3681 = vcmp.gt.f32.partialorder %v3502, 0.0
  %vm3682 = vcmp.gt.f32.partialorder %v3586, 0.0
  %vm3683 = vcmp.gt.f32.partialorder %v3504, 0.0
  %vm3684 = vcmp.gt.f32.partialorder %v3506, 0.0
  %vm3685 = vcmp.gt.f32.partialorder %v3590, 0.0
  %v3686 = vmul.f32 %v3500, 0.01
  %v3687 = vmul.f32 %v3502, 0.01
  %v3688 = vmul.f32 %v3586, 0.01
  %v3689 = vmul.f32 %v3504, 0.01
  %v3690 = vmul.f32 %v3506, 0.01
  %v3691 = vmul.f32 %v3590, 0.01
  %v3692 = vsel %vm3680, %v3500, %v3686
  %v3693 = vsel %vm3681, %v3502, %v3687
  %v3694 = vsel %vm3682, %v3586, %v3688
  %v3695 = vsel %vm3683, %v3504, %v3689
  %v3696 = vsel %vm3684, %v3506, %v3690
  %v3697 = vsel %vm3685, %v3590, %v3691
  %v3698 = vxor.u32 %v3588, 2147483648
  %v3699 = vxor.u32 %v3672, 2147483648
  %v3700 = vxor.u32 %v3674, 2147483648
  %v3701 = vxor.u32 %v3592, 2147483648
  %v3702 = vxor.u32 %v3676, 2147483648
  %v3703 = vxor.u32 %v3678, 2147483648
  %v3704 = vmul.f32 %v3698, 1.442695
  %v3705 = vpow.pop %v3704
  %v3706 = vmul.f32 %v3699, 1.442695
  %v3707 = vpow.pop %v3706
  %v3708 = vmul.f32 %v3700, 1.442695
  %v3709 = vpow.pop %v3708
  %v3710 = vmul.f32 %v3701, 1.442695
  %v3711 = vpow.pop %v3710
  %v3712 = vmul.f32 %v3702, 1.442695
  %v3713 = vpow.pop %v3712
  %v3714 = vmul.f32 %v3703, 1.442695
  %v3715 = vpow.pop %v3714
  %v3716 = vadd.f32 %v3705, 1.0
  %v3717 = vadd.f32 %v3707, 1.0
  %v3718 = vadd.f32 %v3709, 1.0
  %v3719 = vadd.f32 %v3711, 1.0
  %v3720 = vadd.f32 %v3713, 1.0
  %v3721 = vadd.f32 %v3715, 1.0
  %v3722 = vrcp.pop %v3716
  %v3723 = vmul.f32 1.0, %v3722
  %v3724 = vrcp.pop %v3717
  %v3725 = vmul.f32 1.0, %v3724
  %v3726 = vrcp.pop %v3718
  %v3727 = vmul.f32 1.0, %v3726
  %v3728 = vrcp.pop %v3719
  %v3729 = vmul.f32 1.0, %v3728
  %v3730 = vrcp.pop %v3720
  %v3731 = vmul.f32 1.0, %v3730
  %v3732 = vrcp.pop %v3721
  %v3733 = vmul.f32 1.0, %v3732
  %v3734 = vmul.f32 %v3723, %v3692
  %v3735 = vmul.f32 %v3725, %v3693
  %v3736 = vmul.f32 %v3727, %v3694
  %v3737 = vmul.f32 %v3729, %v3695
  %v3738 = vmul.f32 %v3731, %v3696
  %v3739 = vmul.f32 %v3733, %v3697
  %v3740 = vsub.f32 1.0, %v3723
  %v3741 = vsub.f32 1.0, %v3725
  %v3742 = vsub.f32 1.0, %v3727
  %v3743 = vsub.f32 1.0, %v3729
  %v3744 = vsub.f32 1.0, %v3731
  %v3745 = vsub.f32 1.0, %v3733
  %v3746 = vmul.f32 %v3740, %v2493
  %v3747 = vmul.f32 %v3741, %v2494
  %v3748 = vmul.f32 %v3742, %v2495
  %v3749 = vmul.f32 %v3743, %v2496
  %v3750 = vmul.f32 %v3744, %v2497
  %v3751 = vmul.f32 %v3745, %v2498
  %v3752 = vadd.f32 %v3734, %v3746
  %v3753 = vadd.f32 %v3735, %v3747
  %v3754 = vadd.f32 %v3736, %v3748
  %v3755 = vadd.f32 %v3737, %v3749
  %v3756 = vadd.f32 %v3738, %v3750
  %v3757 = vadd.f32 %v3739, %v3751
  %v3758 = vpack.c.bf16 %v2520, %v2517
  %v3759 = vpack.c.bf16 %v2521, %v2518
  %v3760 = vpack.c.bf16 %v2522, %v2519
  %v3761 = vld [vmem:[%s5] sm:$0xff]
  %v3762 = vld [vmem:[%s5 + $0x8] sm:$0xff]
  %v3763 = vld [vmem:[%s5 + $0x10] sm:$0xff]
  %v3764 = vld [vmem:[%s5 + $0x18] sm:$0xff]
  %v3765 = vld [vmem:[%s5 + $0x20] sm:$0xff]
  %v3766 = vld [vmem:[%s5 + $0x28] sm:$0xff]
  %v3767 = vld [vmem:[%s5 + $0x30] sm:$0xff]
  %v3768 = vld [vmem:[%s5 + $0x38] sm:$0xff]
  %v3769 = vld [vmem:[%s5 + $0x40] sm:$0xff]
  %v3770 = vld [vmem:[%s5 + $0x48] sm:$0xff]
  %v3771 = vld [vmem:[%s5 + $0x50] sm:$0xff]
  %v3772 = vld [vmem:[%s5 + $0x58] sm:$0xff]
  %v3773 = vld [vmem:[%s5 + $0x60] sm:$0xff]
  %v3774 = vld [vmem:[%s5 + $0x68] sm:$0xff]
  %v3775 = vld [vmem:[%s5 + $0x70] sm:$0xff]
  %v3776 = vld [vmem:[%s5 + $0x78] sm:$0xff]
  %v3777 = vld [vmem:[%s5 + $0x80] sm:$0xff]
  %v3778 = vld [vmem:[%s5 + $0x88] sm:$0xff]
  %v3779 = vld [vmem:[%s5 + $0x90] sm:$0xff]
  %v3780 = vld [vmem:[%s5 + $0x98] sm:$0xff]
  %v3781 = vld [vmem:[%s5 + $0xa0] sm:$0xff]
  %v3782 = vld [vmem:[%s5 + $0xa8] sm:$0xff]
  %v3783 = vld [vmem:[%s5 + $0xb0] sm:$0xff]
  %v3784 = vld [vmem:[%s5 + $0xb8] sm:$0xff]
  %v3785 = vld [vmem:[%s5 + $0xc0] sm:$0xff]
  %v3786 = vld [vmem:[%s5 + $0xc8] sm:$0xff]
  %v3787 = vld [vmem:[%s5 + $0xd0] sm:$0xff]
  %v3788 = vld [vmem:[%s5 + $0xd8] sm:$0xff]
  %v3789 = vld [vmem:[%s5 + $0xe0] sm:$0xff]
  %v3790 = vld [vmem:[%s5 + $0xe8] sm:$0xff]
  %v3791 = vld [vmem:[%s5 + $0xf0] sm:$0xff]
  %v3792 = vld [vmem:[%s5 + $0xf8] sm:$0xff]
  %v3793 = vld [vmem:[%s5 + $0x100] sm:$0xff]
  %v3794 = vld [vmem:[%s5 + $0x108] sm:$0xff]
  %v3795 = vld [vmem:[%s5 + $0x110] sm:$0xff]
  %v3796 = vld [vmem:[%s5 + $0x118] sm:$0xff]
  %v3797 = vld [vmem:[%s5 + $0x120] sm:$0xff]
  %v3798 = vld [vmem:[%s5 + $0x128] sm:$0xff]
  %v3799 = vld [vmem:[%s5 + $0x130] sm:$0xff]
  %v3800 = vld [vmem:[%s5 + $0x138] sm:$0xff]
  %v3801 = vld [vmem:[%s5 + $0x140] sm:$0xff]
  %v3802 = vld [vmem:[%s5 + $0x148] sm:$0xff]
  %v3803 = vld [vmem:[%s5 + $0x150] sm:$0xff]
  %v3804 = vld [vmem:[%s5 + $0x158] sm:$0xff]
  %v3805 = vld [vmem:[%s5 + $0x160] sm:$0xff]
  %v3806 = vld [vmem:[%s5 + $0x168] sm:$0xff]
  %v3807 = vld [vmem:[%s5 + $0x170] sm:$0xff]
  %v3808 = vld [vmem:[%s5 + $0x178] sm:$0xff]
  %v3809 = vld [vmem:[%s5 + $0x180] sm:$0xff]
  %v3810 = vld [vmem:[%s5 + $0x188] sm:$0xff]
  %v3811 = vld [vmem:[%s5 + $0x190] sm:$0xff]
  %v3812 = vld [vmem:[%s5 + $0x198] sm:$0xff]
  %v3813 = vld [vmem:[%s5 + $0x1a0] sm:$0xff]
  %v3814 = vld [vmem:[%s5 + $0x1a8] sm:$0xff]
  %v3815 = vld [vmem:[%s5 + $0x1b0] sm:$0xff]
  %v3816 = vld [vmem:[%s5 + $0x1b8] sm:$0xff]
  %v3817 = vld [vmem:[%s5 + $0x1c0] sm:$0xff]
  %v3818 = vld [vmem:[%s5 + $0x1c8] sm:$0xff]
  %v3819 = vld [vmem:[%s5 + $0x1d0] sm:$0xff]
  %v3820 = vld [vmem:[%s5 + $0x1d8] sm:$0xff]
  %v3821 = vld [vmem:[%s5 + $0x1e0] sm:$0xff]
  %v3822 = vld [vmem:[%s5 + $0x1e8] sm:$0xff]
  %v3823 = vld [vmem:[%s5 + $0x1f0] sm:$0xff]
  %v3824 = vld [vmem:[%s5 + $0x1f8] sm:$0xff]
  %v3825 = vld [vmem:[%s5 + $0x200] sm:$0xff]
  %v3826 = vld [vmem:[%s5 + $0x208] sm:$0xff]
  %v3827 = vld [vmem:[%s5 + $0x210] sm:$0xff]
  %v3828 = vld [vmem:[%s5 + $0x218] sm:$0xff]
  %v3829 = vld [vmem:[%s5 + $0x220] sm:$0xff]
  %v3830 = vld [vmem:[%s5 + $0x228] sm:$0xff]
  %v3831 = vld [vmem:[%s5 + $0x230] sm:$0xff]
  %v3832 = vld [vmem:[%s5 + $0x238] sm:$0xff]
  %v3833 = vld [vmem:[%s5 + $0x240] sm:$0xff]
  %v3834 = vld [vmem:[%s5 + $0x248] sm:$0xff]
  %v3835 = vld [vmem:[%s5 + $0x250] sm:$0xff]
  %v3836 = vld [vmem:[%s5 + $0x258] sm:$0xff]
  %v3837 = vld [vmem:[%s5 + $0x260] sm:$0xff]
  %v3838 = vld [vmem:[%s5 + $0x268] sm:$0xff]
  %v3839 = vld [vmem:[%s5 + $0x270] sm:$0xff]
  %v3840 = vld [vmem:[%s5 + $0x278] sm:$0xff]
  %v3841 = vld [vmem:[%s5 + $0x280] sm:$0xff]
  %v3842 = vld [vmem:[%s5 + $0x288] sm:$0xff]
  %v3843 = vld [vmem:[%s5 + $0x290] sm:$0xff]
  %v3844 = vld [vmem:[%s5 + $0x298] sm:$0xff]
  %v3845 = vld [vmem:[%s5 + $0x2a0] sm:$0xff]
  %v3846 = vld [vmem:[%s5 + $0x2a8] sm:$0xff]
  %v3847 = vld [vmem:[%s5 + $0x2b0] sm:$0xff]
  %v3848 = vld [vmem:[%s5 + $0x2b8] sm:$0xff]
  %v3849 = vld [vmem:[%s5 + $0x2c0] sm:$0xff]
  %v3850 = vld [vmem:[%s5 + $0x2c8] sm:$0xff]
  %v3851 = vld [vmem:[%s5 + $0x2d0] sm:$0xff]
  %v3852 = vld [vmem:[%s5 + $0x2d8] sm:$0xff]
  %v3853 = vld [vmem:[%s5 + $0x2e0] sm:$0xff]
  %v3854 = vld [vmem:[%s5 + $0x2e8] sm:$0xff]
  %v3855 = vld [vmem:[%s5 + $0x2f0] sm:$0xff]
  %v3856 = vld [vmem:[%s5 + $0x2f8] sm:$0xff]
  %v3857 = vld [vmem:[%s5 + $0x300] sm:$0xff]
  %v3858 = vld [vmem:[%s5 + $0x308] sm:$0xff]
  %v3859 = vld [vmem:[%s5 + $0x310] sm:$0xff]
  %v3860 = vld [vmem:[%s5 + $0x318] sm:$0xff]
  %v3861 = vld [vmem:[%s5 + $0x320] sm:$0xff]
  %v3862 = vld [vmem:[%s5 + $0x328] sm:$0xff]
  %v3863 = vld [vmem:[%s5 + $0x330] sm:$0xff]
  %v3864 = vld [vmem:[%s5 + $0x338] sm:$0xff]
  %v3865 = vld [vmem:[%s5 + $0x340] sm:$0xff]
  %v3866 = vld [vmem:[%s5 + $0x348] sm:$0xff]
  %v3867 = vld [vmem:[%s5 + $0x350] sm:$0xff]
  %v3868 = vld [vmem:[%s5 + $0x358] sm:$0xff]
  %v3869 = vld [vmem:[%s5 + $0x360] sm:$0xff]
  %v3870 = vld [vmem:[%s5 + $0x368] sm:$0xff]
  %v3871 = vld [vmem:[%s5 + $0x370] sm:$0xff]
  %v3872 = vld [vmem:[%s5 + $0x378] sm:$0xff]
  %v3873 = vld [vmem:[%s5 + $0x380] sm:$0xff]
  %v3874 = vld [vmem:[%s5 + $0x388] sm:$0xff]
  %v3875 = vld [vmem:[%s5 + $0x390] sm:$0xff]
  %v3876 = vld [vmem:[%s5 + $0x398] sm:$0xff]
  %v3877 = vld [vmem:[%s5 + $0x3a0] sm:$0xff]
  %v3878 = vld [vmem:[%s5 + $0x3a8] sm:$0xff]
  %v3879 = vld [vmem:[%s5 + $0x3b0] sm:$0xff]
  %v3880 = vld [vmem:[%s5 + $0x3b8] sm:$0xff]
  %v3881 = vld [vmem:[%s5 + $0x3c0] sm:$0xff]
  %v3882 = vld [vmem:[%s5 + $0x3c8] sm:$0xff]
  %v3883 = vld [vmem:[%s5 + $0x3d0] sm:$0xff]
  %v3884 = vld [vmem:[%s5 + $0x3d8] sm:$0xff]
  %v3885 = vld [vmem:[%s5 + $0x3e0] sm:$0xff]
  %v3886 = vld [vmem:[%s5 + $0x3e8] sm:$0xff]
  %v3887 = vld [vmem:[%s5 + $0x3f0] sm:$0xff]
  %v3888 = vld [vmem:[%s5 + $0x3f8] sm:$0xff]
  %v3889 = vld [vmem:[%s5 + $0x400] sm:$0xff]
  %v3890 = vld [vmem:[%s5 + $0x408] sm:$0xff]
  %v3891 = vld [vmem:[%s5 + $0x410] sm:$0xff]
  %v3892 = vld [vmem:[%s5 + $0x418] sm:$0xff]
  %v3893 = vld [vmem:[%s5 + $0x420] sm:$0xff]
  %v3894 = vld [vmem:[%s5 + $0x428] sm:$0xff]
  %v3895 = vld [vmem:[%s5 + $0x430] sm:$0xff]
  %v3896 = vld [vmem:[%s5 + $0x438] sm:$0xff]
  %v3897 = vld [vmem:[%s5 + $0x440] sm:$0xff]
  %v3898 = vld [vmem:[%s5 + $0x448] sm:$0xff]
  %v3899 = vld [vmem:[%s5 + $0x450] sm:$0xff]
  %v3900 = vld [vmem:[%s5 + $0x458] sm:$0xff]
  %v3901 = vld [vmem:[%s5 + $0x460] sm:$0xff]
  %v3902 = vld [vmem:[%s5 + $0x468] sm:$0xff]
  %v3903 = vld [vmem:[%s5 + $0x470] sm:$0xff]
  %v3904 = vld [vmem:[%s5 + $0x478] sm:$0xff]
  %v3905 = vld [vmem:[%s6] sm:$0x3f]
  %v3907 = vlaneseq
  %v3908 = vshrl.u32 %v3907, 7
  %v3909 = vsub.s32 0, %v3908
  %v3910 = vrot.slane %v3905, %v3909
  %v3911 = vlaneseq
  %v3912 = vshrl.u32 %v3911, 7
  %v3913 = vsub.s32 1, %v3912
  %v3914 = vrot.slane %v3905, %v3913
  %v3915 = vlaneseq
  %v3916 = vshrl.u32 %v3915, 7
  %v3917 = vsub.s32 2, %v3916
  %v3918 = vrot.slane %v3905, %v3917
  %v3919 = vlaneseq
  %v3920 = vshrl.u32 %v3919, 7
  %v3921 = vsub.s32 3, %v3920
  %v3922 = vrot.slane %v3905, %v3921
  %v3923 = vlaneseq
  %v3924 = vshrl.u32 %v3923, 7
  %v3925 = vsub.s32 4, %v3924
  %v3926 = vrot.slane %v3905, %v3925
  %v3927 = vlaneseq
  %v3928 = vshrl.u32 %v3927, 7
  %v3929 = vsub.s32 5, %v3928
  %v3930 = vrot.slane %v3905, %v3929
  %v4081 = vunpack.c.l.b16 %v3761
  %v4082 = vunpack.c.h.b16 %v3761
  %v4083 = vunpack.c.l.b16 %v3762
  %v4084 = vunpack.c.h.b16 %v3762
  %v4085 = vunpack.c.l.b16 %v3763
  %v4086 = vunpack.c.h.b16 %v3763
  %v4087 = vunpack.c.l.b16 %v3764
  %v4088 = vunpack.c.h.b16 %v3764
  %v4089 = vunpack.c.l.b16 %v3765
  %v4090 = vunpack.c.h.b16 %v3765
  %v4091 = vunpack.c.l.b16 %v3766
  %v4092 = vunpack.c.h.b16 %v3766
  %v4093 = vunpack.c.l.b16 %v3767
  %v4094 = vunpack.c.h.b16 %v3767
  %v4095 = vunpack.c.l.b16 %v3768
  %v4096 = vunpack.c.h.b16 %v3768
  %v4097 = vunpack.c.l.b16 %v3769
  %v4098 = vunpack.c.h.b16 %v3769
  %v4099 = vunpack.c.l.b16 %v3770
  %v4100 = vunpack.c.h.b16 %v3770
  %v4101 = vunpack.c.l.b16 %v3771
  %v4102 = vunpack.c.h.b16 %v3771
  %v4103 = vunpack.c.l.b16 %v3772
  %v4104 = vunpack.c.h.b16 %v3772
  %v4105 = vunpack.c.l.b16 %v3773
  %v4106 = vunpack.c.h.b16 %v3773
  %v4107 = vunpack.c.l.b16 %v3774
  %v4108 = vunpack.c.h.b16 %v3774
  %v4109 = vunpack.c.l.b16 %v3775
  %v4110 = vunpack.c.h.b16 %v3775
  %v4111 = vunpack.c.l.b16 %v3776
  %v4112 = vunpack.c.h.b16 %v3776
  %v4113 = vunpack.c.l.b16 %v3777
  %v4114 = vunpack.c.h.b16 %v3777
  %v4115 = vunpack.c.l.b16 %v3778
  %v4116 = vunpack.c.h.b16 %v3778
  %v4117 = vunpack.c.l.b16 %v3779
  %v4118 = vunpack.c.h.b16 %v3779
  %v4119 = vunpack.c.l.b16 %v3780
  %v4120 = vunpack.c.h.b16 %v3780
  %v4121 = vunpack.c.l.b16 %v3781
  %v4122 = vunpack.c.h.b16 %v3781
  %v4123 = vunpack.c.l.b16 %v3782
  %v4124 = vunpack.c.h.b16 %v3782
  %v4125 = vunpack.c.l.b16 %v3783
  %v4126 = vunpack.c.h.b16 %v3783
  %v4127 = vunpack.c.l.b16 %v3784
  %v4128 = vunpack.c.h.b16 %v3784
  %v4129 = vunpack.c.l.b16 %v3785
  %v4130 = vunpack.c.h.b16 %v3785
  %v4131 = vunpack.c.l.b16 %v3786
  %v4132 = vunpack.c.h.b16 %v3786
  %v4133 = vunpack.c.l.b16 %v3787
  %v4134 = vunpack.c.h.b16 %v3787
  %v4135 = vunpack.c.l.b16 %v3788
  %v4136 = vunpack.c.h.b16 %v3788
  %v4137 = vunpack.c.l.b16 %v3789
  %v4138 = vunpack.c.h.b16 %v3789
  %v4139 = vunpack.c.l.b16 %v3790
  %v4140 = vunpack.c.h.b16 %v3790
  %v4141 = vunpack.c.l.b16 %v3791
  %v4142 = vunpack.c.h.b16 %v3791
  %v4143 = vunpack.c.l.b16 %v3792
  %v4144 = vunpack.c.h.b16 %v3792
  %v4145 = vunpack.c.l.b16 %v3793
  %v4146 = vunpack.c.h.b16 %v3793
  %v4147 = vunpack.c.l.b16 %v3794
  %v4148 = vunpack.c.h.b16 %v3794
  %v4149 = vunpack.c.l.b16 %v3795
  %v4150 = vunpack.c.h.b16 %v3795
  %v4151 = vunpack.c.l.b16 %v3796
  %v4152 = vunpack.c.h.b16 %v3796
  %v4153 = vunpack.c.l.b16 %v3797
  %v4154 = vunpack.c.h.b16 %v3797
  %v4155 = vunpack.c.l.b16 %v3798
  %v4156 = vunpack.c.h.b16 %v3798
  %v4157 = vunpack.c.l.b16 %v3799
  %v4158 = vunpack.c.h.b16 %v3799
  %v4159 = vunpack.c.l.b16 %v3800
  %v4160 = vunpack.c.h.b16 %v3800
  %v4161 = vunpack.c.l.b16 %v3801
  %v4162 = vunpack.c.h.b16 %v3801
  %v4163 = vunpack.c.l.b16 %v3802
  %v4164 = vunpack.c.h.b16 %v3802
  %v4165 = vunpack.c.l.b16 %v3803
  %v4166 = vunpack.c.h.b16 %v3803
  %v4167 = vunpack.c.l.b16 %v3804
  %v4168 = vunpack.c.h.b16 %v3804
  %v4169 = vunpack.c.l.b16 %v3805
  %v4170 = vunpack.c.h.b16 %v3805
  %v4171 = vunpack.c.l.b16 %v3806
  %v4172 = vunpack.c.h.b16 %v3806
  %v4173 = vunpack.c.l.b16 %v3807
  %v4174 = vunpack.c.h.b16 %v3807
  %v4175 = vunpack.c.l.b16 %v3808
  %v4176 = vunpack.c.h.b16 %v3808
  %v4177 = vunpack.c.l.b16 %v3809
  %v4178 = vunpack.c.h.b16 %v3809
  %v4179 = vunpack.c.l.b16 %v3810
  %v4180 = vunpack.c.h.b16 %v3810
  %v4181 = vunpack.c.l.b16 %v3811
  %v4182 = vunpack.c.h.b16 %v3811
  %v4183 = vunpack.c.l.b16 %v3812
  %v4184 = vunpack.c.h.b16 %v3812
  %v4185 = vunpack.c.l.b16 %v3813
  %v4186 = vunpack.c.h.b16 %v3813
  %v4187 = vunpack.c.l.b16 %v3814
  %v4188 = vunpack.c.h.b16 %v3814
  %v4189 = vunpack.c.l.b16 %v3815
  %v4190 = vunpack.c.h.b16 %v3815
  %v4191 = vunpack.c.l.b16 %v3816
  %v4192 = vunpack.c.h.b16 %v3816
  %v4193 = vunpack.c.l.b16 %v3817
  %v4194 = vunpack.c.h.b16 %v3817
  %v4195 = vunpack.c.l.b16 %v3818
  %v4196 = vunpack.c.h.b16 %v3818
  %v4197 = vunpack.c.l.b16 %v3819
  %v4198 = vunpack.c.h.b16 %v3819
  %v4199 = vunpack.c.l.b16 %v3820
  %v4200 = vunpack.c.h.b16 %v3820
  %v4201 = vunpack.c.l.b16 %v3821
  %v4202 = vunpack.c.h.b16 %v3821
  %v4203 = vunpack.c.l.b16 %v3822
  %v4204 = vunpack.c.h.b16 %v3822
  %v4205 = vunpack.c.l.b16 %v3823
  %v4206 = vunpack.c.h.b16 %v3823
  %v4207 = vunpack.c.l.b16 %v3824
  %v4208 = vunpack.c.h.b16 %v3824
  %v4209 = vunpack.c.l.b16 %v3825
  %v4210 = vunpack.c.h.b16 %v3825
  %v4211 = vunpack.c.l.b16 %v3826
  %v4212 = vunpack.c.h.b16 %v3826
  %v4213 = vunpack.c.l.b16 %v3827
  %v4214 = vunpack.c.h.b16 %v3827
  %v4215 = vunpack.c.l.b16 %v3828
  %v4216 = vunpack.c.h.b16 %v3828
  %v4217 = vunpack.c.l.b16 %v3829
  %v4218 = vunpack.c.h.b16 %v3829
  %v4219 = vunpack.c.l.b16 %v3830
  %v4220 = vunpack.c.h.b16 %v3830
  %v4221 = vunpack.c.l.b16 %v3831
  %v4222 = vunpack.c.h.b16 %v3831
  %v4223 = vunpack.c.l.b16 %v3832
  %v4224 = vunpack.c.h.b16 %v3832
  %v4225 = vunpack.c.l.b16 %v3833
  %v4226 = vunpack.c.h.b16 %v3833
  %v4227 = vunpack.c.l.b16 %v3834
  %v4228 = vunpack.c.h.b16 %v3834
  %v4229 = vunpack.c.l.b16 %v3835
  %v4230 = vunpack.c.h.b16 %v3835
  %v4231 = vunpack.c.l.b16 %v3836
  %v4232 = vunpack.c.h.b16 %v3836
  %v4233 = vunpack.c.l.b16 %v3837
  %v4234 = vunpack.c.h.b16 %v3837
  %v4235 = vunpack.c.l.b16 %v3838
  %v4236 = vunpack.c.h.b16 %v3838
  %v4237 = vunpack.c.l.b16 %v3839
  %v4238 = vunpack.c.h.b16 %v3839
  %v4239 = vunpack.c.l.b16 %v3840
  %v4240 = vunpack.c.h.b16 %v3840
  %v4241 = vunpack.c.l.b16 %v3841
  %v4242 = vunpack.c.h.b16 %v3841
  %v4243 = vunpack.c.l.b16 %v3842
  %v4244 = vunpack.c.h.b16 %v3842
  %v4245 = vunpack.c.l.b16 %v3843
  %v4246 = vunpack.c.h.b16 %v3843
  %v4247 = vunpack.c.l.b16 %v3844
  %v4248 = vunpack.c.h.b16 %v3844
  %v4249 = vunpack.c.l.b16 %v3845
  %v4250 = vunpack.c.h.b16 %v3845
  %v4251 = vunpack.c.l.b16 %v3846
  %v4252 = vunpack.c.h.b16 %v3846
  %v4253 = vunpack.c.l.b16 %v3847
  %v4254 = vunpack.c.h.b16 %v3847
  %v4255 = vunpack.c.l.b16 %v3848
  %v4256 = vunpack.c.h.b16 %v3848
  %v4257 = vunpack.c.l.b16 %v3849
  %v4258 = vunpack.c.h.b16 %v3849
  %v4259 = vunpack.c.l.b16 %v3850
  %v4260 = vunpack.c.h.b16 %v3850
  %v4261 = vunpack.c.l.b16 %v3851
  %v4262 = vunpack.c.h.b16 %v3851
  %v4263 = vunpack.c.l.b16 %v3852
  %v4264 = vunpack.c.h.b16 %v3852
  %v4265 = vunpack.c.l.b16 %v3853
  %v4266 = vunpack.c.h.b16 %v3853
  %v4267 = vunpack.c.l.b16 %v3854
  %v4268 = vunpack.c.h.b16 %v3854
  %v4269 = vunpack.c.l.b16 %v3855
  %v4270 = vunpack.c.h.b16 %v3855
  %v4271 = vunpack.c.l.b16 %v3856
  %v4272 = vunpack.c.h.b16 %v3856
  %v4273 = vunpack.c.l.b16 %v3857
  %v4274 = vunpack.c.h.b16 %v3857
  %v4275 = vunpack.c.l.b16 %v3858
  %v4276 = vunpack.c.h.b16 %v3858
  %v4277 = vunpack.c.l.b16 %v3859
  %v4278 = vunpack.c.h.b16 %v3859
  %v4279 = vunpack.c.l.b16 %v3860
  %v4280 = vunpack.c.h.b16 %v3860
  %v4281 = vunpack.c.l.b16 %v3861
  %v4282 = vunpack.c.h.b16 %v3861
  %v4283 = vunpack.c.l.b16 %v3862
  %v4284 = vunpack.c.h.b16 %v3862
  %v4285 = vunpack.c.l.b16 %v3863
  %v4286 = vunpack.c.h.b16 %v3863
  %v4287 = vunpack.c.l.b16 %v3864
  %v4288 = vunpack.c.h.b16 %v3864
  %v4289 = vunpack.c.l.b16 %v3865
  %v4290 = vunpack.c.h.b16 %v3865
  %v4291 = vunpack.c.l.b16 %v3866
  %v4292 = vunpack.c.h.b16 %v3866
  %v4293 = vunpack.c.l.b16 %v3867
  %v4294 = vunpack.c.h.b16 %v3867
  %v4295 = vunpack.c.l.b16 %v3868
  %v4296 = vunpack.c.h.b16 %v3868
  %v4297 = vunpack.c.l.b16 %v3869
  %v4298 = vunpack.c.h.b16 %v3869
  %v4299 = vunpack.c.l.b16 %v3870
  %v4300 = vunpack.c.h.b16 %v3870
  %v4301 = vunpack.c.l.b16 %v3871
  %v4302 = vunpack.c.h.b16 %v3871
  %v4303 = vunpack.c.l.b16 %v3872
  %v4304 = vunpack.c.h.b16 %v3872
  %v4305 = vunpack.c.l.b16 %v3873
  %v4306 = vunpack.c.h.b16 %v3873
  %v4307 = vunpack.c.l.b16 %v3874
  %v4308 = vunpack.c.h.b16 %v3874
  %v4309 = vunpack.c.l.b16 %v3875
  %v4310 = vunpack.c.h.b16 %v3875
  %v4311 = vunpack.c.l.b16 %v3876
  %v4312 = vunpack.c.h.b16 %v3876
  %v4313 = vunpack.c.l.b16 %v3877
  %v4314 = vunpack.c.h.b16 %v3877
  %v4315 = vunpack.c.l.b16 %v3878
  %v4316 = vunpack.c.h.b16 %v3878
  %v4317 = vunpack.c.l.b16 %v3879
  %v4318 = vunpack.c.h.b16 %v3879
  %v4319 = vunpack.c.l.b16 %v3880
  %v4320 = vunpack.c.h.b16 %v3880
  %v4321 = vunpack.c.l.b16 %v3881
  %v4322 = vunpack.c.h.b16 %v3881
  %v4323 = vunpack.c.l.b16 %v3882
  %v4324 = vunpack.c.h.b16 %v3882
  %v4325 = vunpack.c.l.b16 %v3883
  %v4326 = vunpack.c.h.b16 %v3883
  %v4327 = vunpack.c.l.b16 %v3884
  %v4328 = vunpack.c.h.b16 %v3884
  %v4329 = vunpack.c.l.b16 %v3885
  %v4330 = vunpack.c.h.b16 %v3885
  %v4331 = vunpack.c.l.b16 %v3886
  %v4332 = vunpack.c.h.b16 %v3886
  %v4333 = vunpack.c.l.b16 %v3887
  %v4334 = vunpack.c.h.b16 %v3887
  %v4335 = vunpack.c.l.b16 %v3888
  %v4336 = vunpack.c.h.b16 %v3888
  %v4337 = vunpack.c.l.b16 %v3889
  %v4338 = vunpack.c.h.b16 %v3889
  %v4339 = vunpack.c.l.b16 %v3890
  %v4340 = vunpack.c.h.b16 %v3890
  %v4341 = vunpack.c.l.b16 %v3891
  %v4342 = vunpack.c.h.b16 %v3891
  %v4343 = vunpack.c.l.b16 %v3892
  %v4344 = vunpack.c.h.b16 %v3892
  %v4345 = vunpack.c.l.b16 %v3893
  %v4346 = vunpack.c.h.b16 %v3893
  %v4347 = vunpack.c.l.b16 %v3894
  %v4348 = vunpack.c.h.b16 %v3894
  %v4349 = vunpack.c.l.b16 %v3895
  %v4350 = vunpack.c.h.b16 %v3895
  %v4351 = vunpack.c.l.b16 %v3896
  %v4352 = vunpack.c.h.b16 %v3896
  %v4353 = vunpack.c.l.b16 %v3897
  %v4354 = vunpack.c.h.b16 %v3897
  %v4355 = vunpack.c.l.b16 %v3898
  %v4356 = vunpack.c.h.b16 %v3898
  %v4357 = vunpack.c.l.b16 %v3899
  %v4358 = vunpack.c.h.b16 %v3899
  %v4359 = vunpack.c.l.b16 %v3900
  %v4360 = vunpack.c.h.b16 %v3900
  %v4361 = vunpack.c.l.b16 %v3901
  %v4362 = vunpack.c.h.b16 %v3901
  %v4363 = vunpack.c.l.b16 %v3902
  %v4364 = vunpack.c.h.b16 %v3902
  %v4365 = vunpack.c.l.b16 %v3903
  %v4366 = vunpack.c.h.b16 %v3903
  %v4367 = vunpack.c.l.b16 %v3904
  %v4368 = vunpack.c.h.b16 %v3904
  %v4369 = vpack.c.b16 %v4087, %v4081
  %v4370 = vpack.c.b16 %v4088, %v4082
  %v4371 = vpack.c.b16 %v4089, %v4083
  %v4372 = vpack.c.b16 %v4090, %v4084
  %v4373 = vpack.c.b16 %v4091, %v4085
  %v4374 = vpack.c.b16 %v4092, %v4086
  %v4375 = vpack.c.b16 %v4099, %v4093
  %v4376 = vpack.c.b16 %v4100, %v4094
  %v4377 = vpack.c.b16 %v4101, %v4095
  %v4378 = vpack.c.b16 %v4102, %v4096
  %v4379 = vpack.c.b16 %v4103, %v4097
  %v4380 = vpack.c.b16 %v4104, %v4098
  %v4381 = vpack.c.b16 %v4111, %v4105
  %v4382 = vpack.c.b16 %v4112, %v4106
  %v4383 = vpack.c.b16 %v4113, %v4107
  %v4384 = vpack.c.b16 %v4114, %v4108
  %v4385 = vpack.c.b16 %v4115, %v4109
  %v4386 = vpack.c.b16 %v4116, %v4110
  %v4387 = vpack.c.b16 %v4123, %v4117
  %v4388 = vpack.c.b16 %v4124, %v4118
  %v4389 = vpack.c.b16 %v4125, %v4119
  %v4390 = vpack.c.b16 %v4126, %v4120
  %v4391 = vpack.c.b16 %v4127, %v4121
  %v4392 = vpack.c.b16 %v4128, %v4122
  %v4393 = vpack.c.b16 %v4135, %v4129
  %v4394 = vpack.c.b16 %v4136, %v4130
  %v4395 = vpack.c.b16 %v4137, %v4131
  %v4396 = vpack.c.b16 %v4138, %v4132
  %v4397 = vpack.c.b16 %v4139, %v4133
  %v4398 = vpack.c.b16 %v4140, %v4134
  %v4399 = vpack.c.b16 %v4147, %v4141
  %v4400 = vpack.c.b16 %v4148, %v4142
  %v4401 = vpack.c.b16 %v4149, %v4143
  %v4402 = vpack.c.b16 %v4150, %v4144
  %v4403 = vpack.c.b16 %v4151, %v4145
  %v4404 = vpack.c.b16 %v4152, %v4146
  %v4405 = vpack.c.b16 %v4159, %v4153
  %v4406 = vpack.c.b16 %v4160, %v4154
  %v4407 = vpack.c.b16 %v4161, %v4155
  %v4408 = vpack.c.b16 %v4162, %v4156
  %v4409 = vpack.c.b16 %v4163, %v4157
  %v4410 = vpack.c.b16 %v4164, %v4158
  %v4411 = vpack.c.b16 %v4171, %v4165
  %v4412 = vpack.c.b16 %v4172, %v4166
  %v4413 = vpack.c.b16 %v4173, %v4167
  %v4414 = vpack.c.b16 %v4174, %v4168
  %v4415 = vpack.c.b16 %v4175, %v4169
  %v4416 = vpack.c.b16 %v4176, %v4170
  %v4417 = vpack.c.b16 %v4183, %v4177
  %v4418 = vpack.c.b16 %v4184, %v4178
  %v4419 = vpack.c.b16 %v4185, %v4179
  %v4420 = vpack.c.b16 %v4186, %v4180
  %v4421 = vpack.c.b16 %v4187, %v4181
  %v4422 = vpack.c.b16 %v4188, %v4182
  %v4423 = vpack.c.b16 %v4195, %v4189
  %v4424 = vpack.c.b16 %v4196, %v4190
  %v4425 = vpack.c.b16 %v4197, %v4191
  %v4426 = vpack.c.b16 %v4198, %v4192
  %v4427 = vpack.c.b16 %v4199, %v4193
  %v4428 = vpack.c.b16 %v4200, %v4194
  %v4429 = vpack.c.b16 %v4207, %v4201
  %v4430 = vpack.c.b16 %v4208, %v4202
  %v4431 = vpack.c.b16 %v4209, %v4203
  %v4432 = vpack.c.b16 %v4210, %v4204
  %v4433 = vpack.c.b16 %v4211, %v4205
  %v4434 = vpack.c.b16 %v4212, %v4206
  %v4435 = vpack.c.b16 %v4219, %v4213
  %v4436 = vpack.c.b16 %v4220, %v4214
  %v4437 = vpack.c.b16 %v4221, %v4215
  %v4438 = vpack.c.b16 %v4222, %v4216
  %v4439 = vpack.c.b16 %v4223, %v4217
  %v4440 = vpack.c.b16 %v4224, %v4218
  %v4441 = vpack.c.b16 %v4231, %v4225
  %v4442 = vpack.c.b16 %v4232, %v4226
  %v4443 = vpack.c.b16 %v4233, %v4227
  %v4444 = vpack.c.b16 %v4234, %v4228
  %v4445 = vpack.c.b16 %v4235, %v4229
  %v4446 = vpack.c.b16 %v4236, %v4230
  %v4447 = vpack.c.b16 %v4243, %v4237
  %v4448 = vpack.c.b16 %v4244, %v4238
  %v4449 = vpack.c.b16 %v4245, %v4239
  %v4450 = vpack.c.b16 %v4246, %v4240
  %v4451 = vpack.c.b16 %v4247, %v4241
  %v4452 = vpack.c.b16 %v4248, %v4242
  %v4453 = vpack.c.b16 %v4255, %v4249
  %v4454 = vpack.c.b16 %v4256, %v4250
  %v4455 = vpack.c.b16 %v4257, %v4251
  %v4456 = vpack.c.b16 %v4258, %v4252
  %v4457 = vpack.c.b16 %v4259, %v4253
  %v4458 = vpack.c.b16 %v4260, %v4254
  %v4459 = vpack.c.b16 %v4267, %v4261
  %v4460 = vpack.c.b16 %v4268, %v4262
  %v4461 = vpack.c.b16 %v4269, %v4263
  %v4462 = vpack.c.b16 %v4270, %v4264
  %v4463 = vpack.c.b16 %v4271, %v4265
  %v4464 = vpack.c.b16 %v4272, %v4266
  %v4465 = vpack.c.b16 %v4279, %v4273
  %v4466 = vpack.c.b16 %v4280, %v4274
  %v4467 = vpack.c.b16 %v4281, %v4275
  %v4468 = vpack.c.b16 %v4282, %v4276
  %v4469 = vpack.c.b16 %v4283, %v4277
  %v4470 = vpack.c.b16 %v4284, %v4278
  %v4471 = vpack.c.b16 %v4291, %v4285
  %v4472 = vpack.c.b16 %v4292, %v4286
  %v4473 = vpack.c.b16 %v4293, %v4287
  %v4474 = vpack.c.b16 %v4294, %v4288
  %v4475 = vpack.c.b16 %v4295, %v4289
  %v4476 = vpack.c.b16 %v4296, %v4290
  %v4477 = vpack.c.b16 %v4303, %v4297
  %v4478 = vpack.c.b16 %v4304, %v4298
  %v4479 = vpack.c.b16 %v4305, %v4299
  %v4480 = vpack.c.b16 %v4306, %v4300
  %v4481 = vpack.c.b16 %v4307, %v4301
  %v4482 = vpack.c.b16 %v4308, %v4302
  %v4483 = vpack.c.b16 %v4315, %v4309
  %v4484 = vpack.c.b16 %v4316, %v4310
  %v4485 = vpack.c.b16 %v4317, %v4311
  %v4486 = vpack.c.b16 %v4318, %v4312
  %v4487 = vpack.c.b16 %v4319, %v4313
  %v4488 = vpack.c.b16 %v4320, %v4314
  %v4489 = vpack.c.b16 %v4327, %v4321
  %v4490 = vpack.c.b16 %v4328, %v4322
  %v4491 = vpack.c.b16 %v4329, %v4323
  %v4492 = vpack.c.b16 %v4330, %v4324
  %v4493 = vpack.c.b16 %v4331, %v4325
  %v4494 = vpack.c.b16 %v4332, %v4326
  %v4495 = vpack.c.b16 %v4339, %v4333
  %v4496 = vpack.c.b16 %v4340, %v4334
  %v4497 = vpack.c.b16 %v4341, %v4335
  %v4498 = vpack.c.b16 %v4342, %v4336
  %v4499 = vpack.c.b16 %v4343, %v4337
  %v4500 = vpack.c.b16 %v4344, %v4338
  %v4501 = vpack.c.b16 %v4351, %v4345
  %v4502 = vpack.c.b16 %v4352, %v4346
  %v4503 = vpack.c.b16 %v4353, %v4347
  %v4504 = vpack.c.b16 %v4354, %v4348
  %v4505 = vpack.c.b16 %v4355, %v4349
  %v4506 = vpack.c.b16 %v4356, %v4350
  %v4507 = vpack.c.b16 %v4363, %v4357
  %v4508 = vpack.c.b16 %v4364, %v4358
  %v4509 = vpack.c.b16 %v4365, %v4359
  %v4510 = vpack.c.b16 %v4366, %v4360
  %v4511 = vpack.c.b16 %v4367, %v4361
  %v4512 = vpack.c.b16 %v4368, %v4362
  %4657 = vmatprep.subr.bf16.mxu0 %v4412
  %4658 = vmatpush1.bf16.msra.mxu0 %v4411
  %4659 = vmatprep.subr.bf16.mxu0 %v4406
  %4660 = vmatpush1.bf16.msra.mxu0 %v4405
  %4661 = vmatprep.subr.bf16.mxu0 %v4400
  %4662 = vmatpush1.bf16.msra.mxu0 %v4399
  %4663 = vmatprep.subr.bf16.mxu0 %v4394
  %4664 = vmatpush1.bf16.msra.mxu0 %v4393
  %4665 = vmatprep.subr.bf16.mxu0 %v4388
  %4666 = vmatpush1.bf16.msra.mxu0 %v4387
  %4667 = vmatprep.subr.bf16.mxu0 %v4382
  %4668 = vmatpush1.bf16.msra.mxu0 %v4381
  %4669 = vmatprep.subr.bf16.mxu0 %v4376
  %4670 = vmatpush1.bf16.msra.mxu0 %v4375
  %4671 = vmatprep.subr.bf16.mxu0 %v4370
  %4672 = vmatpush1.bf16.msra.mxu0 %v4369
  %4673 = vmatprep.subr.bf16.mxu0 %v4460
  %4674 = vmatpush2.bf16.msra.mxu0 %v4459
  %4675 = vmatprep.subr.bf16.mxu0 %v4454
  %4676 = vmatpush2.bf16.msra.mxu0 %v4453
  %4677 = vmatprep.subr.bf16.mxu0 %v4448
  %4678 = vmatpush2.bf16.msra.mxu0 %v4447
  %4679 = vmatprep.subr.bf16.mxu0 %v4442
  %4680 = vmatpush2.bf16.msra.mxu0 %v4441
  %4681 = vmatprep.subr.bf16.mxu0 %v4436
  %4682 = vmatpush2.bf16.msra.mxu0 %v4435
  %4683 = vmatprep.subr.bf16.mxu0 %v4430
  %4684 = vmatpush2.bf16.msra.mxu0 %v4429
  %4685 = vmatprep.subr.bf16.mxu0 %v4424
  %4686 = vmatpush2.bf16.msra.mxu0 %v4423
  %4687 = vmatprep.subr.bf16.mxu0 %v4418
  %4688 = vmatpush2.bf16.msra.mxu0 %v4417
  %4689 = vmatprep.mubr.bf16.mxu0 %v3759
  %4690 = vmatmul.mubr.bf16.gmra.mxu0 %v3758
  %v4691 = vpop.f32.mrf.mxu0
  %v4692 = vadd.f32 %v3910, %v4691
  %v4693 = vpop.f32.mrf.mxu0
  %v4694 = vadd.f32 %v3914, %v4693
  %v4695 = vpop.f32.mrf.mxu0
  %v4696 = vadd.f32 %v3910, %v4695
  %v4697 = vpop.f32.mrf.mxu0
  %v4698 = vadd.f32 %v3914, %v4697
  %4699 = vdwg.mxu0
  %4700 = vmatprep.subr.bf16.mxu0 %v4508
  %4701 = vmatpush1.bf16.msra.mxu0 %v4507
  %4702 = vmatprep.subr.bf16.mxu0 %v4502
  %4703 = vmatpush1.bf16.msra.mxu0 %v4501
  %4704 = vmatprep.subr.bf16.mxu0 %v4496
  %4705 = vmatpush1.bf16.msra.mxu0 %v4495
  %4706 = vmatprep.subr.bf16.mxu0 %v4490
  %4707 = vmatpush1.bf16.msra.mxu0 %v4489
  %4708 = vmatprep.subr.bf16.mxu0 %v4484
  %4709 = vmatpush1.bf16.msra.mxu0 %v4483
  %4710 = vmatprep.subr.bf16.mxu0 %v4478
  %4711 = vmatpush1.bf16.msra.mxu0 %v4477
  %4712 = vmatprep.subr.bf16.mxu0 %v4472
  %4713 = vmatpush1.bf16.msra.mxu0 %v4471
  %4714 = vmatprep.subr.bf16.mxu0 %v4466
  %4715 = vmatpush1.bf16.msra.mxu0 %v4465
  %4716 = vmatprep.subr.bf16.mxu0 0
  %4717 = vmatpush2.bf16.msra.mxu0 0
  %4718 = vmatprep.subr.bf16.mxu0 0
  %4719 = vmatpush2.bf16.msra.mxu0 0
  %4720 = vmatprep.subr.bf16.mxu0 0
  %4721 = vmatpush2.bf16.msra.mxu0 0
  %4722 = vmatprep.subr.bf16.mxu0 0
  %4723 = vmatpush2.bf16.msra.mxu0 0
  %4724 = vmatprep.subr.bf16.mxu0 0
  %4725 = vmatpush2.bf16.msra.mxu0 0
  %4726 = vmatprep.subr.bf16.mxu0 0
  %4727 = vmatpush2.bf16.msra.mxu0 0
  %4728 = vmatprep.subr.bf16.mxu0 0
  %4729 = vmatpush2.bf16.msra.mxu0 0
  %4730 = vmatprep.subr.bf16.mxu0 0
  %4731 = vmatpush2.bf16.msra.mxu0 0
  %4732 = vmatprep.mubr.bf16.mxu0 0
  %4733 = vmatmul.mubr.bf16.gmra.mxu0 %v3760
  %v4734 = vpop.f32.mrf.mxu0
  %v4735 = vadd.f32 %v4692, %v4734
  %v4736 = vpop.f32.mrf.mxu0
  %v4737 = vadd.f32 %v4694, %v4736
  %v4738 = vpop.f32.mrf.mxu0
  %v4739 = vadd.f32 %v4696, %v4738
  %v4740 = vpop.f32.mrf.mxu0
  %v4741 = vadd.f32 %v4698, %v4740
  %4742 = vdwg.mxu0
  %4743 = vmatprep.subr.bf16.mxu0 %v4414
  %4744 = vmatpush1.bf16.msra.mxu0 %v4413
  %4745 = vmatprep.subr.bf16.mxu0 %v4408
  %4746 = vmatpush1.bf16.msra.mxu0 %v4407
  %4747 = vmatprep.subr.bf16.mxu0 %v4402
  %4748 = vmatpush1.bf16.msra.mxu0 %v4401
  %4749 = vmatprep.subr.bf16.mxu0 %v4396
  %4750 = vmatpush1.bf16.msra.mxu0 %v4395
  %4751 = vmatprep.subr.bf16.mxu0 %v4390
  %4752 = vmatpush1.bf16.msra.mxu0 %v4389
  %4753 = vmatprep.subr.bf16.mxu0 %v4384
  %4754 = vmatpush1.bf16.msra.mxu0 %v4383
  %4755 = vmatprep.subr.bf16.mxu0 %v4378
  %4756 = vmatpush1.bf16.msra.mxu0 %v4377
  %4757 = vmatprep.subr.bf16.mxu0 %v4372
  %4758 = vmatpush1.bf16.msra.mxu0 %v4371
  %4759 = vmatprep.subr.bf16.mxu0 %v4462
  %4760 = vmatpush2.bf16.msra.mxu0 %v4461
  %4761 = vmatprep.subr.bf16.mxu0 %v4456
  %4762 = vmatpush2.bf16.msra.mxu0 %v4455
  %4763 = vmatprep.subr.bf16.mxu0 %v4450
  %4764 = vmatpush2.bf16.msra.mxu0 %v4449
  %4765 = vmatprep.subr.bf16.mxu0 %v4444
  %4766 = vmatpush2.bf16.msra.mxu0 %v4443
  %4767 = vmatprep.subr.bf16.mxu0 %v4438
  %4768 = vmatpush2.bf16.msra.mxu0 %v4437
  %4769 = vmatprep.subr.bf16.mxu0 %v4432
  %4770 = vmatpush2.bf16.msra.mxu0 %v4431
  %4771 = vmatprep.subr.bf16.mxu0 %v4426
  %4772 = vmatpush2.bf16.msra.mxu0 %v4425
  %4773 = vmatprep.subr.bf16.mxu0 %v4420
  %4774 = vmatpush2.bf16.msra.mxu0 %v4419
  %4775 = vmatprep.mubr.bf16.mxu0 %v3759
  %4776 = vmatmul.mubr.bf16.gmra.mxu0 %v3758
  %v4777 = vpop.f32.mrf.mxu0
  %v4778 = vadd.f32 %v3918, %v4777
  %v4779 = vpop.f32.mrf.mxu0
  %v4780 = vadd.f32 %v3922, %v4779
  %v4781 = vpop.f32.mrf.mxu0
  %v4782 = vadd.f32 %v3918, %v4781
  %v4783 = vpop.f32.mrf.mxu0
  %v4784 = vadd.f32 %v3922, %v4783
  %4785 = vdwg.mxu0
  %4786 = vmatprep.subr.bf16.mxu0 %v4510
  %4787 = vmatpush1.bf16.msra.mxu0 %v4509
  %4788 = vmatprep.subr.bf16.mxu0 %v4504
  %4789 = vmatpush1.bf16.msra.mxu0 %v4503
  %4790 = vmatprep.subr.bf16.mxu0 %v4498
  %4791 = vmatpush1.bf16.msra.mxu0 %v4497
  %4792 = vmatprep.subr.bf16.mxu0 %v4492
  %4793 = vmatpush1.bf16.msra.mxu0 %v4491
  %4794 = vmatprep.subr.bf16.mxu0 %v4486
  %4795 = vmatpush1.bf16.msra.mxu0 %v4485
  %4796 = vmatprep.subr.bf16.mxu0 %v4480
  %4797 = vmatpush1.bf16.msra.mxu0 %v4479
  %4798 = vmatprep.subr.bf16.mxu0 %v4474
  %4799 = vmatpush1.bf16.msra.mxu0 %v4473
  %4800 = vmatprep.subr.bf16.mxu0 %v4468
  %4801 = vmatpush1.bf16.msra.mxu0 %v4467
  %4802 = vmatprep.subr.bf16.mxu0 0
  %4803 = vmatpush2.bf16.msra.mxu0 0
  %4804 = vmatprep.subr.bf16.mxu0 0
  %4805 = vmatpush2.bf16.msra.mxu0 0
  %4806 = vmatprep.subr.bf16.mxu0 0
  %4807 = vmatpush2.bf16.msra.mxu0 0
  %4808 = vmatprep.subr.bf16.mxu0 0
  %4809 = vmatpush2.bf16.msra.mxu0 0
  %4810 = vmatprep.subr.bf16.mxu0 0
  %4811 = vmatpush2.bf16.msra.mxu0 0
  %4812 = vmatprep.subr.bf16.mxu0 0
  %4813 = vmatpush2.bf16.msra.mxu0 0
  %4814 = vmatprep.subr.bf16.mxu0 0
  %4815 = vmatpush2.bf16.msra.mxu0 0
  %4816 = vmatprep.subr.bf16.mxu0 0
  %4817 = vmatpush2.bf16.msra.mxu0 0
  %4818 = vmatprep.mubr.bf16.mxu0 0
  %4819 = vmatmul.mubr.bf16.gmra.mxu0 %v3760
  %v4820 = vpop.f32.mrf.mxu0
  %v4821 = vadd.f32 %v4778, %v4820
  %v4822 = vpop.f32.mrf.mxu0
  %v4823 = vadd.f32 %v4780, %v4822
  %v4824 = vpop.f32.mrf.mxu0
  %v4825 = vadd.f32 %v4782, %v4824
  %v4826 = vpop.f32.mrf.mxu0
  %v4827 = vadd.f32 %v4784, %v4826
  %4828 = vdwg.mxu0
  %4829 = vmatprep.subr.bf16.mxu0 %v4416
  %4830 = vmatpush1.bf16.msra.mxu0 %v4415
  %4831 = vmatprep.subr.bf16.mxu0 %v4410
  %4832 = vmatpush1.bf16.msra.mxu0 %v4409
  %4833 = vmatprep.subr.bf16.mxu0 %v4404
  %4834 = vmatpush1.bf16.msra.mxu0 %v4403
  %4835 = vmatprep.subr.bf16.mxu0 %v4398
  %4836 = vmatpush1.bf16.msra.mxu0 %v4397
  %4837 = vmatprep.subr.bf16.mxu0 %v4392
  %4838 = vmatpush1.bf16.msra.mxu0 %v4391
  %4839 = vmatprep.subr.bf16.mxu0 %v4386
  %4840 = vmatpush1.bf16.msra.mxu0 %v4385
  %4841 = vmatprep.subr.bf16.mxu0 %v4380
  %4842 = vmatpush1.bf16.msra.mxu0 %v4379
  %4843 = vmatprep.subr.bf16.mxu0 %v4374
  %4844 = vmatpush1.bf16.msra.mxu0 %v4373
  %4845 = vmatprep.subr.bf16.mxu0 %v4464
  %4846 = vmatpush2.bf16.msra.mxu0 %v4463
  %4847 = vmatprep.subr.bf16.mxu0 %v4458
  %4848 = vmatpush2.bf16.msra.mxu0 %v4457
  %4849 = vmatprep.subr.bf16.mxu0 %v4452
  %4850 = vmatpush2.bf16.msra.mxu0 %v4451
  %4851 = vmatprep.subr.bf16.mxu0 %v4446
  %4852 = vmatpush2.bf16.msra.mxu0 %v4445
  %4853 = vmatprep.subr.bf16.mxu0 %v4440
  %4854 = vmatpush2.bf16.msra.mxu0 %v4439
  %4855 = vmatprep.subr.bf16.mxu0 %v4434
  %4856 = vmatpush2.bf16.msra.mxu0 %v4433
  %4857 = vmatprep.subr.bf16.mxu0 %v4428
  %4858 = vmatpush2.bf16.msra.mxu0 %v4427
  %4859 = vmatprep.subr.bf16.mxu0 %v4422
  %4860 = vmatpush2.bf16.msra.mxu0 %v4421
  %4861 = vmatprep.mubr.bf16.mxu0 %v3759
  %4862 = vmatmul.mubr.bf16.gmra.mxu0 %v3758
  %v4863 = vpop.f32.mrf.mxu0
  %v4864 = vadd.f32 %v3926, %v4863
  %v4865 = vpop.f32.mrf.mxu0
  %v4866 = vadd.f32 %v3930, %v4865
  %v4867 = vpop.f32.mrf.mxu0
  %v4868 = vadd.f32 %v3926, %v4867
  %v4869 = vpop.f32.mrf.mxu0
  %v4870 = vadd.f32 %v3930, %v4869
  %4871 = vdwg.mxu0
  %4872 = vmatprep.subr.bf16.mxu0 %v4512
  %4873 = vmatpush1.bf16.msra.mxu0 %v4511
  %4874 = vmatprep.subr.bf16.mxu0 %v4506
  %4875 = vmatpush1.bf16.msra.mxu0 %v4505
  %4876 = vmatprep.subr.bf16.mxu0 %v4500
  %4877 = vmatpush1.bf16.msra.mxu0 %v4499
  %4878 = vmatprep.subr.bf16.mxu0 %v4494
  %4879 = vmatpush1.bf16.msra.mxu0 %v4493
  %4880 = vmatprep.subr.bf16.mxu0 %v4488
  %4881 = vmatpush1.bf16.msra.mxu0 %v4487
  %4882 = vmatprep.subr.bf16.mxu0 %v4482
  %4883 = vmatpush1.bf16.msra.mxu0 %v4481
  %4884 = vmatprep.subr.bf16.mxu0 %v4476
  %4885 = vmatpush1.bf16.msra.mxu0 %v4475
  %4886 = vmatprep.subr.bf16.mxu0 %v4470
  %4887 = vmatpush1.bf16.msra.mxu0 %v4469
  %4888 = vmatprep.subr.bf16.mxu0 0
  %4889 = vmatpush2.bf16.msra.mxu0 0
  %4890 = vmatprep.subr.bf16.mxu0 0
  %4891 = vmatpush2.bf16.msra.mxu0 0
  %4892 = vmatprep.subr.bf16.mxu0 0
  %4893 = vmatpush2.bf16.msra.mxu0 0
  %4894 = vmatprep.subr.bf16.mxu0 0
  %4895 = vmatpush2.bf16.msra.mxu0 0
  %4896 = vmatprep.subr.bf16.mxu0 0
  %4897 = vmatpush2.bf16.msra.mxu0 0
  %4898 = vmatprep.subr.bf16.mxu0 0
  %4899 = vmatpush2.bf16.msra.mxu0 0
  %4900 = vmatprep.subr.bf16.mxu0 0
  %4901 = vmatpush2.bf16.msra.mxu0 0
  %4902 = vmatprep.subr.bf16.mxu0 0
  %4903 = vmatpush2.bf16.msra.mxu0 0
  %4904 = vmatprep.mubr.bf16.mxu0 0
  %4905 = vmatmul.mubr.bf16.gmra.mxu0 %v3760
  %v4906 = vpop.f32.mrf.mxu0
  %v4907 = vadd.f32 %v4864, %v4906
  %v4908 = vpop.f32.mrf.mxu0
  %v4909 = vadd.f32 %v4866, %v4908
  %v4910 = vpop.f32.mrf.mxu0
  %v4911 = vadd.f32 %v4868, %v4910
  %v4912 = vpop.f32.mrf.mxu0
  %v4913 = vadd.f32 %v4870, %v4912
  %4914 = vdwg.mxu0
  %vm4915 = vcmp.gt.f32.partialorder %v4735, 0.0
  %vm4916 = vcmp.gt.f32.partialorder %v4737, 0.0
  %vm4917 = vcmp.gt.f32.partialorder %v4821, 0.0
  %vm4918 = vcmp.gt.f32.partialorder %v4739, 0.0
  %vm4919 = vcmp.gt.f32.partialorder %v4741, 0.0
  %vm4920 = vcmp.gt.f32.partialorder %v4825, 0.0
  %v4921 = vmul.f32 %v4735, 0.01
  %v4922 = vmul.f32 %v4737, 0.01
  %v4923 = vmul.f32 %v4821, 0.01
  %v4924 = vmul.f32 %v4739, 0.01
  %v4925 = vmul.f32 %v4741, 0.01
  %v4926 = vmul.f32 %v4825, 0.01
  %v4927 = vsel %vm4915, %v4735, %v4921
  %v4928 = vsel %vm4916, %v4737, %v4922
  %v4929 = vsel %vm4917, %v4821, %v4923
  %v4930 = vsel %vm4918, %v4739, %v4924
  %v4931 = vsel %vm4919, %v4741, %v4925
  %v4932 = vsel %vm4920, %v4825, %v4926
  %v4933 = vxor.u32 %v4823, 2147483648
  %v4934 = vxor.u32 %v4907, 2147483648
  %v4935 = vxor.u32 %v4909, 2147483648
  %v4936 = vxor.u32 %v4827, 2147483648
  %v4937 = vxor.u32 %v4911, 2147483648
  %v4938 = vxor.u32 %v4913, 2147483648
  %v4939 = vmul.f32 %v4933, 1.442695
  %v4940 = vpow.pop %v4939
  %v4941 = vmul.f32 %v4934, 1.442695
  %v4942 = vpow.pop %v4941
  %v4943 = vmul.f32 %v4935, 1.442695
  %v4944 = vpow.pop %v4943
  %v4945 = vmul.f32 %v4936, 1.442695
  %v4946 = vpow.pop %v4945
  %v4947 = vmul.f32 %v4937, 1.442695
  %v4948 = vpow.pop %v4947
  %v4949 = vmul.f32 %v4938, 1.442695
  %v4950 = vpow.pop %v4949
  %v4951 = vadd.f32 %v4940, 1.0
  %v4952 = vadd.f32 %v4942, 1.0
  %v4953 = vadd.f32 %v4944, 1.0
  %v4954 = vadd.f32 %v4946, 1.0
  %v4955 = vadd.f32 %v4948, 1.0
  %v4956 = vadd.f32 %v4950, 1.0
  %v4957 = vrcp.pop %v4951
  %v4958 = vmul.f32 1.0, %v4957
  %v4959 = vrcp.pop %v4952
  %v4960 = vmul.f32 1.0, %v4959
  %v4961 = vrcp.pop %v4953
  %v4962 = vmul.f32 1.0, %v4961
  %v4963 = vrcp.pop %v4954
  %v4964 = vmul.f32 1.0, %v4963
  %v4965 = vrcp.pop %v4955
  %v4966 = vmul.f32 1.0, %v4965
  %v4967 = vrcp.pop %v4956
  %v4968 = vmul.f32 1.0, %v4967
  %v4969 = vmul.f32 %v4958, %v4927
  %v4970 = vmul.f32 %v4960, %v4928
  %v4971 = vmul.f32 %v4962, %v4929
  %v4972 = vmul.f32 %v4964, %v4930
  %v4973 = vmul.f32 %v4966, %v4931
  %v4974 = vmul.f32 %v4968, %v4932
  %v4975 = vsub.f32 1.0, %v4958
  %v4976 = vsub.f32 1.0, %v4960
  %v4977 = vsub.f32 1.0, %v4962
  %v4978 = vsub.f32 1.0, %v4964
  %v4979 = vsub.f32 1.0, %v4966
  %v4980 = vsub.f32 1.0, %v4968
  %v4981 = vmul.f32 %v4975, %v2517
  %v4982 = vmul.f32 %v4976, %v2518
  %v4983 = vmul.f32 %v4977, %v2519
  %v4984 = vmul.f32 %v4978, %v2520
  %v4985 = vmul.f32 %v4979, %v2521
  %v4986 = vmul.f32 %v4980, %v2522
  %v4987 = vadd.f32 %v4969, %v4981
  %v4988 = vadd.f32 %v4970, %v4982
  %v4989 = vadd.f32 %v4971, %v4983
  %v4990 = vadd.f32 %v4972, %v4984
  %v4991 = vadd.f32 %v4973, %v4985
  %v4992 = vadd.f32 %v4974, %v4986
  %v4993 = vpack.c.bf16 %v3755, %v3752
  %v4994 = vpack.c.bf16 %v3756, %v3753
  %v4995 = vpack.c.bf16 %v3757, %v3754
  %v4996 = vld [vmem:[%s7] sm:$0xf]
  %v4997 = vld [vmem:[%s7 + $0x4] sm:$0xf]
  %v4998 = vld [vmem:[%s7 + $0x8] sm:$0xf]
  %v4999 = vld [vmem:[%s7 + $0xc] sm:$0xf]
  %v5000 = vld [vmem:[%s7 + $0x10] sm:$0xf]
  %v5001 = vld [vmem:[%s7 + $0x14] sm:$0xf]
  %v5002 = vld [vmem:[%s7 + $0x18] sm:$0xf]
  %v5003 = vld [vmem:[%s7 + $0x1c] sm:$0xf]
  %v5004 = vld [vmem:[%s7 + $0x20] sm:$0xf]
  %v5005 = vld [vmem:[%s7 + $0x24] sm:$0xf]
  %v5006 = vld [vmem:[%s7 + $0x28] sm:$0xf]
  %v5007 = vld [vmem:[%s7 + $0x2c] sm:$0xf]
  %v5008 = vld [vmem:[%s7 + $0x30] sm:$0xf]
  %v5009 = vld [vmem:[%s7 + $0x34] sm:$0xf]
  %v5010 = vld [vmem:[%s7 + $0x38] sm:$0xf]
  %v5011 = vld [vmem:[%s7 + $0x3c] sm:$0xf]
  %v5012 = vld [vmem:[%s7 + $0x40] sm:$0xf]
  %v5013 = vld [vmem:[%s7 + $0x44] sm:$0xf]
  %v5014 = vld [vmem:[%s7 + $0x48] sm:$0xf]
  %v5015 = vld [vmem:[%s7 + $0x4c] sm:$0xf]
  %v5016 = vld [vmem:[%s7 + $0x50] sm:$0xf]
  %v5017 = vld [vmem:[%s7 + $0x54] sm:$0xf]
  %v5018 = vld [vmem:[%s7 + $0x58] sm:$0xf]
  %v5019 = vld [vmem:[%s7 + $0x5c] sm:$0xf]
  %v5020 = vld [vmem:[%s7 + $0x60] sm:$0xf]
  %v5021 = vld [vmem:[%s7 + $0x64] sm:$0xf]
  %v5022 = vld [vmem:[%s7 + $0x68] sm:$0xf]
  %v5023 = vld [vmem:[%s7 + $0x6c] sm:$0xf]
  %v5024 = vld [vmem:[%s7 + $0x70] sm:$0xf]
  %v5025 = vld [vmem:[%s7 + $0x74] sm:$0xf]
  %v5026 = vld [vmem:[%s7 + $0x78] sm:$0xf]
  %v5027 = vld [vmem:[%s7 + $0x7c] sm:$0xf]
  %v5028 = vld [vmem:[%s7 + $0x80] sm:$0xf]
  %v5029 = vld [vmem:[%s7 + $0x84] sm:$0xf]
  %v5030 = vld [vmem:[%s7 + $0x88] sm:$0xf]
  %v5031 = vld [vmem:[%s7 + $0x8c] sm:$0xf]
  %v5032 = vld [vmem:[%s7 + $0x90] sm:$0xf]
  %v5033 = vld [vmem:[%s7 + $0x94] sm:$0xf]
  %v5034 = vld [vmem:[%s7 + $0x98] sm:$0xf]
  %v5035 = vld [vmem:[%s7 + $0x9c] sm:$0xf]
  %v5036 = vld [vmem:[%s7 + $0xa0] sm:$0xf]
  %v5037 = vld [vmem:[%s7 + $0xa4] sm:$0xf]
  %v5038 = vld [vmem:[%s7 + $0xa8] sm:$0xf]
  %v5039 = vld [vmem:[%s7 + $0xac] sm:$0xf]
  %v5040 = vld [vmem:[%s7 + $0xb0] sm:$0xf]
  %v5041 = vld [vmem:[%s7 + $0xb4] sm:$0xf]
  %v5042 = vld [vmem:[%s7 + $0xb8] sm:$0xf]
  %v5043 = vld [vmem:[%s7 + $0xbc] sm:$0xf]
  %v5044 = vpack.c.bf16 %v4990, %v4987
  %v5045 = vpack.c.bf16 %v4991, %v4988
  %v5046 = vpack.c.bf16 %v4992, %v4989
  %v5047 = vld [vmem:[%s7 + $0xc0] sm:$0xf]
  %v5048 = vld [vmem:[%s7 + $0xc4] sm:$0xf]
  %v5049 = vld [vmem:[%s7 + $0xc8] sm:$0xf]
  %v5050 = vld [vmem:[%s7 + $0xcc] sm:$0xf]
  %v5051 = vld [vmem:[%s7 + $0xd0] sm:$0xf]
  %v5052 = vld [vmem:[%s7 + $0xd4] sm:$0xf]
  %v5053 = vld [vmem:[%s7 + $0xd8] sm:$0xf]
  %v5054 = vld [vmem:[%s7 + $0xdc] sm:$0xf]
  %v5055 = vld [vmem:[%s7 + $0xe0] sm:$0xf]
  %v5056 = vld [vmem:[%s7 + $0xe4] sm:$0xf]
  %v5057 = vld [vmem:[%s7 + $0xe8] sm:$0xf]
  %v5058 = vld [vmem:[%s7 + $0xec] sm:$0xf]
  %v5059 = vld [vmem:[%s7 + $0xf0] sm:$0xf]
  %v5060 = vld [vmem:[%s7 + $0xf4] sm:$0xf]
  %v5061 = vld [vmem:[%s7 + $0xf8] sm:$0xf]
  %v5062 = vld [vmem:[%s7 + $0xfc] sm:$0xf]
  %v5063 = vld [vmem:[%s7 + $0x100] sm:$0xf]
  %v5064 = vld [vmem:[%s7 + $0x104] sm:$0xf]
  %v5065 = vld [vmem:[%s7 + $0x108] sm:$0xf]
  %v5066 = vld [vmem:[%s7 + $0x10c] sm:$0xf]
  %v5067 = vld [vmem:[%s7 + $0x110] sm:$0xf]
  %v5068 = vld [vmem:[%s7 + $0x114] sm:$0xf]
  %v5069 = vld [vmem:[%s7 + $0x118] sm:$0xf]
  %v5070 = vld [vmem:[%s7 + $0x11c] sm:$0xf]
  %v5071 = vld [vmem:[%s7 + $0x120] sm:$0xf]
  %v5072 = vld [vmem:[%s7 + $0x124] sm:$0xf]
  %v5073 = vld [vmem:[%s7 + $0x128] sm:$0xf]
  %v5074 = vld [vmem:[%s7 + $0x12c] sm:$0xf]
  %v5075 = vld [vmem:[%s7 + $0x130] sm:$0xf]
  %v5076 = vld [vmem:[%s7 + $0x134] sm:$0xf]
  %v5077 = vld [vmem:[%s7 + $0x138] sm:$0xf]
  %v5078 = vld [vmem:[%s7 + $0x13c] sm:$0xf]
  %v5079 = vld [vmem:[%s7 + $0x140] sm:$0xf]
  %v5080 = vld [vmem:[%s7 + $0x144] sm:$0xf]
  %v5081 = vld [vmem:[%s7 + $0x148] sm:$0xf]
  %v5082 = vld [vmem:[%s7 + $0x14c] sm:$0xf]
  %v5083 = vld [vmem:[%s7 + $0x150] sm:$0xf]
  %v5084 = vld [vmem:[%s7 + $0x154] sm:$0xf]
  %v5085 = vld [vmem:[%s7 + $0x158] sm:$0xf]
  %v5086 = vld [vmem:[%s7 + $0x15c] sm:$0xf]
  %v5087 = vld [vmem:[%s7 + $0x160] sm:$0xf]
  %v5088 = vld [vmem:[%s7 + $0x164] sm:$0xf]
  %v5089 = vld [vmem:[%s7 + $0x168] sm:$0xf]
  %v5090 = vld [vmem:[%s7 + $0x16c] sm:$0xf]
  %v5091 = vld [vmem:[%s7 + $0x170] sm:$0xf]
  %v5092 = vld [vmem:[%s7 + $0x174] sm:$0xf]
  %v5093 = vld [vmem:[%s7 + $0x178] sm:$0xf]
  %v5094 = vld [vmem:[%s7 + $0x17c] sm:$0xf]
  %v5143 = vunpack.c.l.b16 %v5047
  %v5144 = vunpack.c.l.b16 %v5048
  %v5145 = vunpack.c.l.b16 %v5049
  %v5146 = vunpack.c.l.b16 %v5050
  %v5147 = vunpack.c.l.b16 %v5051
  %v5148 = vunpack.c.l.b16 %v5052
  %v5149 = vunpack.c.l.b16 %v5053
  %v5150 = vunpack.c.l.b16 %v5054
  %v5151 = vunpack.c.l.b16 %v5055
  %v5152 = vunpack.c.l.b16 %v5056
  %v5153 = vunpack.c.l.b16 %v5057
  %v5154 = vunpack.c.l.b16 %v5058
  %v5155 = vunpack.c.l.b16 %v5059
  %v5156 = vunpack.c.l.b16 %v5060
  %v5157 = vunpack.c.l.b16 %v5061
  %v5158 = vunpack.c.l.b16 %v5062
  %v5159 = vunpack.c.l.b16 %v5063
  %v5160 = vunpack.c.l.b16 %v5064
  %v5161 = vunpack.c.l.b16 %v5065
  %v5162 = vunpack.c.l.b16 %v5066
  %v5163 = vunpack.c.l.b16 %v5067
  %v5164 = vunpack.c.l.b16 %v5068
  %v5165 = vunpack.c.l.b16 %v5069
  %v5166 = vunpack.c.l.b16 %v5070
  %v5167 = vunpack.c.l.b16 %v5071
  %v5168 = vunpack.c.l.b16 %v5072
  %v5169 = vunpack.c.l.b16 %v5073
  %v5170 = vunpack.c.l.b16 %v5074
  %v5171 = vunpack.c.l.b16 %v5075
  %v5172 = vunpack.c.l.b16 %v5076
  %v5173 = vunpack.c.l.b16 %v5077
  %v5174 = vunpack.c.l.b16 %v5078
  %v5175 = vunpack.c.l.b16 %v5079
  %v5176 = vunpack.c.l.b16 %v5080
  %v5177 = vunpack.c.l.b16 %v5081
  %v5178 = vunpack.c.l.b16 %v5082
  %v5179 = vunpack.c.l.b16 %v5083
  %v5180 = vunpack.c.l.b16 %v5084
  %v5181 = vunpack.c.l.b16 %v5085
  %v5182 = vunpack.c.l.b16 %v5086
  %v5183 = vunpack.c.l.b16 %v5087
  %v5184 = vunpack.c.l.b16 %v5088
  %v5185 = vunpack.c.l.b16 %v5089
  %v5186 = vunpack.c.l.b16 %v5090
  %v5187 = vunpack.c.l.b16 %v5091
  %v5188 = vunpack.c.l.b16 %v5092
  %v5189 = vunpack.c.l.b16 %v5093
  %v5190 = vunpack.c.l.b16 %v5094
  %v5191 = vpack.c.b16 %v5144, %v5143
  %v5192 = vpack.c.b16 %v5146, %v5145
  %v5193 = vpack.c.b16 %v5148, %v5147
  %v5194 = vpack.c.b16 %v5150, %v5149
  %v5195 = vpack.c.b16 %v5152, %v5151
  %v5196 = vpack.c.b16 %v5154, %v5153
  %v5197 = vpack.c.b16 %v5156, %v5155
  %v5198 = vpack.c.b16 %v5158, %v5157
  %v5199 = vpack.c.b16 %v5160, %v5159
  %v5200 = vpack.c.b16 %v5162, %v5161
  %v5201 = vpack.c.b16 %v5164, %v5163
  %v5202 = vpack.c.b16 %v5166, %v5165
  %v5203 = vpack.c.b16 %v5168, %v5167
  %v5204 = vpack.c.b16 %v5170, %v5169
  %v5205 = vpack.c.b16 %v5172, %v5171
  %v5206 = vpack.c.b16 %v5174, %v5173
  %v5207 = vpack.c.b16 %v5176, %v5175
  %v5208 = vpack.c.b16 %v5178, %v5177
  %v5209 = vpack.c.b16 %v5180, %v5179
  %v5210 = vpack.c.b16 %v5182, %v5181
  %v5211 = vpack.c.b16 %v5184, %v5183
  %v5212 = vpack.c.b16 %v5186, %v5185
  %v5213 = vpack.c.b16 %v5188, %v5187
  %v5214 = vpack.c.b16 %v5190, %v5189
  %5239 = vmatprep.subr.bf16.mxu0 0
  %5240 = vmatpush1.bf16.msra.mxu0 %v5198
  %5241 = vmatprep.subr.bf16.mxu0 0
  %5242 = vmatpush1.bf16.msra.mxu0 %v5197
  %5243 = vmatprep.subr.bf16.mxu0 0
  %5244 = vmatpush1.bf16.msra.mxu0 %v5196
  %5245 = vmatprep.subr.bf16.mxu0 0
  %5246 = vmatpush1.bf16.msra.mxu0 %v5195
  %5247 = vmatprep.subr.bf16.mxu0 0
  %5248 = vmatpush1.bf16.msra.mxu0 %v5194
  %5249 = vmatprep.subr.bf16.mxu0 0
  %5250 = vmatpush1.bf16.msra.mxu0 %v5193
  %5251 = vmatprep.subr.bf16.mxu0 0
  %5252 = vmatpush1.bf16.msra.mxu0 %v5192
  %5253 = vmatprep.subr.bf16.mxu0 0
  %5254 = vmatpush1.bf16.msra.mxu0 %v5191
  %5255 = vmatprep.subr.bf16.mxu0 0
  %5256 = vmatpush2.bf16.msra.mxu0 %v5206
  %5257 = vmatprep.subr.bf16.mxu0 0
  %5258 = vmatpush2.bf16.msra.mxu0 %v5205
  %5259 = vmatprep.subr.bf16.mxu0 0
  %5260 = vmatpush2.bf16.msra.mxu0 %v5204
  %5261 = vmatprep.subr.bf16.mxu0 0
  %5262 = vmatpush2.bf16.msra.mxu0 %v5203
  %5263 = vmatprep.subr.bf16.mxu0 0
  %5264 = vmatpush2.bf16.msra.mxu0 %v5202
  %5265 = vmatprep.subr.bf16.mxu0 0
  %5266 = vmatpush2.bf16.msra.mxu0 %v5201
  %5267 = vmatprep.subr.bf16.mxu0 0
  %5268 = vmatpush2.bf16.msra.mxu0 %v5200
  %5269 = vmatprep.subr.bf16.mxu0 0
  %5270 = vmatpush2.bf16.msra.mxu0 %v5199
  %5271 = vmatprep.mubr.bf16.mxu0 %v5045
  %5272 = vmatmul.mubr.bf16.gmra.mxu0 %v5044
  %v5273 = vpop.f32.mrf.mxu0
  %v5274 = vadd.f32 0.0, %v5273
  %v5275 = vpop.f32.mrf.mxu0
  %v5276 = vpop.f32.mrf.mxu0
  %v5277 = vadd.f32 0.0, %v5276
  %v5278 = vpop.f32.mrf.mxu0
  %5279 = vdwg.mxu0
  %5280 = vmatprep.subr.bf16.mxu0 0
  %5281 = vmatpush1.bf16.msra.mxu0 %v5214
  %5282 = vmatprep.subr.bf16.mxu0 0
  %5283 = vmatpush1.bf16.msra.mxu0 %v5213
  %5284 = vmatprep.subr.bf16.mxu0 0
  %5285 = vmatpush1.bf16.msra.mxu0 %v5212
  %5286 = vmatprep.subr.bf16.mxu0 0
  %5287 = vmatpush1.bf16.msra.mxu0 %v5211
  %5288 = vmatprep.subr.bf16.mxu0 0
  %5289 = vmatpush1.bf16.msra.mxu0 %v5210
  %5290 = vmatprep.subr.bf16.mxu0 0
  %5291 = vmatpush1.bf16.msra.mxu0 %v5209
  %5292 = vmatprep.subr.bf16.mxu0 0
  %5293 = vmatpush1.bf16.msra.mxu0 %v5208
  %5294 = vmatprep.subr.bf16.mxu0 0
  %5295 = vmatpush1.bf16.msra.mxu0 %v5207
  %5296 = vmatprep.subr.bf16.mxu0 0
  %5297 = vmatpush2.bf16.msra.mxu0 0
  %5298 = vmatprep.subr.bf16.mxu0 0
  %5299 = vmatpush2.bf16.msra.mxu0 0
  %5300 = vmatprep.subr.bf16.mxu0 0
  %5301 = vmatpush2.bf16.msra.mxu0 0
  %5302 = vmatprep.subr.bf16.mxu0 0
  %5303 = vmatpush2.bf16.msra.mxu0 0
  %5304 = vmatprep.subr.bf16.mxu0 0
  %5305 = vmatpush2.bf16.msra.mxu0 0
  %5306 = vmatprep.subr.bf16.mxu0 0
  %5307 = vmatpush2.bf16.msra.mxu0 0
  %5308 = vmatprep.subr.bf16.mxu0 0
  %5309 = vmatpush2.bf16.msra.mxu0 0
  %5310 = vmatprep.subr.bf16.mxu0 0
  %5311 = vmatpush2.bf16.msra.mxu0 0
  %5312 = vmatprep.mubr.bf16.mxu0 0
  %5313 = vmatmul.mubr.bf16.gmra.mxu0 %v5046
  %v5314 = vpop.f32.mrf.mxu0
  %v5315 = vadd.f32 %v5274, %v5314
  %v5316 = vpop.f32.mrf.mxu0
  %v5317 = vpop.f32.mrf.mxu0
  %v5318 = vadd.f32 %v5277, %v5317
  %v5319 = vpop.f32.mrf.mxu0
  %5320 = vdwg.mxu0
  %v5369 = vunpack.c.l.b16 %v4996
  %v5370 = vunpack.c.l.b16 %v4997
  %v5371 = vunpack.c.l.b16 %v4998
  %v5372 = vunpack.c.l.b16 %v4999
  %v5373 = vunpack.c.l.b16 %v5000
  %v5374 = vunpack.c.l.b16 %v5001
  %v5375 = vunpack.c.l.b16 %v5002
  %v5376 = vunpack.c.l.b16 %v5003
  %v5377 = vunpack.c.l.b16 %v5004
  %v5378 = vunpack.c.l.b16 %v5005
  %v5379 = vunpack.c.l.b16 %v5006
  %v5380 = vunpack.c.l.b16 %v5007
  %v5381 = vunpack.c.l.b16 %v5008
  %v5382 = vunpack.c.l.b16 %v5009
  %v5383 = vunpack.c.l.b16 %v5010
  %v5384 = vunpack.c.l.b16 %v5011
  %v5385 = vunpack.c.l.b16 %v5012
  %v5386 = vunpack.c.l.b16 %v5013
  %v5387 = vunpack.c.l.b16 %v5014
  %v5388 = vunpack.c.l.b16 %v5015
  %v5389 = vunpack.c.l.b16 %v5016
  %v5390 = vunpack.c.l.b16 %v5017
  %v5391 = vunpack.c.l.b16 %v5018
  %v5392 = vunpack.c.l.b16 %v5019
  %v5393 = vunpack.c.l.b16 %v5020
  %v5394 = vunpack.c.l.b16 %v5021
  %v5395 = vunpack.c.l.b16 %v5022
  %v5396 = vunpack.c.l.b16 %v5023
  %v5397 = vunpack.c.l.b16 %v5024
  %v5398 = vunpack.c.l.b16 %v5025
  %v5399 = vunpack.c.l.b16 %v5026
  %v5400 = vunpack.c.l.b16 %v5027
  %v5401 = vunpack.c.l.b16 %v5028
  %v5402 = vunpack.c.l.b16 %v5029
  %v5403 = vunpack.c.l.b16 %v5030
  %v5404 = vunpack.c.l.b16 %v5031
  %v5405 = vunpack.c.l.b16 %v5032
  %v5406 = vunpack.c.l.b16 %v5033
  %v5407 = vunpack.c.l.b16 %v5034
  %v5408 = vunpack.c.l.b16 %v5035
  %v5409 = vunpack.c.l.b16 %v5036
  %v5410 = vunpack.c.l.b16 %v5037
  %v5411 = vunpack.c.l.b16 %v5038
  %v5412 = vunpack.c.l.b16 %v5039
  %v5413 = vunpack.c.l.b16 %v5040
  %v5414 = vunpack.c.l.b16 %v5041
  %v5415 = vunpack.c.l.b16 %v5042
  %v5416 = vunpack.c.l.b16 %v5043
  %v5417 = vpack.c.b16 %v5370, %v5369
  %v5418 = vpack.c.b16 %v5372, %v5371
  %v5419 = vpack.c.b16 %v5374, %v5373
  %v5420 = vpack.c.b16 %v5376, %v5375
  %v5421 = vpack.c.b16 %v5378, %v5377
  %v5422 = vpack.c.b16 %v5380, %v5379
  %v5423 = vpack.c.b16 %v5382, %v5381
  %v5424 = vpack.c.b16 %v5384, %v5383
  %v5425 = vpack.c.b16 %v5386, %v5385
  %v5426 = vpack.c.b16 %v5388, %v5387
  %v5427 = vpack.c.b16 %v5390, %v5389
  %v5428 = vpack.c.b16 %v5392, %v5391
  %v5429 = vpack.c.b16 %v5394, %v5393
  %v5430 = vpack.c.b16 %v5396, %v5395
  %v5431 = vpack.c.b16 %v5398, %v5397
  %v5432 = vpack.c.b16 %v5400, %v5399
  %v5433 = vpack.c.b16 %v5402, %v5401
  %v5434 = vpack.c.b16 %v5404, %v5403
  %v5435 = vpack.c.b16 %v5406, %v5405
  %v5436 = vpack.c.b16 %v5408, %v5407
  %v5437 = vpack.c.b16 %v5410, %v5409
  %v5438 = vpack.c.b16 %v5412, %v5411
  %v5439 = vpack.c.b16 %v5414, %v5413
  %v5440 = vpack.c.b16 %v5416, %v5415
  %5465 = vmatprep.subr.bf16.mxu0 0
  %5466 = vmatpush1.bf16.msra.mxu0 %v5424
  %5467 = vmatprep.subr.bf16.mxu0 0
  %5468 = vmatpush1.bf16.msra.mxu0 %v5423
  %5469 = vmatprep.subr.bf16.mxu0 0
  %5470 = vmatpush1.bf16.msra.mxu0 %v5422
  %5471 = vmatprep.subr.bf16.mxu0 0
  %5472 = vmatpush1.bf16.msra.mxu0 %v5421
  %5473 = vmatprep.subr.bf16.mxu0 0
  %5474 = vmatpush1.bf16.msra.mxu0 %v5420
  %5475 = vmatprep.subr.bf16.mxu0 0
  %5476 = vmatpush1.bf16.msra.mxu0 %v5419
  %5477 = vmatprep.subr.bf16.mxu0 0
  %5478 = vmatpush1.bf16.msra.mxu0 %v5418
  %5479 = vmatprep.subr.bf16.mxu0 0
  %5480 = vmatpush1.bf16.msra.mxu0 %v5417
  %5481 = vmatprep.subr.bf16.mxu0 0
  %5482 = vmatpush2.bf16.msra.mxu0 %v5432
  %5483 = vmatprep.subr.bf16.mxu0 0
  %5484 = vmatpush2.bf16.msra.mxu0 %v5431
  %5485 = vmatprep.subr.bf16.mxu0 0
  %5486 = vmatpush2.bf16.msra.mxu0 %v5430
  %5487 = vmatprep.subr.bf16.mxu0 0
  %5488 = vmatpush2.bf16.msra.mxu0 %v5429
  %5489 = vmatprep.subr.bf16.mxu0 0
  %5490 = vmatpush2.bf16.msra.mxu0 %v5428
  %5491 = vmatprep.subr.bf16.mxu0 0
  %5492 = vmatpush2.bf16.msra.mxu0 %v5427
  %5493 = vmatprep.subr.bf16.mxu0 0
  %5494 = vmatpush2.bf16.msra.mxu0 %v5426
  %5495 = vmatprep.subr.bf16.mxu0 0
  %5496 = vmatpush2.bf16.msra.mxu0 %v5425
  %5497 = vmatprep.mubr.bf16.mxu0 %v4994
  %5498 = vmatmul.mubr.bf16.gmra.mxu0 %v4993
  %v5499 = vpop.f32.mrf.mxu0
  %v5500 = vadd.f32 %v5315, %v5499
  %v5501 = vpop.f32.mrf.mxu0
  %v5502 = vpop.f32.mrf.mxu0
  %v5503 = vadd.f32 %v5318, %v5502
  %v5504 = vpop.f32.mrf.mxu0
  %5505 = vdwg.mxu0
  %5506 = vmatprep.subr.bf16.mxu0 0
  %5507 = vmatpush1.bf16.msra.mxu0 %v5440
  %5508 = vmatprep.subr.bf16.mxu0 0
  %5509 = vmatpush1.bf16.msra.mxu0 %v5439
  %5510 = vmatprep.subr.bf16.mxu0 0
  %5511 = vmatpush1.bf16.msra.mxu0 %v5438
  %5512 = vmatprep.subr.bf16.mxu0 0
  %5513 = vmatpush1.bf16.msra.mxu0 %v5437
  %5514 = vmatprep.subr.bf16.mxu0 0
  %5515 = vmatpush1.bf16.msra.mxu0 %v5436
  %5516 = vmatprep.subr.bf16.mxu0 0
  %5517 = vmatpush1.bf16.msra.mxu0 %v5435
  %5518 = vmatprep.subr.bf16.mxu0 0
  %5519 = vmatpush1.bf16.msra.mxu0 %v5434
  %5520 = vmatprep.subr.bf16.mxu0 0
  %5521 = vmatpush1.bf16.msra.mxu0 %v5433
  %5522 = vmatprep.subr.bf16.mxu0 0
  %5523 = vmatpush2.bf16.msra.mxu0 0
  %5524 = vmatprep.subr.bf16.mxu0 0
  %5525 = vmatpush2.bf16.msra.mxu0 0
  %5526 = vmatprep.subr.bf16.mxu0 0
  %5527 = vmatpush2.bf16.msra.mxu0 0
  %5528 = vmatprep.subr.bf16.mxu0 0
  %5529 = vmatpush2.bf16.msra.mxu0 0
  %5530 = vmatprep.subr.bf16.mxu0 0
  %5531 = vmatpush2.bf16.msra.mxu0 0
  %5532 = vmatprep.subr.bf16.mxu0 0
  %5533 = vmatpush2.bf16.msra.mxu0 0
  %5534 = vmatprep.subr.bf16.mxu0 0
  %5535 = vmatpush2.bf16.msra.mxu0 0
  %5536 = vmatprep.subr.bf16.mxu0 0
  %5537 = vmatpush2.bf16.msra.mxu0 0
  %5538 = vmatprep.mubr.bf16.mxu0 0
  %5539 = vmatmul.mubr.bf16.gmra.mxu0 %v4995
  %v5540 = vpop.f32.mrf.mxu0
  %v5541 = vadd.f32 %v5500, %v5540
  %v5542 = vpop.f32.mrf.mxu0
  %v5543 = vpop.f32.mrf.mxu0
  %v5544 = vadd.f32 %v5503, %v5543
  %v5545 = vpop.f32.mrf.mxu0
  %5546 = vdwg.mxu0
  %v5547 = vld [vmem:[%s8] sm:$0x1]
  %v5549 = vlaneseq
  %v5550 = vshrl.u32 %v5549, 7
  %v5551 = vsub.s32 0, %v5550
  %v5552 = vrot.slane %v5547, %v5551
  %v5554 = vadd.f32 %v5541, %v5552
  %v5555 = vadd.f32 %v5544, %v5552
  %5556 = vst [vmem:[%s9] sm:$0xff] %v5554
  %5557 = vst [vmem:[%s9 + $0x8] sm:$0xff] %v5555
  // Predicated region
  $region38: #{dann_forward.1} parent=0 // pred_check
    _
  $region39: #{dann_forward.1} parent=0 // pred_check_branch
    %5559 = sbr.rel (0) target = $region41
  $region40: #{dann_forward.1} parent=0 // pred_region
    _
  $region41: #{dann_forward.1} parent=0 // pred_fallthru
    _
  // Predicated region
  $region42: #{dann_forward.1} parent=0 // pred_check
    _
  $region43: #{dann_forward.1} parent=0 // pred_check_branch
    %5561 = sbr.rel (0) target = $region45
  $region44: #{dann_forward.1} parent=0 // pred_region
    _
  $region45: #{dann_forward.1} parent=0 // pred_fallthru
    _

</llo_original>
